<compile_context>
chip_gen: v5e
topology: v5e:2x2
jax: 0.10.0
libtpu: 0.0.40
codegen_flags: <defaults>
</compile_context>

<pallas_src>
import functools
import math

import jax
import jax.numpy as jnp
from jax import lax
from jax.experimental import pallas as pl
from jax.experimental.pallas import tpu as pltpu

_NEG_INF = -1e9


# ---------------------------------------------------------------------------
# In-kernel helpers (traced inside the Pallas kernel body)
# ---------------------------------------------------------------------------
def _layernorm(x, gamma, beta, eps=1e-6):
    mu = jnp.mean(x, axis=-1, keepdims=True)
    var = jnp.mean((x - mu) ** 2, axis=-1, keepdims=True)
    return (x - mu) * lax.rsqrt(var + eps) * gamma + beta


def _mha(x_q, x_kv, bias, wq, bq, wk, bk, wv, bv, wo, bo, gamma, beta,
         attn_ref):
    """Multi-head attention for one batch element with heads batched along a
    leading dim.

    x_q: (Sq, D) f32, x_kv: (Sk, D) f32, bias: (1, Sk) additive mask bias.
    wq/wk: (H, D, d_k) bf16, wv: (H, D, d_v) bf16, wo: (H, d_v, D) bf16.
    Biases / LayerNorm params are f32.  1/sqrt(d_k) is already folded into
    wq/bq.  attn_ref: (1, H, Sq, Sk) output ref, or None to skip writing.
    """
    n_head = wq.shape[0]
    sq, d_model = x_q.shape
    sk = x_kv.shape[0]

    xq_b = jnp.broadcast_to(x_q.astype(jnp.bfloat16)[None],
                            (n_head, sq, d_model))
    if x_kv is x_q:
        xkv_b = xq_b
    else:
        xkv_b = jnp.broadcast_to(x_kv.astype(jnp.bfloat16)[None],
                                 (n_head, sk, d_model))

    # Per-head projections: one batched contraction each (bf16 in, f32 acc).
    q = jnp.einsum('hsd,hdf->hsf', xq_b, wq[...],
                   preferred_element_type=jnp.float32) + bq[...]   # (H,Sq,dk)
    k = jnp.einsum('hsd,hdf->hsf', xkv_b, wk[...],
                   preferred_element_type=jnp.float32) + bk[...]   # (H,Sk,dk)
    v = jnp.einsum('hsd,hdf->hsf', xkv_b, wv[...],
                   preferred_element_type=jnp.float32) + bv[...]   # (H,Sk,dv)

    # Scores (already scaled by 1/sqrt(d_k)) + additive padding-mask bias.
    s = jnp.einsum('hqd,hkd->hqk', q.astype(jnp.bfloat16),
                   k.astype(jnp.bfloat16),
                   preferred_element_type=jnp.float32)
    s = s + bias[None, :, :]                                       # (H,Sq,Sk)

    # Explicit f32 softmax; the per-row divide goes to the EUP slot.
    m = jnp.max(s, axis=-1, keepdims=True)
    e = jnp.exp(s - m)
    denom = jnp.sum(e, axis=-1, keepdims=True)
    p = e * pl.reciprocal(denom, approx=True)                      # (H,Sq,Sk)

    if attn_ref is not None:
        attn_ref[0] = p          # single contiguous store, written when ready

    o = jnp.einsum('hqk,hkd->hqd', p.astype(jnp.bfloat16),
                   v.astype(jnp.bfloat16),
                   preferred_element_type=jnp.float32)             # (H,Sq,dv)

    # Output projection decomposed per head and summed -> no head concat /
    # lane shuffle: concat_h(o_h) @ Wo^T == sum_h o_h @ Wo^T[h*dv:(h+1)*dv].
    proj = jnp.sum(
        jnp.einsum('hqd,hdm->hqm', o.astype(jnp.bfloat16), wo[...],
                   preferred_element_type=jnp.float32),
        axis=0) + bo[...]                                          # (Sq, D)
    return _layernorm(proj + x_q, gamma[...], beta[...])


# ---------------------------------------------------------------------------
# Fused decoder-layer kernel (one batch element per grid step)
# ---------------------------------------------------------------------------
def decoder_layer_kernel(dec_ref, enc_ref, slf_bias_ref, ed_bias_ref, *rest,
                         return_attn):
    (wq1, bq1, wk1, bk1, wv1, bv1, wo1, bo1, g1, be1,
     wq2, bq2, wk2, bk2, wv2, bv2, wo2, bo2, g2, be2,
     w1, b1, w2, b2, g3, be3) = rest[:26]
    if return_attn:
        out_ref, slf_attn_ref, ed_attn_ref = rest[26:]
    else:
        (out_ref,) = rest[26:]
        slf_attn_ref = ed_attn_ref = None

    x = dec_ref[0]                 # (S_dec, D) f32
    enc = enc_ref[0]               # (S_enc, D) f32
    slf_bias = slf_bias_ref[0]     # (1, S_dec) additive mask bias
    ed_bias = ed_bias_ref[0]       # (1, S_enc)

    # --- self attention -----------------------------------------------------
    slf_out = _mha(x, x, slf_bias, wq1, bq1, wk1, bk1, wv1, bv1, wo1, bo1,
                   g1, be1, slf_attn_ref)

    # --- encoder-decoder attention ------------------------------------------
    ed_out = _mha(slf_out, enc, ed_bias, wq2, bq2, wk2, bk2, wv2, bv2, wo2,
                  bo2, g2, be2, ed_attn_ref)

    # --- position-wise feed-forward (bf16 MXU inputs, f32 accumulation) ------
    h1 = jnp.maximum(
        jnp.dot(ed_out.astype(jnp.bfloat16), w1[...],
                preferred_element_type=jnp.float32) + b1[...], 0.0)
    h2 = jnp.dot(h1.astype(jnp.bfloat16), w2[...],
                 preferred_element_type=jnp.float32) + b2[...]
    out_ref[0] = _layernorm(h2 + ed_out, g3[...], be3[...])


# ---------------------------------------------------------------------------
# Host-side (one-time) parameter preprocessing
# ---------------------------------------------------------------------------
def _prep_params(params, n_head, d_k, d_v, mxu_dtype=jnp.bfloat16):
    """PyTorch-convention Linear weights [out, in] -> MXU-friendly layouts:
    per-head [H, D, d] projection weights, [H, d_v, D] output projection,
    [in, out] FFN weights, bf16 matmul operands, 1/sqrt(d_k) folded into q."""
    (wq1, bq1, wk1, bk1, wv1, bv1, wo1, bo1, g1, be1,
     wq2, bq2, wk2, bk2, wv2, bv2, wo2, bo2, g2, be2,
     w1, b1, w2, b2, g3, be3) = params
    inv_t = 1.0 / math.sqrt(d_k)

    def f32(x):
        return jnp.asarray(x, jnp.float32)

    def proj_w(w, d_head, scale=1.0):          # (H*d, D) -> (H, D, d)
        d_in = w.shape[1]
        wt = (f32(w) * scale).T.reshape(d_in, n_head, d_head)
        return jnp.transpose(wt, (1, 0, 2)).astype(mxu_dtype)

    def proj_b(b, d_head, scale=1.0):          # (1, H*d) -> (H, 1, d)
        return (f32(b) * scale).reshape(n_head, d_head)[:, None, :]

    def out_w(w):                               # (D, H*dv) -> (H, dv, D)
        return f32(w).T.reshape(n_head, d_v, w.shape[0]).astype(mxu_dtype)

    def lin_w(w):                               # (out, in) -> (in, out)
        return f32(w).T.astype(mxu_dtype)

    def mha_block(wq, bq, wk, bk, wv, bv, wo, bo, g, be):
        return [proj_w(wq, d_k, inv_t), proj_b(bq, d_k, inv_t),
                proj_w(wk, d_k), proj_b(bk, d_k),
                proj_w(wv, d_v), proj_b(bv, d_v),
                out_w(wo), f32(bo), f32(g), f32(be)]

    return (mha_block(wq1, bq1, wk1, bk1, wv1, bv1, wo1, bo1, g1, be1)
            + mha_block(wq2, bq2, wk2, bk2, wv2, bv2, wo2, bo2, g2, be2)
            + [lin_w(w1), f32(b1), lin_w(w2), f32(b2), f32(g3), f32(be3)])


# ---------------------------------------------------------------------------
# Wrapper
# ---------------------------------------------------------------------------
def decoder_layer(dec_input, enc_output, params, slf_attn_mask=None,
                  enc_dec_attn_mask=None, *, n_head, d_k, d_v,
                  return_attn=True, mxu_dtype=jnp.bfloat16):
    B, S_dec, D = dec_input.shape
    _, S_enc, _ = enc_output.shape

    # Additive mask bias (0 keep / -1e9 masked), broadcast over query rows.
    # Note: for fully-masked rows this yields softmax over the raw scores
    # rather than a uniform distribution (degenerate case, matches no real
    # token anyway).
    def bias_from(mask, S):
        if mask is None:
            return jnp.zeros((B, 1, S), jnp.float32)
        m = jnp.asarray(mask).reshape(B, S)
        return jnp.where(m == 0, _NEG_INF, 0.0).astype(jnp.float32) \
                  .reshape(B, 1, S)

    slf_bias = bias_from(slf_attn_mask, S_dec)
    ed_bias = bias_from(enc_dec_attn_mask, S_enc)

    prepped = _prep_params(params, n_head, d_k, d_v, mxu_dtype)

    def full(a):
        # weights/biases: one full-array block, identical for every grid step
        return pl.BlockSpec(a.shape, lambda b, _nd=a.ndim: (0,) * _nd)

    in_specs = [
        pl.BlockSpec((1, S_dec, D), lambda b: (b, 0, 0)),
        pl.BlockSpec((1, S_enc, D), lambda b: (b, 0, 0)),
        pl.BlockSpec((1, 1, S_dec), lambda b: (b, 0, 0)),
        pl.BlockSpec((1, 1, S_enc), lambda b: (b, 0, 0)),
    ] + [full(p) for p in prepped]

    out_specs = [pl.BlockSpec((1, S_dec, D), lambda b: (b, 0, 0))]
    out_shape = [jax.ShapeDtypeStruct((B, S_dec, D), jnp.float32)]
    if return_attn:
        out_specs += [
            pl.BlockSpec((1, n_head, S_dec, S_dec), lambda b: (b, 0, 0, 0)),
            pl.BlockSpec((1, n_head, S_dec, S_enc), lambda b: (b, 0, 0, 0)),
        ]
        out_shape += [
            jax.ShapeDtypeStruct((B, n_head, S_dec, S_dec), jnp.float32),
            jax.ShapeDtypeStruct((B, n_head, S_dec, S_enc), jnp.float32),
        ]

    kernel = functools.partial(decoder_layer_kernel, return_attn=return_attn)

    outs = pl.pallas_call(
        kernel,
        out_shape=out_shape,
        grid_spec=pltpu.PrefetchScalarGridSpec(
            num_scalar_prefetch=0,
            grid=(B,),
            in_specs=in_specs,
            out_specs=out_specs,
        ),
        compiler_params=pltpu.CompilerParams(
            dimension_semantics=("parallel",),   # megacore sharding on v7x
            vmem_limit_bytes=48 * 1024 * 1024,   # raise scoped VMEM (safe on
                                                 # v5e/v6e 128 MiB, v7x 64 MiB)
        ),
    )(dec_input.astype(jnp.float32), enc_output.astype(jnp.float32),
      slf_bias, ed_bias, *prepped)

    if return_attn:
        dec_out, slf_attn, ed_attn = outs
        return dec_out, slf_attn, ed_attn
    return outs[0], None, None


# ---------------------------------------------------------------------------
# Pure-JAX f32 reference (mirrors the PyTorch module, dropout = identity)
# ---------------------------------------------------------------------------
def decoder_layer_reference(dec, enc, params, slf_mask, ed_mask,
                            n_head, d_k, d_v):
    (wq1, bq1, wk1, bk1, wv1, bv1, wo1, bo1, g1, be1,
     wq2, bq2, wk2, bk2, wv2, bv2, wo2, bo2, g2, be2,
     w1, b1, w2, b2, g3, be3) = params
    temperature = math.sqrt(d_k)

    def ln(x, g, b):
        mu = jnp.mean(x, -1, keepdims=True)
        var = jnp.mean((x - mu) ** 2, -1, keepdims=True)
        return (x - mu) / jnp.sqrt(var + 1e-6) * g + b

    def mha(xq, xkv, mask, wq, bq, wk, bk, wv, bv, wo, bo, g, be):
        B, Sq, _ = xq.shape
        Sk = xkv.shape[1]
        q = (xq @ wq.T + bq).reshape(B, Sq, n_head, d_k).transpose(0, 2, 1, 3)
        k = (xkv @ wk.T + bk).reshape(B, Sk, n_head, d_k).transpose(0, 2, 1, 3)
        v = (xkv @ wv.T + bv).reshape(B, Sk, n_head, d_v).transpose(0, 2, 1, 3)
        attn = q @ k.transpose(0, 1, 3, 2) / temperature
        if mask is not None:
            attn = jnp.where(mask[:, None, None, :] == 0, _NEG_INF, attn)
        attn = jax.nn.softmax(attn, axis=-1)
        o = (attn @ v).transpose(0, 2, 1, 3).reshape(B, Sq, n_head * d_v)
        return ln(o @ wo.T + bo + xq, g, be), attn

    s_out, s_attn = mha(dec, dec, slf_mask, wq1, bq1, wk1, bk1, wv1, bv1,
                        wo1, bo1, g1, be1)
    e_out, e_attn = mha(s_out, enc, ed_mask, wq2, bq2, wk2, bk2, wv2, bv2,
                        wo2, bo2, g2, be2)
    h = jnp.maximum(e_out @ w1.T + b1, 0.0) @ w2.T + b2
    return ln(h + e_out, g3, be3), s_attn, e_attn


# ---------------------------------------------------------------------------
# Deterministic parameter init (PyTorch Linear-style uniform, LayerNorm 1/0)
# ---------------------------------------------------------------------------
def init_params(key, d_model, d_hidden, n_head, d_k, d_v):
    keys = iter(jax.random.split(key, 16))

    def lin(k, out_f, in_f):
        bound = 1.0 / math.sqrt(in_f)
        kw, kb = jax.random.split(k)
        w = jax.random.uniform(kw, (out_f, in_f), jnp.float32, -bound, bound)
        b = jax.random.uniform(kb, (1, out_f), jnp.float32, -bound, bound)
        return w, b

    params = []
    for _ in range(2):  # self-attn block, then enc-dec-attn block
        for (o, i) in [(n_head * d_k, d_model), (n_head * d_k, d_model),
                       (n_head * d_v, d_model), (d_model, n_head * d_v)]:
            w, b = lin(next(keys), o, i)
            params += [w, b]
        params += [jnp.ones((1, d_model), jnp.float32),
                   jnp.zeros((1, d_model), jnp.float32)]
    for (o, i) in [(d_hidden, d_model), (d_model, d_hidden)]:  # FFN
        w, b = lin(next(keys), o, i)
        params += [w, b]
    params += [jnp.ones((1, d_model), jnp.float32),
               jnp.zeros((1, d_model), jnp.float32)]
    return params


if __name__ == "__main__":
    B, S_dec, S_enc = 2, 8, 8
    d_model, d_hidden, n_head, d_k, d_v = 32, 64, 4, 8, 8

    key = jax.random.PRNGKey(0)
    k_dec, k_enc, k_par = jax.random.split(key, 3)
    dec_input = jax.random.normal(k_dec, (B, S_dec, d_model), jnp.float32)
    enc_output = jax.random.normal(k_enc, (B, S_enc, d_model), jnp.float32)
    params = init_params(k_par, d_model, d_hidden, n_head, d_k, d_v)

    dec_out, slf_attn, ed_attn = decoder_layer(
        dec_input, enc_output, params, None, None,
        n_head=n_head, d_k=d_k, d_v=d_v, return_attn=True)
    jax.block_until_ready((dec_out, slf_attn, ed_attn))

    assert dec_out.shape == (B, S_dec, d_model)
    assert slf_attn.shape == (B, n_head, S_dec, S_dec)
    assert ed_attn.shape == (B, n_head, S_dec, S_enc)

    # Numerical sanity check vs. a pure-JAX f32 reference (kernel uses bf16
    # MXU inputs + approx reciprocal -> generous tolerances).
    ref_out, ref_slf, ref_ed = decoder_layer_reference(
        dec_input, enc_output, params, None, None, n_head, d_k, d_v)
    assert jnp.allclose(dec_out, ref_out, atol=1e-1, rtol=1e-1)
    assert jnp.allclose(slf_attn, ref_slf, atol=3e-2, rtol=3e-2)
    assert jnp.allclose(ed_attn, ref_ed, atol=3e-2, rtol=3e-2)

    print("KERNEL_OK")
</pallas_src>

<mosaic_0001>
module attributes {stable_mosaic.version = 11 : i64} {
  func.func @decoder_layer_kernel(%arg0: i32, %arg1: memref<1x8x32xf32, #tpu.memory_space<vmem>>, %arg2: memref<1x8x32xf32, #tpu.memory_space<vmem>>, %arg3: memref<1x1x8xf32, #tpu.memory_space<vmem>>, %arg4: memref<1x1x8xf32, #tpu.memory_space<vmem>>, %arg5: memref<4x32x8xbf16, #tpu.memory_space<vmem>>, %arg6: memref<4x1x8xf32, #tpu.memory_space<vmem>>, %arg7: memref<4x32x8xbf16, #tpu.memory_space<vmem>>, %arg8: memref<4x1x8xf32, #tpu.memory_space<vmem>>, %arg9: memref<4x32x8xbf16, #tpu.memory_space<vmem>>, %arg10: memref<4x1x8xf32, #tpu.memory_space<vmem>>, %arg11: memref<4x8x32xbf16, #tpu.memory_space<vmem>>, %arg12: memref<1x32xf32, #tpu.memory_space<vmem>>, %arg13: memref<1x32xf32, #tpu.memory_space<vmem>>, %arg14: memref<1x32xf32, #tpu.memory_space<vmem>>, %arg15: memref<4x32x8xbf16, #tpu.memory_space<vmem>>, %arg16: memref<4x1x8xf32, #tpu.memory_space<vmem>>, %arg17: memref<4x32x8xbf16, #tpu.memory_space<vmem>>, %arg18: memref<4x1x8xf32, #tpu.memory_space<vmem>>, %arg19: memref<4x32x8xbf16, #tpu.memory_space<vmem>>, %arg20: memref<4x1x8xf32, #tpu.memory_space<vmem>>, %arg21: memref<4x8x32xbf16, #tpu.memory_space<vmem>>, %arg22: memref<1x32xf32, #tpu.memory_space<vmem>>, %arg23: memref<1x32xf32, #tpu.memory_space<vmem>>, %arg24: memref<1x32xf32, #tpu.memory_space<vmem>>, %arg25: memref<32x64xbf16, #tpu.memory_space<vmem>>, %arg26: memref<1x64xf32, #tpu.memory_space<vmem>>, %arg27: memref<64x32xbf16, #tpu.memory_space<vmem>>, %arg28: memref<1x32xf32, #tpu.memory_space<vmem>>, %arg29: memref<1x32xf32, #tpu.memory_space<vmem>>, %arg30: memref<1x32xf32, #tpu.memory_space<vmem>>, %arg31: memref<1x8x32xf32, #tpu.memory_space<vmem>>, %arg32: memref<1x4x8x8xf32, #tpu.memory_space<vmem>>, %arg33: memref<1x4x8x8xf32, #tpu.memory_space<vmem>>) attributes {dimension_semantics = [#tpu.dimension_semantics<parallel>], iteration_bounds = array<i64: 2>, scalar_prefetch = 0 : i64, scratch_operands = 0 : i64, tpu.core_type = #tpu.core_type<tc>, window_params = [{transform_indices = @transform_0, window_bounds = array<i64: 1, 8, 32>}, {transform_indices = @transform_1, window_bounds = array<i64: 1, 8, 32>}, {transform_indices = @transform_2, window_bounds = array<i64: 1, 1, 8>}, {transform_indices = @transform_3, window_bounds = array<i64: 1, 1, 8>}, {pipeline_mode = #tpu.pipeline_mode<synchronous>, transform_indices = @transform_4, window_bounds = array<i64: 4, 32, 8>}, {pipeline_mode = #tpu.pipeline_mode<synchronous>, transform_indices = @transform_5, window_bounds = array<i64: 4, 1, 8>}, {pipeline_mode = #tpu.pipeline_mode<synchronous>, transform_indices = @transform_6, window_bounds = array<i64: 4, 32, 8>}, {pipeline_mode = #tpu.pipeline_mode<synchronous>, transform_indices = @transform_7, window_bounds = array<i64: 4, 1, 8>}, {pipeline_mode = #tpu.pipeline_mode<synchronous>, transform_indices = @transform_8, window_bounds = array<i64: 4, 32, 8>}, {pipeline_mode = #tpu.pipeline_mode<synchronous>, transform_indices = @transform_9, window_bounds = array<i64: 4, 1, 8>}, {pipeline_mode = #tpu.pipeline_mode<synchronous>, transform_indices = @transform_10, window_bounds = array<i64: 4, 8, 32>}, {pipeline_mode = #tpu.pipeline_mode<synchronous>, transform_indices = @transform_11, window_bounds = array<i64: 1, 32>}, {pipeline_mode = #tpu.pipeline_mode<synchronous>, transform_indices = @transform_12, window_bounds = array<i64: 1, 32>}, {pipeline_mode = #tpu.pipeline_mode<synchronous>, transform_indices = @transform_13, window_bounds = array<i64: 1, 32>}, {pipeline_mode = #tpu.pipeline_mode<synchronous>, transform_indices = @transform_14, window_bounds = array<i64: 4, 32, 8>}, {pipeline_mode = #tpu.pipeline_mode<synchronous>, transform_indices = @transform_15, window_bounds = array<i64: 4, 1, 8>}, {pipeline_mode = #tpu.pipeline_mode<synchronous>, transform_indices = @transform_16, window_bounds = array<i64: 4, 32, 8>}, {pipeline_mode = #tpu.pipeline_mode<synchronous>, transform_indices = @transform_17, window_bounds = array<i64: 4, 1, 8>}, {pipeline_mode = #tpu.pipeline_mode<synchronous>, transform_indices = @transform_18, window_bounds = array<i64: 4, 32, 8>}, {pipeline_mode = #tpu.pipeline_mode<synchronous>, transform_indices = @transform_19, window_bounds = array<i64: 4, 1, 8>}, {pipeline_mode = #tpu.pipeline_mode<synchronous>, transform_indices = @transform_20, window_bounds = array<i64: 4, 8, 32>}, {pipeline_mode = #tpu.pipeline_mode<synchronous>, transform_indices = @transform_21, window_bounds = array<i64: 1, 32>}, {pipeline_mode = #tpu.pipeline_mode<synchronous>, transform_indices = @transform_22, window_bounds = array<i64: 1, 32>}, {pipeline_mode = #tpu.pipeline_mode<synchronous>, transform_indices = @transform_23, window_bounds = array<i64: 1, 32>}, {pipeline_mode = #tpu.pipeline_mode<synchronous>, transform_indices = @transform_24, window_bounds = array<i64: 32, 64>}, {pipeline_mode = #tpu.pipeline_mode<synchronous>, transform_indices = @transform_25, window_bounds = array<i64: 1, 64>}, {pipeline_mode = #tpu.pipeline_mode<synchronous>, transform_indices = @transform_26, window_bounds = array<i64: 64, 32>}, {pipeline_mode = #tpu.pipeline_mode<synchronous>, transform_indices = @transform_27, window_bounds = array<i64: 1, 32>}, {pipeline_mode = #tpu.pipeline_mode<synchronous>, transform_indices = @transform_28, window_bounds = array<i64: 1, 32>}, {pipeline_mode = #tpu.pipeline_mode<synchronous>, transform_indices = @transform_29, window_bounds = array<i64: 1, 32>}, {transform_indices = @transform_30, window_bounds = array<i64: 1, 8, 32>}, {transform_indices = @transform_31, window_bounds = array<i64: 1, 4, 8, 8>}, {transform_indices = @transform_32, window_bounds = array<i64: 1, 4, 8, 8>}]} {
    %c0 = arith.constant 0 : index
    %c0_0 = arith.constant 0 : index
    %c0_1 = arith.constant 0 : index
    %0 = vector.load %arg1[%c0, %c0_0, %c0_1] : memref<1x8x32xf32, #tpu.memory_space<vmem>>, vector<1x8x32xf32>
    %1 = vector.shape_cast %0 : vector<1x8x32xf32> to vector<8x32xf32>
    %c0_2 = arith.constant 0 : index
    %c0_3 = arith.constant 0 : index
    %c0_4 = arith.constant 0 : index
    %2 = vector.load %arg2[%c0_2, %c0_3, %c0_4] : memref<1x8x32xf32, #tpu.memory_space<vmem>>, vector<1x8x32xf32>
    %3 = vector.shape_cast %2 : vector<1x8x32xf32> to vector<8x32xf32>
    %c0_5 = arith.constant 0 : index
    %c0_6 = arith.constant 0 : index
    %c0_7 = arith.constant 0 : index
    %4 = vector.load %arg3[%c0_5, %c0_6, %c0_7] : memref<1x1x8xf32, #tpu.memory_space<vmem>>, vector<1x1x8xf32>
    %5 = vector.shape_cast %4 : vector<1x1x8xf32> to vector<1x8xf32>
    %c0_8 = arith.constant 0 : index
    %c0_9 = arith.constant 0 : index
    %c0_10 = arith.constant 0 : index
    %6 = vector.load %arg4[%c0_8, %c0_9, %c0_10] : memref<1x1x8xf32, #tpu.memory_space<vmem>>, vector<1x1x8xf32>
    %7 = vector.shape_cast %6 : vector<1x1x8xf32> to vector<1x8xf32>
    %8 = arith.truncf %1 : vector<8x32xf32> to vector<8x32xbf16>
    %9 = vector.shape_cast %8 : vector<8x32xbf16> to vector<1x8x32xbf16>
    %10 = vector.shape_cast %9 : vector<1x8x32xbf16> to vector<1x8x32xbf16>
    %11 = vector.broadcast %10 : vector<1x8x32xbf16> to vector<4x8x32xbf16>
    %c0_11 = arith.constant 0 : index
    %c0_12 = arith.constant 0 : index
    %c0_13 = arith.constant 0 : index
    %12 = vector.load %arg5[%c0_11, %c0_12, %c0_13] : memref<4x32x8xbf16, #tpu.memory_space<vmem>>, vector<4x32x8xbf16>
    "tpu.trace_start"() <{level = 10 : i32, message = "hsd,hdf->hsf"}> : () -> ()
    %cst = arith.constant dense<0.000000e+00> : vector<4x8x8xf32>
    %13 = tpu.matmul %11, %12, %cst {dimension_numbers = #tpu.dot_dimension_numbers<[2], [1], [1], [2], [0, 0, 0, 1, 1, 2], [0], [0]>} : vector<4x8x32xbf16>, vector<4x32x8xbf16>, vector<4x8x8xf32> -> vector<4x8x8xf32>
    "tpu.trace_stop"() : () -> ()
    %c0_14 = arith.constant 0 : index
    %c0_15 = arith.constant 0 : index
    %c0_16 = arith.constant 0 : index
    %14 = vector.load %arg6[%c0_14, %c0_15, %c0_16] : memref<4x1x8xf32, #tpu.memory_space<vmem>>, vector<4x1x8xf32>
    %15 = vector.broadcast %14 : vector<4x1x8xf32> to vector<4x8x8xf32>
    %16 = arith.addf %13, %15 : vector<4x8x8xf32>
    %c0_17 = arith.constant 0 : index
    %c0_18 = arith.constant 0 : index
    %c0_19 = arith.constant 0 : index
    %17 = vector.load %arg7[%c0_17, %c0_18, %c0_19] : memref<4x32x8xbf16, #tpu.memory_space<vmem>>, vector<4x32x8xbf16>
    "tpu.trace_start"() <{level = 10 : i32, message = "hsd,hdf->hsf"}> : () -> ()
    %cst_20 = arith.constant dense<0.000000e+00> : vector<4x8x8xf32>
    %18 = tpu.matmul %11, %17, %cst_20 {dimension_numbers = #tpu.dot_dimension_numbers<[2], [1], [1], [2], [0, 0, 0, 1, 1, 2], [0], [0]>} : vector<4x8x32xbf16>, vector<4x32x8xbf16>, vector<4x8x8xf32> -> vector<4x8x8xf32>
    "tpu.trace_stop"() : () -> ()
    %c0_21 = arith.constant 0 : index
    %c0_22 = arith.constant 0 : index
    %c0_23 = arith.constant 0 : index
    %19 = vector.load %arg8[%c0_21, %c0_22, %c0_23] : memref<4x1x8xf32, #tpu.memory_space<vmem>>, vector<4x1x8xf32>
    %20 = vector.broadcast %19 : vector<4x1x8xf32> to vector<4x8x8xf32>
    %21 = arith.addf %18, %20 : vector<4x8x8xf32>
    %c0_24 = arith.constant 0 : index
    %c0_25 = arith.constant 0 : index
    %c0_26 = arith.constant 0 : index
    %22 = vector.load %arg9[%c0_24, %c0_25, %c0_26] : memref<4x32x8xbf16, #tpu.memory_space<vmem>>, vector<4x32x8xbf16>
    "tpu.trace_start"() <{level = 10 : i32, message = "hsd,hdf->hsf"}> : () -> ()
    %cst_27 = arith.constant dense<0.000000e+00> : vector<4x8x8xf32>
    %23 = tpu.matmul %11, %22, %cst_27 {dimension_numbers = #tpu.dot_dimension_numbers<[2], [1], [1], [2], [0, 0, 0, 1, 1, 2], [0], [0]>} : vector<4x8x32xbf16>, vector<4x32x8xbf16>, vector<4x8x8xf32> -> vector<4x8x8xf32>
    "tpu.trace_stop"() : () -> ()
    %c0_28 = arith.constant 0 : index
    %c0_29 = arith.constant 0 : index
    %c0_30 = arith.constant 0 : index
    %24 = vector.load %arg10[%c0_28, %c0_29, %c0_30] : memref<4x1x8xf32, #tpu.memory_space<vmem>>, vector<4x1x8xf32>
    %25 = vector.broadcast %24 : vector<4x1x8xf32> to vector<4x8x8xf32>
    %26 = arith.addf %23, %25 : vector<4x8x8xf32>
    %27 = arith.truncf %16 : vector<4x8x8xf32> to vector<4x8x8xbf16>
    %28 = arith.truncf %21 : vector<4x8x8xf32> to vector<4x8x8xbf16>
    "tpu.trace_start"() <{level = 10 : i32, message = "hqd,hkd->hqk"}> : () -> ()
    %cst_31 = arith.constant dense<0.000000e+00> : vector<4x8x8xf32>
    %29 = tpu.matmul %27, %28, %cst_31 {dimension_numbers = #tpu.dot_dimension_numbers<[2], [2], [1], [1], [0, 0, 0, 1, 1, 1], [0], [0]>} : vector<4x8x8xbf16>, vector<4x8x8xbf16>, vector<4x8x8xf32> -> vector<4x8x8xf32>
    "tpu.trace_stop"() : () -> ()
    %30 = vector.shape_cast %5 : vector<1x8xf32> to vector<1x1x8xf32>
    %31 = vector.broadcast %30 : vector<1x1x8xf32> to vector<4x8x8xf32>
    %32 = arith.addf %29, %31 : vector<4x8x8xf32>
    %cst_32 = arith.constant dense<0xFF800000> : vector<4x8xf32>
    %33 = vector.multi_reduction <maximumf>, %32, %cst_32 [2] : vector<4x8x8xf32> to vector<4x8xf32>
    %34 = vector.shape_cast %33 : vector<4x8xf32> to vector<4x8x1xf32>
    %35 = vector.broadcast %34 : vector<4x8x1xf32> to vector<4x8x8xf32>
    %36 = arith.subf %32, %35 : vector<4x8x8xf32>
    %37 = math.exp %36 : vector<4x8x8xf32>
    %cst_33 = arith.constant dense<0.000000e+00> : vector<4x8xf32>
    %38 = vector.multi_reduction <add>, %37, %cst_33 [2] : vector<4x8x8xf32> to vector<4x8xf32>
    %39 = vector.shape_cast %38 : vector<4x8xf32> to vector<4x8x1xf32>
    %40 = tpu.reciprocal %39 {approx = true} : vector<4x8x1xf32> -> vector<4x8x1xf32>
    %41 = vector.broadcast %40 : vector<4x8x1xf32> to vector<4x8x8xf32>
    %42 = arith.mulf %37, %41 : vector<4x8x8xf32>
    %c0_34 = arith.constant 0 : index
    %c0_35 = arith.constant 0 : index
    %c0_36 = arith.constant 0 : index
    %c0_37 = arith.constant 0 : index
    %43 = vector.load %arg32[%c0_34, %c0_35, %c0_36, %c0_37] : memref<1x4x8x8xf32, #tpu.memory_space<vmem>>, vector<1x4x8x8xf32>
    %44 = vector.shape_cast %43 : vector<1x4x8x8xf32> to vector<4x8x8xf32>
    %45 = vector.shape_cast %42 : vector<4x8x8xf32> to vector<1x4x8x8xf32>
    tpu.vector_store %arg32[%c0_34, %c0_35, %c0_36, %c0_37], %45 {strides = array<i32>} : memref<1x4x8x8xf32, #tpu.memory_space<vmem>>, vector<1x4x8x8xf32>,
    %46 = arith.truncf %42 : vector<4x8x8xf32> to vector<4x8x8xbf16>
    %47 = arith.truncf %26 : vector<4x8x8xf32> to vector<4x8x8xbf16>
    "tpu.trace_start"() <{level = 10 : i32, message = "hqk,hkd->hqd"}> : () -> ()
    %cst_38 = arith.constant dense<0.000000e+00> : vector<4x8x8xf32>
    %48 = tpu.matmul %46, %47, %cst_38 {dimension_numbers = #tpu.dot_dimension_numbers<[2], [1], [1], [2], [0, 0, 0, 1, 1, 2], [0], [0]>} : vector<4x8x8xbf16>, vector<4x8x8xbf16>, vector<4x8x8xf32> -> vector<4x8x8xf32>
    "tpu.trace_stop"() : () -> ()
    %49 = arith.truncf %48 : vector<4x8x8xf32> to vector<4x8x8xbf16>
    %c0_39 = arith.constant 0 : index
    %c0_40 = arith.constant 0 : index
    %c0_41 = arith.constant 0 : index
    %50 = vector.load %arg11[%c0_39, %c0_40, %c0_41] : memref<4x8x32xbf16, #tpu.memory_space<vmem>>, vector<4x8x32xbf16>
    "tpu.trace_start"() <{level = 10 : i32, message = "hqd,hdm->hqm"}> : () -> ()
    %cst_42 = arith.constant dense<0.000000e+00> : vector<4x8x32xf32>
    %51 = tpu.matmul %49, %50, %cst_42 {dimension_numbers = #tpu.dot_dimension_numbers<[2], [1], [1], [2], [0, 0, 0, 1, 1, 2], [0], [0]>} : vector<4x8x8xbf16>, vector<4x8x32xbf16>, vector<4x8x32xf32> -> vector<4x8x32xf32>
    "tpu.trace_stop"() : () -> ()
    %cst_43 = arith.constant dense<0.000000e+00> : vector<8x32xf32>
    %52 = vector.multi_reduction <add>, %51, %cst_43 [0] : vector<4x8x32xf32> to vector<8x32xf32>
    %c0_44 = arith.constant 0 : index
    %c0_45 = arith.constant 0 : index
    %53 = vector.load %arg12[%c0_44, %c0_45] : memref<1x32xf32, #tpu.memory_space<vmem>>, vector<1x32xf32>
    %54 = vector.broadcast %53 : vector<1x32xf32> to vector<8x32xf32>
    %55 = arith.addf %52, %54 : vector<8x32xf32>
    %56 = arith.addf %55, %1 : vector<8x32xf32>
    %c0_46 = arith.constant 0 : index
    %c0_47 = arith.constant 0 : index
    %57 = vector.load %arg13[%c0_46, %c0_47] : memref<1x32xf32, #tpu.memory_space<vmem>>, vector<1x32xf32>
    %c0_48 = arith.constant 0 : index
    %c0_49 = arith.constant 0 : index
    %58 = vector.load %arg14[%c0_48, %c0_49] : memref<1x32xf32, #tpu.memory_space<vmem>>, vector<1x32xf32>
    %cst_50 = arith.constant dense<0.000000e+00> : vector<8xf32>
    %59 = vector.multi_reduction <add>, %56, %cst_50 [1] : vector<8x32xf32> to vector<8xf32>
    %60 = vector.shape_cast %59 : vector<8xf32> to vector<8x1xf32>
    %cst_51 = arith.constant 3.200000e+01 : f32
    %61 = vector.broadcast %cst_51 : f32 to vector<8x1xf32>
    %62 = arith.divf %60, %61 : vector<8x1xf32>
    %63 = vector.broadcast %62 : vector<8x1xf32> to vector<8x32xf32>
    %64 = arith.subf %56, %63 : vector<8x32xf32>
    %65 = arith.mulf %64, %64 : vector<8x32xf32>
    %cst_52 = arith.constant dense<0.000000e+00> : vector<8xf32>
    %66 = vector.multi_reduction <add>, %65, %cst_52 [1] : vector<8x32xf32> to vector<8xf32>
    %67 = vector.shape_cast %66 : vector<8xf32> to vector<8x1xf32>
    %cst_53 = arith.constant 3.200000e+01 : f32
    %68 = vector.broadcast %cst_53 : f32 to vector<8x1xf32>
    %69 = arith.divf %67, %68 : vector<8x1xf32>
    %70 = vector.broadcast %62 : vector<8x1xf32> to vector<8x32xf32>
    %71 = arith.subf %56, %70 : vector<8x32xf32>
    %cst_54 = arith.constant 9.99999997E-7 : f32
    %72 = vector.broadcast %cst_54 : f32 to vector<8x1xf32>
    %73 = arith.addf %69, %72 : vector<8x1xf32>
    %74 = math.rsqrt %73 : vector<8x1xf32>
    %75 = vector.broadcast %74 : vector<8x1xf32> to vector<8x32xf32>
    %76 = arith.mulf %71, %75 : vector<8x32xf32>
    %77 = vector.broadcast %57 : vector<1x32xf32> to vector<8x32xf32>
    %78 = arith.mulf %76, %77 : vector<8x32xf32>
    %79 = vector.broadcast %58 : vector<1x32xf32> to vector<8x32xf32>
    %80 = arith.addf %78, %79 : vector<8x32xf32>
    %81 = arith.truncf %80 : vector<8x32xf32> to vector<8x32xbf16>
    %82 = vector.shape_cast %81 : vector<8x32xbf16> to vector<1x8x32xbf16>
    %83 = vector.shape_cast %82 : vector<1x8x32xbf16> to vector<1x8x32xbf16>
    %84 = vector.broadcast %83 : vector<1x8x32xbf16> to vector<4x8x32xbf16>
    %85 = arith.truncf %3 : vector<8x32xf32> to vector<8x32xbf16>
    %86 = vector.shape_cast %85 : vector<8x32xbf16> to vector<1x8x32xbf16>
    %87 = vector.shape_cast %86 : vector<1x8x32xbf16> to vector<1x8x32xbf16>
    %88 = vector.broadcast %87 : vector<1x8x32xbf16> to vector<4x8x32xbf16>
    %c0_55 = arith.constant 0 : index
    %c0_56 = arith.constant 0 : index
    %c0_57 = arith.constant 0 : index
    %89 = vector.load %arg15[%c0_55, %c0_56, %c0_57] : memref<4x32x8xbf16, #tpu.memory_space<vmem>>, vector<4x32x8xbf16>
    "tpu.trace_start"() <{level = 10 : i32, message = "hsd,hdf->hsf"}> : () -> ()
    %cst_58 = arith.constant dense<0.000000e+00> : vector<4x8x8xf32>
    %90 = tpu.matmul %84, %89, %cst_58 {dimension_numbers = #tpu.dot_dimension_numbers<[2], [1], [1], [2], [0, 0, 0, 1, 1, 2], [0], [0]>} : vector<4x8x32xbf16>, vector<4x32x8xbf16>, vector<4x8x8xf32> -> vector<4x8x8xf32>
    "tpu.trace_stop"() : () -> ()
    %c0_59 = arith.constant 0 : index
    %c0_60 = arith.constant 0 : index
    %c0_61 = arith.constant 0 : index
    %91 = vector.load %arg16[%c0_59, %c0_60, %c0_61] : memref<4x1x8xf32, #tpu.memory_space<vmem>>, vector<4x1x8xf32>
    %92 = vector.broadcast %91 : vector<4x1x8xf32> to vector<4x8x8xf32>
    %93 = arith.addf %90, %92 : vector<4x8x8xf32>
    %c0_62 = arith.constant 0 : index
    %c0_63 = arith.constant 0 : index
    %c0_64 = arith.constant 0 : index
    %94 = vector.load %arg17[%c0_62, %c0_63, %c0_64] : memref<4x32x8xbf16, #tpu.memory_space<vmem>>, vector<4x32x8xbf16>
    "tpu.trace_start"() <{level = 10 : i32, message = "hsd,hdf->hsf"}> : () -> ()
    %cst_65 = arith.constant dense<0.000000e+00> : vector<4x8x8xf32>
    %95 = tpu.matmul %88, %94, %cst_65 {dimension_numbers = #tpu.dot_dimension_numbers<[2], [1], [1], [2], [0, 0, 0, 1, 1, 2], [0], [0]>} : vector<4x8x32xbf16>, vector<4x32x8xbf16>, vector<4x8x8xf32> -> vector<4x8x8xf32>
    "tpu.trace_stop"() : () -> ()
    %c0_66 = arith.constant 0 : index
    %c0_67 = arith.constant 0 : index
    %c0_68 = arith.constant 0 : index
    %96 = vector.load %arg18[%c0_66, %c0_67, %c0_68] : memref<4x1x8xf32, #tpu.memory_space<vmem>>, vector<4x1x8xf32>
    %97 = vector.broadcast %96 : vector<4x1x8xf32> to vector<4x8x8xf32>
    %98 = arith.addf %95, %97 : vector<4x8x8xf32>
    %c0_69 = arith.constant 0 : index
    %c0_70 = arith.constant 0 : index
    %c0_71 = arith.constant 0 : index
    %99 = vector.load %arg19[%c0_69, %c0_70, %c0_71] : memref<4x32x8xbf16, #tpu.memory_space<vmem>>, vector<4x32x8xbf16>
    "tpu.trace_start"() <{level = 10 : i32, message = "hsd,hdf->hsf"}> : () -> ()
    %cst_72 = arith.constant dense<0.000000e+00> : vector<4x8x8xf32>
    %100 = tpu.matmul %88, %99, %cst_72 {dimension_numbers = #tpu.dot_dimension_numbers<[2], [1], [1], [2], [0, 0, 0, 1, 1, 2], [0], [0]>} : vector<4x8x32xbf16>, vector<4x32x8xbf16>, vector<4x8x8xf32> -> vector<4x8x8xf32>
    "tpu.trace_stop"() : () -> ()
    %c0_73 = arith.constant 0 : index
    %c0_74 = arith.constant 0 : index
    %c0_75 = arith.constant 0 : index
    %101 = vector.load %arg20[%c0_73, %c0_74, %c0_75] : memref<4x1x8xf32, #tpu.memory_space<vmem>>, vector<4x1x8xf32>
    %102 = vector.broadcast %101 : vector<4x1x8xf32> to vector<4x8x8xf32>
    %103 = arith.addf %100, %102 : vector<4x8x8xf32>
    %104 = arith.truncf %93 : vector<4x8x8xf32> to vector<4x8x8xbf16>
    %105 = arith.truncf %98 : vector<4x8x8xf32> to vector<4x8x8xbf16>
    "tpu.trace_start"() <{level = 10 : i32, message = "hqd,hkd->hqk"}> : () -> ()
    %cst_76 = arith.constant dense<0.000000e+00> : vector<4x8x8xf32>
    %106 = tpu.matmul %104, %105, %cst_76 {dimension_numbers = #tpu.dot_dimension_numbers<[2], [2], [1], [1], [0, 0, 0, 1, 1, 1], [0], [0]>} : vector<4x8x8xbf16>, vector<4x8x8xbf16>, vector<4x8x8xf32> -> vector<4x8x8xf32>
    "tpu.trace_stop"() : () -> ()
    %107 = vector.shape_cast %7 : vector<1x8xf32> to vector<1x1x8xf32>
    %108 = vector.broadcast %107 : vector<1x1x8xf32> to vector<4x8x8xf32>
    %109 = arith.addf %106, %108 : vector<4x8x8xf32>
    %cst_77 = arith.constant dense<0xFF800000> : vector<4x8xf32>
    %110 = vector.multi_reduction <maximumf>, %109, %cst_77 [2] : vector<4x8x8xf32> to vector<4x8xf32>
    %111 = vector.shape_cast %110 : vector<4x8xf32> to vector<4x8x1xf32>
    %112 = vector.broadcast %111 : vector<4x8x1xf32> to vector<4x8x8xf32>
    %113 = arith.subf %109, %112 : vector<4x8x8xf32>
    %114 = math.exp %113 : vector<4x8x8xf32>
    %cst_78 = arith.constant dense<0.000000e+00> : vector<4x8xf32>
    %115 = vector.multi_reduction <add>, %114, %cst_78 [2] : vector<4x8x8xf32> to vector<4x8xf32>
    %116 = vector.shape_cast %115 : vector<4x8xf32> to vector<4x8x1xf32>
    %117 = tpu.reciprocal %116 {approx = true} : vector<4x8x1xf32> -> vector<4x8x1xf32>
    %118 = vector.broadcast %117 : vector<4x8x1xf32> to vector<4x8x8xf32>
    %119 = arith.mulf %114, %118 : vector<4x8x8xf32>
    %c0_79 = arith.constant 0 : index
    %c0_80 = arith.constant 0 : index
    %c0_81 = arith.constant 0 : index
    %c0_82 = arith.constant 0 : index
    %120 = vector.load %arg33[%c0_79, %c0_80, %c0_81, %c0_82] : memref<1x4x8x8xf32, #tpu.memory_space<vmem>>, vector<1x4x8x8xf32>
    %121 = vector.shape_cast %120 : vector<1x4x8x8xf32> to vector<4x8x8xf32>
    %122 = vector.shape_cast %119 : vector<4x8x8xf32> to vector<1x4x8x8xf32>
    tpu.vector_store %arg33[%c0_79, %c0_80, %c0_81, %c0_82], %122 {strides = array<i32>} : memref<1x4x8x8xf32, #tpu.memory_space<vmem>>, vector<1x4x8x8xf32>,
    %123 = arith.truncf %119 : vector<4x8x8xf32> to vector<4x8x8xbf16>
    %124 = arith.truncf %103 : vector<4x8x8xf32> to vector<4x8x8xbf16>
    "tpu.trace_start"() <{level = 10 : i32, message = "hqk,hkd->hqd"}> : () -> ()
    %cst_83 = arith.constant dense<0.000000e+00> : vector<4x8x8xf32>
    %125 = tpu.matmul %123, %124, %cst_83 {dimension_numbers = #tpu.dot_dimension_numbers<[2], [1], [1], [2], [0, 0, 0, 1, 1, 2], [0], [0]>} : vector<4x8x8xbf16>, vector<4x8x8xbf16>, vector<4x8x8xf32> -> vector<4x8x8xf32>
    "tpu.trace_stop"() : () -> ()
    %126 = arith.truncf %125 : vector<4x8x8xf32> to vector<4x8x8xbf16>
    %c0_84 = arith.constant 0 : index
    %c0_85 = arith.constant 0 : index
    %c0_86 = arith.constant 0 : index
    %127 = vector.load %arg21[%c0_84, %c0_85, %c0_86] : memref<4x8x32xbf16, #tpu.memory_space<vmem>>, vector<4x8x32xbf16>
    "tpu.trace_start"() <{level = 10 : i32, message = "hqd,hdm->hqm"}> : () -> ()
    %cst_87 = arith.constant dense<0.000000e+00> : vector<4x8x32xf32>
    %128 = tpu.matmul %126, %127, %cst_87 {dimension_numbers = #tpu.dot_dimension_numbers<[2], [1], [1], [2], [0, 0, 0, 1, 1, 2], [0], [0]>} : vector<4x8x8xbf16>, vector<4x8x32xbf16>, vector<4x8x32xf32> -> vector<4x8x32xf32>
    "tpu.trace_stop"() : () -> ()
    %cst_88 = arith.constant dense<0.000000e+00> : vector<8x32xf32>
    %129 = vector.multi_reduction <add>, %128, %cst_88 [0] : vector<4x8x32xf32> to vector<8x32xf32>
    %c0_89 = arith.constant 0 : index
    %c0_90 = arith.constant 0 : index
    %130 = vector.load %arg22[%c0_89, %c0_90] : memref<1x32xf32, #tpu.memory_space<vmem>>, vector<1x32xf32>
    %131 = vector.broadcast %130 : vector<1x32xf32> to vector<8x32xf32>
    %132 = arith.addf %129, %131 : vector<8x32xf32>
    %133 = arith.addf %132, %80 : vector<8x32xf32>
    %c0_91 = arith.constant 0 : index
    %c0_92 = arith.constant 0 : index
    %134 = vector.load %arg23[%c0_91, %c0_92] : memref<1x32xf32, #tpu.memory_space<vmem>>, vector<1x32xf32>
    %c0_93 = arith.constant 0 : index
    %c0_94 = arith.constant 0 : index
    %135 = vector.load %arg24[%c0_93, %c0_94] : memref<1x32xf32, #tpu.memory_space<vmem>>, vector<1x32xf32>
    %cst_95 = arith.constant dense<0.000000e+00> : vector<8xf32>
    %136 = vector.multi_reduction <add>, %133, %cst_95 [1] : vector<8x32xf32> to vector<8xf32>
    %137 = vector.shape_cast %136 : vector<8xf32> to vector<8x1xf32>
    %cst_96 = arith.constant 3.200000e+01 : f32
    %138 = vector.broadcast %cst_96 : f32 to vector<8x1xf32>
    %139 = arith.divf %137, %138 : vector<8x1xf32>
    %140 = vector.broadcast %139 : vector<8x1xf32> to vector<8x32xf32>
    %141 = arith.subf %133, %140 : vector<8x32xf32>
    %142 = arith.mulf %141, %141 : vector<8x32xf32>
    %cst_97 = arith.constant dense<0.000000e+00> : vector<8xf32>
    %143 = vector.multi_reduction <add>, %142, %cst_97 [1] : vector<8x32xf32> to vector<8xf32>
    %144 = vector.shape_cast %143 : vector<8xf32> to vector<8x1xf32>
    %cst_98 = arith.constant 3.200000e+01 : f32
    %145 = vector.broadcast %cst_98 : f32 to vector<8x1xf32>
    %146 = arith.divf %144, %145 : vector<8x1xf32>
    %147 = vector.broadcast %139 : vector<8x1xf32> to vector<8x32xf32>
    %148 = arith.subf %133, %147 : vector<8x32xf32>
    %cst_99 = arith.constant 9.99999997E-7 : f32
    %149 = vector.broadcast %cst_99 : f32 to vector<8x1xf32>
    %150 = arith.addf %146, %149 : vector<8x1xf32>
    %151 = math.rsqrt %150 : vector<8x1xf32>
    %152 = vector.broadcast %151 : vector<8x1xf32> to vector<8x32xf32>
    %153 = arith.mulf %148, %152 : vector<8x32xf32>
    %154 = vector.broadcast %134 : vector<1x32xf32> to vector<8x32xf32>
    %155 = arith.mulf %153, %154 : vector<8x32xf32>
    %156 = vector.broadcast %135 : vector<1x32xf32> to vector<8x32xf32>
    %157 = arith.addf %155, %156 : vector<8x32xf32>
    %158 = arith.truncf %157 : vector<8x32xf32> to vector<8x32xbf16>
    %c0_100 = arith.constant 0 : index
    %c0_101 = arith.constant 0 : index
    %159 = vector.load %arg25[%c0_100, %c0_101] : memref<32x64xbf16, #tpu.memory_space<vmem>>, vector<32x64xbf16>
    %cst_102 = arith.constant dense<0.000000e+00> : vector<8x64xf32>
    %160 = tpu.matmul %158, %159, %cst_102 {dimension_numbers = #tpu.dot_dimension_numbers<[1], [0], [0], [1], [0, 0, 1, 1], [], []>} : vector<8x32xbf16>, vector<32x64xbf16>, vector<8x64xf32> -> vector<8x64xf32>
    %c0_103 = arith.constant 0 : index
    %c0_104 = arith.constant 0 : index
    %161 = vector.load %arg26[%c0_103, %c0_104] : memref<1x64xf32, #tpu.memory_space<vmem>>, vector<1x64xf32>
    %162 = vector.broadcast %161 : vector<1x64xf32> to vector<8x64xf32>
    %163 = arith.addf %160, %162 : vector<8x64xf32>
    %cst_105 = arith.constant 0.000000e+00 : f32
    %164 = vector.broadcast %cst_105 : f32 to vector<8x64xf32>
    %165 = arith.maximumf %163, %164 : vector<8x64xf32>
    %166 = arith.truncf %165 : vector<8x64xf32> to vector<8x64xbf16>
    %c0_106 = arith.constant 0 : index
    %c0_107 = arith.constant 0 : index
    %167 = vector.load %arg27[%c0_106, %c0_107] : memref<64x32xbf16, #tpu.memory_space<vmem>>, vector<64x32xbf16>
    %cst_108 = arith.constant dense<0.000000e+00> : vector<8x32xf32>
    %168 = tpu.matmul %166, %167, %cst_108 {dimension_numbers = #tpu.dot_dimension_numbers<[1], [0], [0], [1], [0, 0, 1, 1], [], []>} : vector<8x64xbf16>, vector<64x32xbf16>, vector<8x32xf32> -> vector<8x32xf32>
    %c0_109 = arith.constant 0 : index
    %c0_110 = arith.constant 0 : index
    %169 = vector.load %arg28[%c0_109, %c0_110] : memref<1x32xf32, #tpu.memory_space<vmem>>, vector<1x32xf32>
    %170 = vector.broadcast %169 : vector<1x32xf32> to vector<8x32xf32>
    %171 = arith.addf %168, %170 : vector<8x32xf32>
    %172 = arith.addf %171, %157 : vector<8x32xf32>
    %c0_111 = arith.constant 0 : index
    %c0_112 = arith.constant 0 : index
    %173 = vector.load %arg29[%c0_111, %c0_112] : memref<1x32xf32, #tpu.memory_space<vmem>>, vector<1x32xf32>
    %c0_113 = arith.constant 0 : index
    %c0_114 = arith.constant 0 : index
    %174 = vector.load %arg30[%c0_113, %c0_114] : memref<1x32xf32, #tpu.memory_space<vmem>>, vector<1x32xf32>
    %cst_115 = arith.constant dense<0.000000e+00> : vector<8xf32>
    %175 = vector.multi_reduction <add>, %172, %cst_115 [1] : vector<8x32xf32> to vector<8xf32>
    %176 = vector.shape_cast %175 : vector<8xf32> to vector<8x1xf32>
    %cst_116 = arith.constant 3.200000e+01 : f32
    %177 = vector.broadcast %cst_116 : f32 to vector<8x1xf32>
    %178 = arith.divf %176, %177 : vector<8x1xf32>
    %179 = vector.broadcast %178 : vector<8x1xf32> to vector<8x32xf32>
    %180 = arith.subf %172, %179 : vector<8x32xf32>
    %181 = arith.mulf %180, %180 : vector<8x32xf32>
    %cst_117 = arith.constant dense<0.000000e+00> : vector<8xf32>
    %182 = vector.multi_reduction <add>, %181, %cst_117 [1] : vector<8x32xf32> to vector<8xf32>
    %183 = vector.shape_cast %182 : vector<8xf32> to vector<8x1xf32>
    %cst_118 = arith.constant 3.200000e+01 : f32
    %184 = vector.broadcast %cst_118 : f32 to vector<8x1xf32>
    %185 = arith.divf %183, %184 : vector<8x1xf32>
    %186 = vector.broadcast %178 : vector<8x1xf32> to vector<8x32xf32>
    %187 = arith.subf %172, %186 : vector<8x32xf32>
    %cst_119 = arith.constant 9.99999997E-7 : f32
    %188 = vector.broadcast %cst_119 : f32 to vector<8x1xf32>
    %189 = arith.addf %185, %188 : vector<8x1xf32>
    %190 = math.rsqrt %189 : vector<8x1xf32>
    %191 = vector.broadcast %190 : vector<8x1xf32> to vector<8x32xf32>
    %192 = arith.mulf %187, %191 : vector<8x32xf32>
    %193 = vector.broadcast %173 : vector<1x32xf32> to vector<8x32xf32>
    %194 = arith.mulf %192, %193 : vector<8x32xf32>
    %195 = vector.broadcast %174 : vector<1x32xf32> to vector<8x32xf32>
    %196 = arith.addf %194, %195 : vector<8x32xf32>
    %c0_120 = arith.constant 0 : index
    %c0_121 = arith.constant 0 : index
    %c0_122 = arith.constant 0 : index
    %197 = vector.load %arg31[%c0_120, %c0_121, %c0_122] : memref<1x8x32xf32, #tpu.memory_space<vmem>>, vector<1x8x32xf32>
    %198 = vector.shape_cast %197 : vector<1x8x32xf32> to vector<8x32xf32>
    %199 = vector.shape_cast %196 : vector<8x32xf32> to vector<1x8x32xf32>
    tpu.vector_store %arg31[%c0_120, %c0_121, %c0_122], %199 {strides = array<i32>} : memref<1x8x32xf32, #tpu.memory_space<vmem>>, vector<1x8x32xf32>,
    return
  }
  func.func @transform_0(%arg0: i32) -> (i32, i32, i32) {
    %c0_i32 = arith.constant 0 : i32
    %c0_i32_0 = arith.constant 0 : i32
    %c0_i32_1 = arith.constant 0 : i32
    return %arg0, %c0_i32, %c0_i32_0 : i32, i32, i32
  }
  func.func @transform_1(%arg0: i32) -> (i32, i32, i32) {
    %c0_i32 = arith.constant 0 : i32
    %c0_i32_0 = arith.constant 0 : i32
    %c0_i32_1 = arith.constant 0 : i32
    return %arg0, %c0_i32, %c0_i32_0 : i32, i32, i32
  }
  func.func @transform_2(%arg0: i32) -> (i32, i32, i32) {
    %c0_i32 = arith.constant 0 : i32
    %c0_i32_0 = arith.constant 0 : i32
    %c0_i32_1 = arith.constant 0 : i32
    return %arg0, %c0_i32, %c0_i32_0 : i32, i32, i32
  }
  func.func @transform_3(%arg0: i32) -> (i32, i32, i32) {
    %c0_i32 = arith.constant 0 : i32
    %c0_i32_0 = arith.constant 0 : i32
    %c0_i32_1 = arith.constant 0 : i32
    return %arg0, %c0_i32, %c0_i32_0 : i32, i32, i32
  }
  func.func @transform_4(%arg0: i32) -> (i32, i32, i32) {
    %c0_i32 = arith.constant 0 : i32
    %c0_i32_0 = arith.constant 0 : i32
    %c0_i32_1 = arith.constant 0 : i32
    %c0_i32_2 = arith.constant 0 : i32
    return %c0_i32, %c0_i32_0, %c0_i32_1 : i32, i32, i32
  }
  func.func @transform_5(%arg0: i32) -> (i32, i32, i32) {
    %c0_i32 = arith.constant 0 : i32
    %c0_i32_0 = arith.constant 0 : i32
    %c0_i32_1 = arith.constant 0 : i32
    %c0_i32_2 = arith.constant 0 : i32
    return %c0_i32, %c0_i32_0, %c0_i32_1 : i32, i32, i32
  }
  func.func @transform_6(%arg0: i32) -> (i32, i32, i32) {
    %c0_i32 = arith.constant 0 : i32
    %c0_i32_0 = arith.constant 0 : i32
    %c0_i32_1 = arith.constant 0 : i32
    %c0_i32_2 = arith.constant 0 : i32
    return %c0_i32, %c0_i32_0, %c0_i32_1 : i32, i32, i32
  }
  func.func @transform_7(%arg0: i32) -> (i32, i32, i32) {
    %c0_i32 = arith.constant 0 : i32
    %c0_i32_0 = arith.constant 0 : i32
    %c0_i32_1 = arith.constant 0 : i32
    %c0_i32_2 = arith.constant 0 : i32
    return %c0_i32, %c0_i32_0, %c0_i32_1 : i32, i32, i32
  }
  func.func @transform_8(%arg0: i32) -> (i32, i32, i32) {
    %c0_i32 = arith.constant 0 : i32
    %c0_i32_0 = arith.constant 0 : i32
    %c0_i32_1 = arith.constant 0 : i32
    %c0_i32_2 = arith.constant 0 : i32
    return %c0_i32, %c0_i32_0, %c0_i32_1 : i32, i32, i32
  }
  func.func @transform_9(%arg0: i32) -> (i32, i32, i32) {
    %c0_i32 = arith.constant 0 : i32
    %c0_i32_0 = arith.constant 0 : i32
    %c0_i32_1 = arith.constant 0 : i32
    %c0_i32_2 = arith.constant 0 : i32
    return %c0_i32, %c0_i32_0, %c0_i32_1 : i32, i32, i32
  }
  func.func @transform_10(%arg0: i32) -> (i32, i32, i32) {
    %c0_i32 = arith.constant 0 : i32
    %c0_i32_0 = arith.constant 0 : i32
    %c0_i32_1 = arith.constant 0 : i32
    %c0_i32_2 = arith.constant 0 : i32
    return %c0_i32, %c0_i32_0, %c0_i32_1 : i32, i32, i32
  }
  func.func @transform_11(%arg0: i32) -> (i32, i32) {
    %c0_i32 = arith.constant 0 : i32
    %c0_i32_0 = arith.constant 0 : i32
    %c0_i32_1 = arith.constant 0 : i32
    return %c0_i32, %c0_i32_0 : i32, i32
  }
  func.func @transform_12(%arg0: i32) -> (i32, i32) {
    %c0_i32 = arith.constant 0 : i32
    %c0_i32_0 = arith.constant 0 : i32
    %c0_i32_1 = arith.constant 0 : i32
    return %c0_i32, %c0_i32_0 : i32, i32
  }
  func.func @transform_13(%arg0: i32) -> (i32, i32) {
    %c0_i32 = arith.constant 0 : i32
    %c0_i32_0 = arith.constant 0 : i32
    %c0_i32_1 = arith.constant 0 : i32
    return %c0_i32, %c0_i32_0 : i32, i32
  }
  func.func @transform_14(%arg0: i32) -> (i32, i32, i32) {
    %c0_i32 = arith.constant 0 : i32
    %c0_i32_0 = arith.constant 0 : i32
    %c0_i32_1 = arith.constant 0 : i32
    %c0_i32_2 = arith.constant 0 : i32
    return %c0_i32, %c0_i32_0, %c0_i32_1 : i32, i32, i32
  }
  func.func @transform_15(%arg0: i32) -> (i32, i32, i32) {
    %c0_i32 = arith.constant 0 : i32
    %c0_i32_0 = arith.constant 0 : i32
    %c0_i32_1 = arith.constant 0 : i32
    %c0_i32_2 = arith.constant 0 : i32
    return %c0_i32, %c0_i32_0, %c0_i32_1 : i32, i32, i32
  }
  func.func @transform_16(%arg0: i32) -> (i32, i32, i32) {
    %c0_i32 = arith.constant 0 : i32
    %c0_i32_0 = arith.constant 0 : i32
    %c0_i32_1 = arith.constant 0 : i32
    %c0_i32_2 = arith.constant 0 : i32
    return %c0_i32, %c0_i32_0, %c0_i32_1 : i32, i32, i32
  }
  func.func @transform_17(%arg0: i32) -> (i32, i32, i32) {
    %c0_i32 = arith.constant 0 : i32
    %c0_i32_0 = arith.constant 0 : i32
    %c0_i32_1 = arith.constant 0 : i32
    %c0_i32_2 = arith.constant 0 : i32
    return %c0_i32, %c0_i32_0, %c0_i32_1 : i32, i32, i32
  }
  func.func @transform_18(%arg0: i32) -> (i32, i32, i32) {
    %c0_i32 = arith.constant 0 : i32
    %c0_i32_0 = arith.constant 0 : i32
    %c0_i32_1 = arith.constant 0 : i32
    %c0_i32_2 = arith.constant 0 : i32
    return %c0_i32, %c0_i32_0, %c0_i32_1 : i32, i32, i32
  }
  func.func @transform_19(%arg0: i32) -> (i32, i32, i32) {
    %c0_i32 = arith.constant 0 : i32
    %c0_i32_0 = arith.constant 0 : i32
    %c0_i32_1 = arith.constant 0 : i32
    %c0_i32_2 = arith.constant 0 : i32
    return %c0_i32, %c0_i32_0, %c0_i32_1 : i32, i32, i32
  }
  func.func @transform_20(%arg0: i32) -> (i32, i32, i32) {
    %c0_i32 = arith.constant 0 : i32
    %c0_i32_0 = arith.constant 0 : i32
    %c0_i32_1 = arith.constant 0 : i32
    %c0_i32_2 = arith.constant 0 : i32
    return %c0_i32, %c0_i32_0, %c0_i32_1 : i32, i32, i32
  }
  func.func @transform_21(%arg0: i32) -> (i32, i32) {
    %c0_i32 = arith.constant 0 : i32
    %c0_i32_0 = arith.constant 0 : i32
    %c0_i32_1 = arith.constant 0 : i32
    return %c0_i32, %c0_i32_0 : i32, i32
  }
  func.func @transform_22(%arg0: i32) -> (i32, i32) {
    %c0_i32 = arith.constant 0 : i32
    %c0_i32_0 = arith.constant 0 : i32
    %c0_i32_1 = arith.constant 0 : i32
    return %c0_i32, %c0_i32_0 : i32, i32
  }
  func.func @transform_23(%arg0: i32) -> (i32, i32) {
    %c0_i32 = arith.constant 0 : i32
    %c0_i32_0 = arith.constant 0 : i32
    %c0_i32_1 = arith.constant 0 : i32
    return %c0_i32, %c0_i32_0 : i32, i32
  }
  func.func @transform_24(%arg0: i32) -> (i32, i32) {
    %c0_i32 = arith.constant 0 : i32
    %c0_i32_0 = arith.constant 0 : i32
    %c0_i32_1 = arith.constant 0 : i32
    return %c0_i32, %c0_i32_0 : i32, i32
  }
  func.func @transform_25(%arg0: i32) -> (i32, i32) {
    %c0_i32 = arith.constant 0 : i32
    %c0_i32_0 = arith.constant 0 : i32
    %c0_i32_1 = arith.constant 0 : i32
    return %c0_i32, %c0_i32_0 : i32, i32
  }
  func.func @transform_26(%arg0: i32) -> (i32, i32) {
    %c0_i32 = arith.constant 0 : i32
    %c0_i32_0 = arith.constant 0 : i32
    %c0_i32_1 = arith.constant 0 : i32
    return %c0_i32, %c0_i32_0 : i32, i32
  }
  func.func @transform_27(%arg0: i32) -> (i32, i32) {
    %c0_i32 = arith.constant 0 : i32
    %c0_i32_0 = arith.constant 0 : i32
    %c0_i32_1 = arith.constant 0 : i32
    return %c0_i32, %c0_i32_0 : i32, i32
  }
  func.func @transform_28(%arg0: i32) -> (i32, i32) {
    %c0_i32 = arith.constant 0 : i32
    %c0_i32_0 = arith.constant 0 : i32
    %c0_i32_1 = arith.constant 0 : i32
    return %c0_i32, %c0_i32_0 : i32, i32
  }
  func.func @transform_29(%arg0: i32) -> (i32, i32) {
    %c0_i32 = arith.constant 0 : i32
    %c0_i32_0 = arith.constant 0 : i32
    %c0_i32_1 = arith.constant 0 : i32
    return %c0_i32, %c0_i32_0 : i32, i32
  }
  func.func @transform_30(%arg0: i32) -> (i32, i32, i32) {
    %c0_i32 = arith.constant 0 : i32
    %c0_i32_0 = arith.constant 0 : i32
    %c0_i32_1 = arith.constant 0 : i32
    return %arg0, %c0_i32, %c0_i32_0 : i32, i32, i32
  }
  func.func @transform_31(%arg0: i32) -> (i32, i32, i32, i32) {
    %c0_i32 = arith.constant 0 : i32
    %c0_i32_0 = arith.constant 0 : i32
    %c0_i32_1 = arith.constant 0 : i32
    %c0_i32_2 = arith.constant 0 : i32
    return %arg0, %c0_i32, %c0_i32_0, %c0_i32_1 : i32, i32, i32, i32
  }
  func.func @transform_32(%arg0: i32) -> (i32, i32, i32, i32) {
    %c0_i32 = arith.constant 0 : i32
    %c0_i32_0 = arith.constant 0 : i32
    %c0_i32_1 = arith.constant 0 : i32
    %c0_i32_2 = arith.constant 0 : i32
    return %arg0, %c0_i32, %c0_i32_0, %c0_i32_1 : i32, i32, i32, i32
  }
}

</mosaic_0001>

<llo_original>
// kernel: tpu_custom_call.1
$region0: #{tpu_custom_call.1}
  #allocation0 [shape = 'u32[]', space=smem, size = 0x4, offset = 0x4, fixed_abs, tag = 'smem constant byte address 0x4 - core index']
  #allocation1 [shape = 'u32[72,128]{1,0:T(1,128)}', space=vmem, size = 0x9000, scoped, tag = 'internal scratch']
  %s0 = inlined_call_operand.smem [shape: u32[33], index: -1, kind: input, shape index: {}]
  %s1 = sld [smem:[%s0]]
  %s2 = scalar_lea.smem %s0, 1
  %s3 = sld [smem:[%s2]]
  %s4 = scalar_lea.smem %s0, 2
  %s5 = sld [smem:[%s4]]
  %s6 = scalar_lea.smem %s0, 3
  %s7 = sld [smem:[%s6]]
  %s8 = scalar_lea.smem %s0, 4
  %s9 = sld [smem:[%s8]]
  %s10 = scalar_lea.smem %s0, 5
  %s11 = sld [smem:[%s10]]
  %s12 = scalar_lea.smem %s0, 6
  %s13 = sld [smem:[%s12]]
  %s14 = scalar_lea.smem %s0, 7
  %s15 = sld [smem:[%s14]]
  %s16 = scalar_lea.smem %s0, 8
  %s17 = sld [smem:[%s16]]
  %s18 = scalar_lea.smem %s0, 9
  %s19 = sld [smem:[%s18]]
  %s20 = scalar_lea.smem %s0, 10
  %s21 = sld [smem:[%s20]]
  %s22 = scalar_lea.smem %s0, 11
  %s23 = sld [smem:[%s22]]
  %s24 = scalar_lea.smem %s0, 12
  %s25 = sld [smem:[%s24]]
  %s26 = scalar_lea.smem %s0, 13
  %s27 = sld [smem:[%s26]]
  %s28 = scalar_lea.smem %s0, 14
  %s29 = sld [smem:[%s28]]
  %s30 = scalar_lea.smem %s0, 15
  %s31 = sld [smem:[%s30]]
  %s32 = scalar_lea.smem %s0, 16
  %s33 = sld [smem:[%s32]]
  %s34 = scalar_lea.smem %s0, 17
  %s35 = sld [smem:[%s34]]
  %s36 = scalar_lea.smem %s0, 18
  %s37 = sld [smem:[%s36]]
  %s38 = scalar_lea.smem %s0, 19
  %s39 = sld [smem:[%s38]]
  %s40 = scalar_lea.smem %s0, 20
  %s41 = sld [smem:[%s40]]
  %s42 = scalar_lea.smem %s0, 21
  %s43 = sld [smem:[%s42]]
  %s44 = scalar_lea.smem %s0, 22
  %s45 = sld [smem:[%s44]]
  %s46 = scalar_lea.smem %s0, 23
  %s47 = sld [smem:[%s46]]
  %s48 = scalar_lea.smem %s0, 24
  %s49 = sld [smem:[%s48]]
  %s50 = scalar_lea.smem %s0, 25
  %s51 = sld [smem:[%s50]]
  %s52 = scalar_lea.smem %s0, 26
  %s53 = sld [smem:[%s52]]
  %s54 = scalar_lea.smem %s0, 27
  %s55 = sld [smem:[%s54]]
  %s56 = scalar_lea.smem %s0, 28
  %s57 = sld [smem:[%s56]]
  %s58 = scalar_lea.smem %s0, 29
  %s59 = sld [smem:[%s58]]
  %s60 = scalar_lea.smem %s0, 30
  %s61 = sld [smem:[%s60]]
  %s62 = scalar_lea.smem %s0, 31
  %s63 = sld [smem:[%s62]]
  %s64 = scalar_lea.smem %s0, 32
  %s65 = sld [smem:[%s64]]
  %66 = xla_tuple %s61, %s63, %s65
  %s67 = sld [smem:[#allocation0]]
  $region169: #{tpu_custom_call.1} parent=0
    _
  %s69 = ssub.s32 1, %s67
  %s70 = scalar_select 0, %s69, %s67
  $region1: #{tpu_custom_call.1} parent=0
    #allocation2 [shape = 'u8[8192]{0}', space=vmem, size = 0x2000, scoped, tag = 'output window, operand 0']
    #allocation3 [shape = 's32[2]{0}', space=sflag, size = 0x8, scoped, tag = 'scoped memory for tpu_custom_call.1']
    #allocation4 [shape = 'u8[32768]{0}', space=vmem, size = 0x8000, scoped, tag = 'output window, operand 1']
    #allocation5 [shape = 's32[2]{0}', space=sflag, size = 0x8, scoped, tag = 'scoped memory for tpu_custom_call.1']
    #allocation6 [shape = 'u8[32768]{0}', space=vmem, size = 0x8000, scoped, tag = 'output window, operand 2']
    %71 = vsyncpa [#allocation3], 0
    %s72 = scalar_lea.sflag [#allocation3], 1
    %73 = vsyncpa %s72, 0
    %74 = vsyncpa [#allocation5], 0
    %s75 = scalar_lea.sflag [#allocation5], 1
    %76 = vsyncpa %s75, 0
    loop: start=0, step=1, limit=4
    $region2: #{tpu_custom_call.1} parent=1 // loop_pre_header
      _
    $region3: #{tpu_custom_call.1} parent=1 // loop_header
      %s78 = sphi 0, %s82
      %p79 = scmp.ge.s32.totalorder %s78, 4
      %s88 = sphi 0, %s90
      %s91 = sphi 0, %s88
      %s92 = sphi 0, %s91
      %s108 = sphi 0, %s92
      %s114 = sphi 0, %s116
      %s117 = sphi 0, %s114
      %s118 = sphi 0, %s117
      %s134 = sphi 0, %s118
      %s140 = sphi 0, %s142
      %s143 = sphi 0, %s140
      %s144 = sphi 0, %s143
      %s160 = sphi 0, %s144
      %s166 = sphi 0, %s168
      %s169 = sphi 0, %s166
      %s170 = sphi 0, %s169
      %s186 = sphi 0, %s170
      %s190 = sphi 0, %s190
      %s192 = sphi 0, %s190
      %s193 = sphi 0, %s192
      %s207 = sphi 0, %s193
      %s211 = sphi 0, %s211
      %s213 = sphi 0, %s211
      %s214 = sphi 0, %s213
      %s228 = sphi 0, %s214
      %s232 = sphi 0, %s232
      %s234 = sphi 0, %s232
      %s235 = sphi 0, %s234
      %s249 = sphi 0, %s235
      %s253 = sphi 0, %s253
      %s255 = sphi 0, %s253
      %s256 = sphi 0, %s255
      %s270 = sphi 0, %s256
      %s274 = sphi 0, %s274
      %s276 = sphi 0, %s274
      %s277 = sphi 0, %s276
      %s291 = sphi 0, %s277
      %s295 = sphi 0, %s295
      %s297 = sphi 0, %s295
      %s298 = sphi 0, %s297
      %s312 = sphi 0, %s298
      %s316 = sphi 0, %s316
      %s318 = sphi 0, %s316
      %s319 = sphi 0, %s318
      %s333 = sphi 0, %s319
      %s337 = sphi 0, %s337
      %s339 = sphi 0, %s337
      %s340 = sphi 0, %s339
      %s354 = sphi 0, %s340
      %s358 = sphi 0, %s358
      %s360 = sphi 0, %s358
      %s361 = sphi 0, %s360
      %s375 = sphi 0, %s361
      %s379 = sphi 0, %s379
      %s381 = sphi 0, %s379
      %s382 = sphi 0, %s381
      %s396 = sphi 0, %s382
      %s400 = sphi 0, %s400
      %s402 = sphi 0, %s400
      %s403 = sphi 0, %s402
      %s417 = sphi 0, %s403
      %s421 = sphi 0, %s421
      %s423 = sphi 0, %s421
      %s424 = sphi 0, %s423
      %s438 = sphi 0, %s424
      %s442 = sphi 0, %s442
      %s444 = sphi 0, %s442
      %s445 = sphi 0, %s444
      %s459 = sphi 0, %s445
      %s463 = sphi 0, %s463
      %s465 = sphi 0, %s463
      %s466 = sphi 0, %s465
      %s480 = sphi 0, %s466
      %s484 = sphi 0, %s484
      %s486 = sphi 0, %s484
      %s487 = sphi 0, %s486
      %s501 = sphi 0, %s487
      %s505 = sphi 0, %s505
      %s507 = sphi 0, %s505
      %s508 = sphi 0, %s507
      %s522 = sphi 0, %s508
      %s526 = sphi 0, %s526
      %s528 = sphi 0, %s526
      %s529 = sphi 0, %s528
      %s543 = sphi 0, %s529
      %s547 = sphi 0, %s547
      %s549 = sphi 0, %s547
      %s550 = sphi 0, %s549
      %s564 = sphi 0, %s550
      %s568 = sphi 0, %s568
      %s570 = sphi 0, %s568
      %s571 = sphi 0, %s570
      %s585 = sphi 0, %s571
      %s589 = sphi 0, %s589
      %s591 = sphi 0, %s589
      %s592 = sphi 0, %s591
      %s606 = sphi 0, %s592
      %s610 = sphi 0, %s610
      %s612 = sphi 0, %s610
      %s613 = sphi 0, %s612
      %s627 = sphi 0, %s613
      %s631 = sphi 0, %s631
      %s633 = sphi 0, %s631
      %s634 = sphi 0, %s633
      %s648 = sphi 0, %s634
      %s652 = sphi 0, %s652
      %s654 = sphi 0, %s652
      %s655 = sphi 0, %s654
      %s669 = sphi 0, %s655
      %s673 = sphi 0, %s673
      %s675 = sphi 0, %s673
      %s676 = sphi 0, %s675
      %s690 = sphi 0, %s676
      %s694 = sphi 0, %s694
      %s696 = sphi 0, %s694
      %s697 = sphi 0, %s696
      %s711 = sphi 0, %s697
      %s715 = sphi 0, %s715
      %s717 = sphi 0, %s715
      %s718 = sphi 0, %s717
      %s732 = sphi 0, %s718
      %s738 = sphi 0, %s740
      %s741 = sphi 0, %s738
      %s742 = sphi 0, %s741
      %s758 = sphi 0, %s742
      %s764 = sphi 0, %s766
      %s767 = sphi 0, %s764
      %s768 = sphi 0, %s767
      %s784 = sphi 0, %s768
      %s790 = sphi 0, %s792
      %s793 = sphi 0, %s790
      %s794 = sphi 0, %s793
      %s810 = sphi 0, %s794
    $region4: #{tpu_custom_call.1} parent=1 // loop_header_branch
      %81 = sbr.rel (%p79) target = $region8
    $region5: #{tpu_custom_call.1} parent=1 // loop_body
      %s83 = ssub.s32 %s78, 1
      %s84 = ssub.s32 %s78, 2
      %s85 = sadd.s32 %s78, 1
      %s86 = ssub.s32 %s78, %s85
      %p87 = scmp.eq.s32.totalorder %s86, 0
      %s89 = sadd.s32 %s88, 1
      %s90 = scalar_select %p87, %s88, %s89
      %p93 = pneg %p87
      %p94 = scmp.eq.s32.totalorder %s78, 1
      %p95 = por %p93, %p94
      %p96 = scmp.ne.s32.totalorder %s88, %s91
      %p97 = scmp.eq.s32.totalorder %s78, 0
      %p98 = por %p96, %p97
      %p99 = scmp.ne.s32.totalorder %s88, %s91
      %p100 = scmp.eq.s32.totalorder %s83, 1
      %p101 = por %p99, %p100
      %p102 = scmp.ne.s32.totalorder %s91, %s92
      %p103 = scmp.eq.s32.totalorder %s83, 0
      %p104 = por %p102, %p103
      %p105 = scmp.ne.s32.totalorder %s91, %s92
      %p106 = scmp.eq.s32.totalorder %s84, 1
      %p107 = por %p105, %p106
      %p109 = scmp.ne.s32.totalorder %s92, %s108
      %p110 = scmp.eq.s32.totalorder %s84, 0
      %p111 = por %p109, %p110
      %s112 = ssub.s32 %s78, %s85
      %p113 = scmp.eq.s32.totalorder %s112, 0
      %s115 = sadd.s32 %s114, 1
      %s116 = scalar_select %p113, %s114, %s115
      %p119 = pneg %p113
      %p120 = scmp.eq.s32.totalorder %s78, 1
      %p121 = por %p119, %p120
      %p122 = scmp.ne.s32.totalorder %s114, %s117
      %p123 = scmp.eq.s32.totalorder %s78, 0
      %p124 = por %p122, %p123
      %p125 = scmp.ne.s32.totalorder %s114, %s117
      %p126 = scmp.eq.s32.totalorder %s83, 1
      %p127 = por %p125, %p126
      %p128 = scmp.ne.s32.totalorder %s117, %s118
      %p129 = scmp.eq.s32.totalorder %s83, 0
      %p130 = por %p128, %p129
      %p131 = scmp.ne.s32.totalorder %s117, %s118
      %p132 = scmp.eq.s32.totalorder %s84, 1
      %p133 = por %p131, %p132
      %p135 = scmp.ne.s32.totalorder %s118, %s134
      %p136 = scmp.eq.s32.totalorder %s84, 0
      %p137 = por %p135, %p136
      %s138 = ssub.s32 %s78, %s85
      %p139 = scmp.eq.s32.totalorder %s138, 0
      %s141 = sadd.s32 %s140, 1
      %s142 = scalar_select %p139, %s140, %s141
      %p145 = pneg %p139
      %p146 = scmp.eq.s32.totalorder %s78, 1
      %p147 = por %p145, %p146
      %p148 = scmp.ne.s32.totalorder %s140, %s143
      %p149 = scmp.eq.s32.totalorder %s78, 0
      %p150 = por %p148, %p149
      %p151 = scmp.ne.s32.totalorder %s140, %s143
      %p152 = scmp.eq.s32.totalorder %s83, 1
      %p153 = por %p151, %p152
      %p154 = scmp.ne.s32.totalorder %s143, %s144
      %p155 = scmp.eq.s32.totalorder %s83, 0
      %p156 = por %p154, %p155
      %p157 = scmp.ne.s32.totalorder %s143, %s144
      %p158 = scmp.eq.s32.totalorder %s84, 1
      %p159 = por %p157, %p158
      %p161 = scmp.ne.s32.totalorder %s144, %s160
      %p162 = scmp.eq.s32.totalorder %s84, 0
      %p163 = por %p161, %p162
      %s164 = ssub.s32 %s78, %s85
      %p165 = scmp.eq.s32.totalorder %s164, 0
      %s167 = sadd.s32 %s166, 1
      %s168 = scalar_select %p165, %s166, %s167
      %p171 = pneg %p165
      %p172 = scmp.eq.s32.totalorder %s78, 1
      %p173 = por %p171, %p172
      %p174 = scmp.ne.s32.totalorder %s166, %s169
      %p175 = scmp.eq.s32.totalorder %s78, 0
      %p176 = por %p174, %p175
      %p177 = scmp.ne.s32.totalorder %s166, %s169
      %p178 = scmp.eq.s32.totalorder %s83, 1
      %p179 = por %p177, %p178
      %p180 = scmp.ne.s32.totalorder %s169, %s170
      %p181 = scmp.eq.s32.totalorder %s83, 0
      %p182 = por %p180, %p181
      %p183 = scmp.ne.s32.totalorder %s169, %s170
      %p184 = scmp.eq.s32.totalorder %s84, 1
      %p185 = por %p183, %p184
      %p187 = scmp.ne.s32.totalorder %s170, %s186
      %p188 = scmp.eq.s32.totalorder %s84, 0
      %p189 = por %p187, %p188
      %s191 = sadd.s32 %s190, 1
      %p194 = scmp.eq.s32.totalorder %s78, 1
      %p195 = scmp.ne.s32.totalorder %s190, %s192
      %p196 = scmp.eq.s32.totalorder %s78, 0
      %p197 = por %p195, %p196
      %p198 = scmp.ne.s32.totalorder %s190, %s192
      %p199 = scmp.eq.s32.totalorder %s83, 1
      %p200 = por %p198, %p199
      %p201 = scmp.ne.s32.totalorder %s192, %s193
      %p202 = scmp.eq.s32.totalorder %s83, 0
      %p203 = por %p201, %p202
      %p204 = scmp.ne.s32.totalorder %s192, %s193
      %p205 = scmp.eq.s32.totalorder %s84, 1
      %p206 = por %p204, %p205
      %p208 = scmp.ne.s32.totalorder %s193, %s207
      %p209 = scmp.eq.s32.totalorder %s84, 0
      %p210 = por %p208, %p209
      %s212 = sadd.s32 %s211, 1
      %p215 = scmp.eq.s32.totalorder %s78, 1
      %p216 = scmp.ne.s32.totalorder %s211, %s213
      %p217 = scmp.eq.s32.totalorder %s78, 0
      %p218 = por %p216, %p217
      %p219 = scmp.ne.s32.totalorder %s211, %s213
      %p220 = scmp.eq.s32.totalorder %s83, 1
      %p221 = por %p219, %p220
      %p222 = scmp.ne.s32.totalorder %s213, %s214
      %p223 = scmp.eq.s32.totalorder %s83, 0
      %p224 = por %p222, %p223
      %p225 = scmp.ne.s32.totalorder %s213, %s214
      %p226 = scmp.eq.s32.totalorder %s84, 1
      %p227 = por %p225, %p226
      %p229 = scmp.ne.s32.totalorder %s214, %s228
      %p230 = scmp.eq.s32.totalorder %s84, 0
      %p231 = por %p229, %p230
      %s233 = sadd.s32 %s232, 1
      %p236 = scmp.eq.s32.totalorder %s78, 1
      %p237 = scmp.ne.s32.totalorder %s232, %s234
      %p238 = scmp.eq.s32.totalorder %s78, 0
      %p239 = por %p237, %p238
      %p240 = scmp.ne.s32.totalorder %s232, %s234
      %p241 = scmp.eq.s32.totalorder %s83, 1
      %p242 = por %p240, %p241
      %p243 = scmp.ne.s32.totalorder %s234, %s235
      %p244 = scmp.eq.s32.totalorder %s83, 0
      %p245 = por %p243, %p244
      %p246 = scmp.ne.s32.totalorder %s234, %s235
      %p247 = scmp.eq.s32.totalorder %s84, 1
      %p248 = por %p246, %p247
      %p250 = scmp.ne.s32.totalorder %s235, %s249
      %p251 = scmp.eq.s32.totalorder %s84, 0
      %p252 = por %p250, %p251
      %s254 = sadd.s32 %s253, 1
      %p257 = scmp.eq.s32.totalorder %s78, 1
      %p258 = scmp.ne.s32.totalorder %s253, %s255
      %p259 = scmp.eq.s32.totalorder %s78, 0
      %p260 = por %p258, %p259
      %p261 = scmp.ne.s32.totalorder %s253, %s255
      %p262 = scmp.eq.s32.totalorder %s83, 1
      %p263 = por %p261, %p262
      %p264 = scmp.ne.s32.totalorder %s255, %s256
      %p265 = scmp.eq.s32.totalorder %s83, 0
      %p266 = por %p264, %p265
      %p267 = scmp.ne.s32.totalorder %s255, %s256
      %p268 = scmp.eq.s32.totalorder %s84, 1
      %p269 = por %p267, %p268
      %p271 = scmp.ne.s32.totalorder %s256, %s270
      %p272 = scmp.eq.s32.totalorder %s84, 0
      %p273 = por %p271, %p272
      %s275 = sadd.s32 %s274, 1
      %p278 = scmp.eq.s32.totalorder %s78, 1
      %p279 = scmp.ne.s32.totalorder %s274, %s276
      %p280 = scmp.eq.s32.totalorder %s78, 0
      %p281 = por %p279, %p280
      %p282 = scmp.ne.s32.totalorder %s274, %s276
      %p283 = scmp.eq.s32.totalorder %s83, 1
      %p284 = por %p282, %p283
      %p285 = scmp.ne.s32.totalorder %s276, %s277
      %p286 = scmp.eq.s32.totalorder %s83, 0
      %p287 = por %p285, %p286
      %p288 = scmp.ne.s32.totalorder %s276, %s277
      %p289 = scmp.eq.s32.totalorder %s84, 1
      %p290 = por %p288, %p289
      %p292 = scmp.ne.s32.totalorder %s277, %s291
      %p293 = scmp.eq.s32.totalorder %s84, 0
      %p294 = por %p292, %p293
      %s296 = sadd.s32 %s295, 1
      %p299 = scmp.eq.s32.totalorder %s78, 1
      %p300 = scmp.ne.s32.totalorder %s295, %s297
      %p301 = scmp.eq.s32.totalorder %s78, 0
      %p302 = por %p300, %p301
      %p303 = scmp.ne.s32.totalorder %s295, %s297
      %p304 = scmp.eq.s32.totalorder %s83, 1
      %p305 = por %p303, %p304
      %p306 = scmp.ne.s32.totalorder %s297, %s298
      %p307 = scmp.eq.s32.totalorder %s83, 0
      %p308 = por %p306, %p307
      %p309 = scmp.ne.s32.totalorder %s297, %s298
      %p310 = scmp.eq.s32.totalorder %s84, 1
      %p311 = por %p309, %p310
      %p313 = scmp.ne.s32.totalorder %s298, %s312
      %p314 = scmp.eq.s32.totalorder %s84, 0
      %p315 = por %p313, %p314
      %s317 = sadd.s32 %s316, 1
      %p320 = scmp.eq.s32.totalorder %s78, 1
      %p321 = scmp.ne.s32.totalorder %s316, %s318
      %p322 = scmp.eq.s32.totalorder %s78, 0
      %p323 = por %p321, %p322
      %p324 = scmp.ne.s32.totalorder %s316, %s318
      %p325 = scmp.eq.s32.totalorder %s83, 1
      %p326 = por %p324, %p325
      %p327 = scmp.ne.s32.totalorder %s318, %s319
      %p328 = scmp.eq.s32.totalorder %s83, 0
      %p329 = por %p327, %p328
      %p330 = scmp.ne.s32.totalorder %s318, %s319
      %p331 = scmp.eq.s32.totalorder %s84, 1
      %p332 = por %p330, %p331
      %p334 = scmp.ne.s32.totalorder %s319, %s333
      %p335 = scmp.eq.s32.totalorder %s84, 0
      %p336 = por %p334, %p335
      %s338 = sadd.s32 %s337, 1
      %p341 = scmp.eq.s32.totalorder %s78, 1
      %p342 = scmp.ne.s32.totalorder %s337, %s339
      %p343 = scmp.eq.s32.totalorder %s78, 0
      %p344 = por %p342, %p343
      %p345 = scmp.ne.s32.totalorder %s337, %s339
      %p346 = scmp.eq.s32.totalorder %s83, 1
      %p347 = por %p345, %p346
      %p348 = scmp.ne.s32.totalorder %s339, %s340
      %p349 = scmp.eq.s32.totalorder %s83, 0
      %p350 = por %p348, %p349
      %p351 = scmp.ne.s32.totalorder %s339, %s340
      %p352 = scmp.eq.s32.totalorder %s84, 1
      %p353 = por %p351, %p352
      %p355 = scmp.ne.s32.totalorder %s340, %s354
      %p356 = scmp.eq.s32.totalorder %s84, 0
      %p357 = por %p355, %p356
      %s359 = sadd.s32 %s358, 1
      %p362 = scmp.eq.s32.totalorder %s78, 1
      %p363 = scmp.ne.s32.totalorder %s358, %s360
      %p364 = scmp.eq.s32.totalorder %s78, 0
      %p365 = por %p363, %p364
      %p366 = scmp.ne.s32.totalorder %s358, %s360
      %p367 = scmp.eq.s32.totalorder %s83, 1
      %p368 = por %p366, %p367
      %p369 = scmp.ne.s32.totalorder %s360, %s361
      %p370 = scmp.eq.s32.totalorder %s83, 0
      %p371 = por %p369, %p370
      %p372 = scmp.ne.s32.totalorder %s360, %s361
      %p373 = scmp.eq.s32.totalorder %s84, 1
      %p374 = por %p372, %p373
      %p376 = scmp.ne.s32.totalorder %s361, %s375
      %p377 = scmp.eq.s32.totalorder %s84, 0
      %p378 = por %p376, %p377
      %s380 = sadd.s32 %s379, 1
      %p383 = scmp.eq.s32.totalorder %s78, 1
      %p384 = scmp.ne.s32.totalorder %s379, %s381
      %p385 = scmp.eq.s32.totalorder %s78, 0
      %p386 = por %p384, %p385
      %p387 = scmp.ne.s32.totalorder %s379, %s381
      %p388 = scmp.eq.s32.totalorder %s83, 1
      %p389 = por %p387, %p388
      %p390 = scmp.ne.s32.totalorder %s381, %s382
      %p391 = scmp.eq.s32.totalorder %s83, 0
      %p392 = por %p390, %p391
      %p393 = scmp.ne.s32.totalorder %s381, %s382
      %p394 = scmp.eq.s32.totalorder %s84, 1
      %p395 = por %p393, %p394
      %p397 = scmp.ne.s32.totalorder %s382, %s396
      %p398 = scmp.eq.s32.totalorder %s84, 0
      %p399 = por %p397, %p398
      %s401 = sadd.s32 %s400, 1
      %p404 = scmp.eq.s32.totalorder %s78, 1
      %p405 = scmp.ne.s32.totalorder %s400, %s402
      %p406 = scmp.eq.s32.totalorder %s78, 0
      %p407 = por %p405, %p406
      %p408 = scmp.ne.s32.totalorder %s400, %s402
      %p409 = scmp.eq.s32.totalorder %s83, 1
      %p410 = por %p408, %p409
      %p411 = scmp.ne.s32.totalorder %s402, %s403
      %p412 = scmp.eq.s32.totalorder %s83, 0
      %p413 = por %p411, %p412
      %p414 = scmp.ne.s32.totalorder %s402, %s403
      %p415 = scmp.eq.s32.totalorder %s84, 1
      %p416 = por %p414, %p415
      %p418 = scmp.ne.s32.totalorder %s403, %s417
      %p419 = scmp.eq.s32.totalorder %s84, 0
      %p420 = por %p418, %p419
      %s422 = sadd.s32 %s421, 1
      %p425 = scmp.eq.s32.totalorder %s78, 1
      %p426 = scmp.ne.s32.totalorder %s421, %s423
      %p427 = scmp.eq.s32.totalorder %s78, 0
      %p428 = por %p426, %p427
      %p429 = scmp.ne.s32.totalorder %s421, %s423
      %p430 = scmp.eq.s32.totalorder %s83, 1
      %p431 = por %p429, %p430
      %p432 = scmp.ne.s32.totalorder %s423, %s424
      %p433 = scmp.eq.s32.totalorder %s83, 0
      %p434 = por %p432, %p433
      %p435 = scmp.ne.s32.totalorder %s423, %s424
      %p436 = scmp.eq.s32.totalorder %s84, 1
      %p437 = por %p435, %p436
      %p439 = scmp.ne.s32.totalorder %s424, %s438
      %p440 = scmp.eq.s32.totalorder %s84, 0
      %p441 = por %p439, %p440
      %s443 = sadd.s32 %s442, 1
      %p446 = scmp.eq.s32.totalorder %s78, 1
      %p447 = scmp.ne.s32.totalorder %s442, %s444
      %p448 = scmp.eq.s32.totalorder %s78, 0
      %p449 = por %p447, %p448
      %p450 = scmp.ne.s32.totalorder %s442, %s444
      %p451 = scmp.eq.s32.totalorder %s83, 1
      %p452 = por %p450, %p451
      %p453 = scmp.ne.s32.totalorder %s444, %s445
      %p454 = scmp.eq.s32.totalorder %s83, 0
      %p455 = por %p453, %p454
      %p456 = scmp.ne.s32.totalorder %s444, %s445
      %p457 = scmp.eq.s32.totalorder %s84, 1
      %p458 = por %p456, %p457
      %p460 = scmp.ne.s32.totalorder %s445, %s459
      %p461 = scmp.eq.s32.totalorder %s84, 0
      %p462 = por %p460, %p461
      %s464 = sadd.s32 %s463, 1
      %p467 = scmp.eq.s32.totalorder %s78, 1
      %p468 = scmp.ne.s32.totalorder %s463, %s465
      %p469 = scmp.eq.s32.totalorder %s78, 0
      %p470 = por %p468, %p469
      %p471 = scmp.ne.s32.totalorder %s463, %s465
      %p472 = scmp.eq.s32.totalorder %s83, 1
      %p473 = por %p471, %p472
      %p474 = scmp.ne.s32.totalorder %s465, %s466
      %p475 = scmp.eq.s32.totalorder %s83, 0
      %p476 = por %p474, %p475
      %p477 = scmp.ne.s32.totalorder %s465, %s466
      %p478 = scmp.eq.s32.totalorder %s84, 1
      %p479 = por %p477, %p478
      %p481 = scmp.ne.s32.totalorder %s466, %s480
      %p482 = scmp.eq.s32.totalorder %s84, 0
      %p483 = por %p481, %p482
      %s485 = sadd.s32 %s484, 1
      %p488 = scmp.eq.s32.totalorder %s78, 1
      %p489 = scmp.ne.s32.totalorder %s484, %s486
      %p490 = scmp.eq.s32.totalorder %s78, 0
      %p491 = por %p489, %p490
      %p492 = scmp.ne.s32.totalorder %s484, %s486
      %p493 = scmp.eq.s32.totalorder %s83, 1
      %p494 = por %p492, %p493
      %p495 = scmp.ne.s32.totalorder %s486, %s487
      %p496 = scmp.eq.s32.totalorder %s83, 0
      %p497 = por %p495, %p496
      %p498 = scmp.ne.s32.totalorder %s486, %s487
      %p499 = scmp.eq.s32.totalorder %s84, 1
      %p500 = por %p498, %p499
      %p502 = scmp.ne.s32.totalorder %s487, %s501
      %p503 = scmp.eq.s32.totalorder %s84, 0
      %p504 = por %p502, %p503
      %s506 = sadd.s32 %s505, 1
      %p509 = scmp.eq.s32.totalorder %s78, 1
      %p510 = scmp.ne.s32.totalorder %s505, %s507
      %p511 = scmp.eq.s32.totalorder %s78, 0
      %p512 = por %p510, %p511
      %p513 = scmp.ne.s32.totalorder %s505, %s507
      %p514 = scmp.eq.s32.totalorder %s83, 1
      %p515 = por %p513, %p514
      %p516 = scmp.ne.s32.totalorder %s507, %s508
      %p517 = scmp.eq.s32.totalorder %s83, 0
      %p518 = por %p516, %p517
      %p519 = scmp.ne.s32.totalorder %s507, %s508
      %p520 = scmp.eq.s32.totalorder %s84, 1
      %p521 = por %p519, %p520
      %p523 = scmp.ne.s32.totalorder %s508, %s522
      %p524 = scmp.eq.s32.totalorder %s84, 0
      %p525 = por %p523, %p524
      %s527 = sadd.s32 %s526, 1
      %p530 = scmp.eq.s32.totalorder %s78, 1
      %p531 = scmp.ne.s32.totalorder %s526, %s528
      %p532 = scmp.eq.s32.totalorder %s78, 0
      %p533 = por %p531, %p532
      %p534 = scmp.ne.s32.totalorder %s526, %s528
      %p535 = scmp.eq.s32.totalorder %s83, 1
      %p536 = por %p534, %p535
      %p537 = scmp.ne.s32.totalorder %s528, %s529
      %p538 = scmp.eq.s32.totalorder %s83, 0
      %p539 = por %p537, %p538
      %p540 = scmp.ne.s32.totalorder %s528, %s529
      %p541 = scmp.eq.s32.totalorder %s84, 1
      %p542 = por %p540, %p541
      %p544 = scmp.ne.s32.totalorder %s529, %s543
      %p545 = scmp.eq.s32.totalorder %s84, 0
      %p546 = por %p544, %p545
      %s548 = sadd.s32 %s547, 1
      %p551 = scmp.eq.s32.totalorder %s78, 1
      %p552 = scmp.ne.s32.totalorder %s547, %s549
      %p553 = scmp.eq.s32.totalorder %s78, 0
      %p554 = por %p552, %p553
      %p555 = scmp.ne.s32.totalorder %s547, %s549
      %p556 = scmp.eq.s32.totalorder %s83, 1
      %p557 = por %p555, %p556
      %p558 = scmp.ne.s32.totalorder %s549, %s550
      %p559 = scmp.eq.s32.totalorder %s83, 0
      %p560 = por %p558, %p559
      %p561 = scmp.ne.s32.totalorder %s549, %s550
      %p562 = scmp.eq.s32.totalorder %s84, 1
      %p563 = por %p561, %p562
      %p565 = scmp.ne.s32.totalorder %s550, %s564
      %p566 = scmp.eq.s32.totalorder %s84, 0
      %p567 = por %p565, %p566
      %s569 = sadd.s32 %s568, 1
      %p572 = scmp.eq.s32.totalorder %s78, 1
      %p573 = scmp.ne.s32.totalorder %s568, %s570
      %p574 = scmp.eq.s32.totalorder %s78, 0
      %p575 = por %p573, %p574
      %p576 = scmp.ne.s32.totalorder %s568, %s570
      %p577 = scmp.eq.s32.totalorder %s83, 1
      %p578 = por %p576, %p577
      %p579 = scmp.ne.s32.totalorder %s570, %s571
      %p580 = scmp.eq.s32.totalorder %s83, 0
      %p581 = por %p579, %p580
      %p582 = scmp.ne.s32.totalorder %s570, %s571
      %p583 = scmp.eq.s32.totalorder %s84, 1
      %p584 = por %p582, %p583
      %p586 = scmp.ne.s32.totalorder %s571, %s585
      %p587 = scmp.eq.s32.totalorder %s84, 0
      %p588 = por %p586, %p587
      %s590 = sadd.s32 %s589, 1
      %p593 = scmp.eq.s32.totalorder %s78, 1
      %p594 = scmp.ne.s32.totalorder %s589, %s591
      %p595 = scmp.eq.s32.totalorder %s78, 0
      %p596 = por %p594, %p595
      %p597 = scmp.ne.s32.totalorder %s589, %s591
      %p598 = scmp.eq.s32.totalorder %s83, 1
      %p599 = por %p597, %p598
      %p600 = scmp.ne.s32.totalorder %s591, %s592
      %p601 = scmp.eq.s32.totalorder %s83, 0
      %p602 = por %p600, %p601
      %p603 = scmp.ne.s32.totalorder %s591, %s592
      %p604 = scmp.eq.s32.totalorder %s84, 1
      %p605 = por %p603, %p604
      %p607 = scmp.ne.s32.totalorder %s592, %s606
      %p608 = scmp.eq.s32.totalorder %s84, 0
      %p609 = por %p607, %p608
      %s611 = sadd.s32 %s610, 1
      %p614 = scmp.eq.s32.totalorder %s78, 1
      %p615 = scmp.ne.s32.totalorder %s610, %s612
      %p616 = scmp.eq.s32.totalorder %s78, 0
      %p617 = por %p615, %p616
      %p618 = scmp.ne.s32.totalorder %s610, %s612
      %p619 = scmp.eq.s32.totalorder %s83, 1
      %p620 = por %p618, %p619
      %p621 = scmp.ne.s32.totalorder %s612, %s613
      %p622 = scmp.eq.s32.totalorder %s83, 0
      %p623 = por %p621, %p622
      %p624 = scmp.ne.s32.totalorder %s612, %s613
      %p625 = scmp.eq.s32.totalorder %s84, 1
      %p626 = por %p624, %p625
      %p628 = scmp.ne.s32.totalorder %s613, %s627
      %p629 = scmp.eq.s32.totalorder %s84, 0
      %p630 = por %p628, %p629
      %s632 = sadd.s32 %s631, 1
      %p635 = scmp.eq.s32.totalorder %s78, 1
      %p636 = scmp.ne.s32.totalorder %s631, %s633
      %p637 = scmp.eq.s32.totalorder %s78, 0
      %p638 = por %p636, %p637
      %p639 = scmp.ne.s32.totalorder %s631, %s633
      %p640 = scmp.eq.s32.totalorder %s83, 1
      %p641 = por %p639, %p640
      %p642 = scmp.ne.s32.totalorder %s633, %s634
      %p643 = scmp.eq.s32.totalorder %s83, 0
      %p644 = por %p642, %p643
      %p645 = scmp.ne.s32.totalorder %s633, %s634
      %p646 = scmp.eq.s32.totalorder %s84, 1
      %p647 = por %p645, %p646
      %p649 = scmp.ne.s32.totalorder %s634, %s648
      %p650 = scmp.eq.s32.totalorder %s84, 0
      %p651 = por %p649, %p650
      %s653 = sadd.s32 %s652, 1
      %p656 = scmp.eq.s32.totalorder %s78, 1
      %p657 = scmp.ne.s32.totalorder %s652, %s654
      %p658 = scmp.eq.s32.totalorder %s78, 0
      %p659 = por %p657, %p658
      %p660 = scmp.ne.s32.totalorder %s652, %s654
      %p661 = scmp.eq.s32.totalorder %s83, 1
      %p662 = por %p660, %p661
      %p663 = scmp.ne.s32.totalorder %s654, %s655
      %p664 = scmp.eq.s32.totalorder %s83, 0
      %p665 = por %p663, %p664
      %p666 = scmp.ne.s32.totalorder %s654, %s655
      %p667 = scmp.eq.s32.totalorder %s84, 1
      %p668 = por %p666, %p667
      %p670 = scmp.ne.s32.totalorder %s655, %s669
      %p671 = scmp.eq.s32.totalorder %s84, 0
      %p672 = por %p670, %p671
      %s674 = sadd.s32 %s673, 1
      %p677 = scmp.eq.s32.totalorder %s78, 1
      %p678 = scmp.ne.s32.totalorder %s673, %s675
      %p679 = scmp.eq.s32.totalorder %s78, 0
      %p680 = por %p678, %p679
      %p681 = scmp.ne.s32.totalorder %s673, %s675
      %p682 = scmp.eq.s32.totalorder %s83, 1
      %p683 = por %p681, %p682
      %p684 = scmp.ne.s32.totalorder %s675, %s676
      %p685 = scmp.eq.s32.totalorder %s83, 0
      %p686 = por %p684, %p685
      %p687 = scmp.ne.s32.totalorder %s675, %s676
      %p688 = scmp.eq.s32.totalorder %s84, 1
      %p689 = por %p687, %p688
      %p691 = scmp.ne.s32.totalorder %s676, %s690
      %p692 = scmp.eq.s32.totalorder %s84, 0
      %p693 = por %p691, %p692
      %s695 = sadd.s32 %s694, 1
      %p698 = scmp.eq.s32.totalorder %s78, 1
      %p699 = scmp.ne.s32.totalorder %s694, %s696
      %p700 = scmp.eq.s32.totalorder %s78, 0
      %p701 = por %p699, %p700
      %p702 = scmp.ne.s32.totalorder %s694, %s696
      %p703 = scmp.eq.s32.totalorder %s83, 1
      %p704 = por %p702, %p703
      %p705 = scmp.ne.s32.totalorder %s696, %s697
      %p706 = scmp.eq.s32.totalorder %s83, 0
      %p707 = por %p705, %p706
      %p708 = scmp.ne.s32.totalorder %s696, %s697
      %p709 = scmp.eq.s32.totalorder %s84, 1
      %p710 = por %p708, %p709
      %p712 = scmp.ne.s32.totalorder %s697, %s711
      %p713 = scmp.eq.s32.totalorder %s84, 0
      %p714 = por %p712, %p713
      %s716 = sadd.s32 %s715, 1
      %p719 = scmp.eq.s32.totalorder %s78, 1
      %p720 = scmp.ne.s32.totalorder %s715, %s717
      %p721 = scmp.eq.s32.totalorder %s78, 0
      %p722 = por %p720, %p721
      %p723 = scmp.ne.s32.totalorder %s715, %s717
      %p724 = scmp.eq.s32.totalorder %s83, 1
      %p725 = por %p723, %p724
      %p726 = scmp.ne.s32.totalorder %s717, %s718
      %p727 = scmp.eq.s32.totalorder %s83, 0
      %p728 = por %p726, %p727
      %p729 = scmp.ne.s32.totalorder %s717, %s718
      %p730 = scmp.eq.s32.totalorder %s84, 1
      %p731 = por %p729, %p730
      %p733 = scmp.ne.s32.totalorder %s718, %s732
      %p734 = scmp.eq.s32.totalorder %s84, 0
      %p735 = por %p733, %p734
      %s736 = ssub.s32 %s78, %s85
      %p737 = scmp.eq.s32.totalorder %s736, 0
      %s739 = sadd.s32 %s738, 1
      %s740 = scalar_select %p737, %s738, %s739
      %p743 = pneg %p737
      %p744 = scmp.eq.s32.totalorder %s78, 1
      %p745 = por %p743, %p744
      %p746 = scmp.ne.s32.totalorder %s738, %s741
      %p747 = scmp.eq.s32.totalorder %s78, 0
      %p748 = por %p746, %p747
      %p749 = scmp.ne.s32.totalorder %s738, %s741
      %p750 = scmp.eq.s32.totalorder %s83, 1
      %p751 = por %p749, %p750
      %p752 = scmp.ne.s32.totalorder %s741, %s742
      %p753 = scmp.eq.s32.totalorder %s83, 0
      %p754 = por %p752, %p753
      %p755 = scmp.ne.s32.totalorder %s741, %s742
      %p756 = scmp.eq.s32.totalorder %s84, 1
      %p757 = por %p755, %p756
      %p759 = scmp.ne.s32.totalorder %s742, %s758
      %p760 = scmp.eq.s32.totalorder %s84, 0
      %p761 = por %p759, %p760
      %s762 = ssub.s32 %s78, %s85
      %p763 = scmp.eq.s32.totalorder %s762, 0
      %s765 = sadd.s32 %s764, 1
      %s766 = scalar_select %p763, %s764, %s765
      %p769 = pneg %p763
      %p770 = scmp.eq.s32.totalorder %s78, 1
      %p771 = por %p769, %p770
      %p772 = scmp.ne.s32.totalorder %s764, %s767
      %p773 = scmp.eq.s32.totalorder %s78, 0
      %p774 = por %p772, %p773
      %p775 = scmp.ne.s32.totalorder %s764, %s767
      %p776 = scmp.eq.s32.totalorder %s83, 1
      %p777 = por %p775, %p776
      %p778 = scmp.ne.s32.totalorder %s767, %s768
      %p779 = scmp.eq.s32.totalorder %s83, 0
      %p780 = por %p778, %p779
      %p781 = scmp.ne.s32.totalorder %s767, %s768
      %p782 = scmp.eq.s32.totalorder %s84, 1
      %p783 = por %p781, %p782
      %p785 = scmp.ne.s32.totalorder %s768, %s784
      %p786 = scmp.eq.s32.totalorder %s84, 0
      %p787 = por %p785, %p786
      %s788 = ssub.s32 %s78, %s85
      %p789 = scmp.eq.s32.totalorder %s788, 0
      %s791 = sadd.s32 %s790, 1
      %s792 = scalar_select %p789, %s790, %s791
      %p795 = pneg %p789
      %p796 = scmp.eq.s32.totalorder %s78, 1
      %p797 = por %p795, %p796
      %p798 = scmp.ne.s32.totalorder %s790, %s793
      %p799 = scmp.eq.s32.totalorder %s78, 0
      %p800 = por %p798, %p799
      %p801 = scmp.ne.s32.totalorder %s790, %s793
      %p802 = scmp.eq.s32.totalorder %s83, 1
      %p803 = por %p801, %p802
      %p804 = scmp.ne.s32.totalorder %s793, %s794
      %p805 = scmp.eq.s32.totalorder %s83, 0
      %p806 = por %p804, %p805
      %p807 = scmp.ne.s32.totalorder %s793, %s794
      %p808 = scmp.eq.s32.totalorder %s84, 1
      %p809 = por %p807, %p808
      %p811 = scmp.ne.s32.totalorder %s794, %s810
      %p812 = scmp.eq.s32.totalorder %s84, 0
      %p813 = por %p811, %p812
      %p814 = scmp.le.s32.totalorder 1, %s78
      %p815 = scmp.lt.s32.totalorder %s78, 3
      %p816 = pnand %p814, %p815
      %p817 = pneg %p816
      // Predicated region
      $region9: #{tpu_custom_call.1} parent=5 // pred_check
        _
      $region10: #{tpu_custom_call.1} parent=5 // pred_check_branch
        %819 = sbr.rel (%p816) target = $region12
      $region11: #{tpu_custom_call.1} parent=5 // pred_region
        %s820 = ssub.s32 %s78, 1
        // Predicated region
        $region13: #{tpu_custom_call.1} parent=11 // pred_check
          %p821 = pneg %p203
        $region14: #{tpu_custom_call.1} parent=11 // pred_check_branch
          %823 = sbr.rel (%p821) target = $region16
        $region15: #{tpu_custom_call.1} parent=11 // pred_region
          _
        $region16: #{tpu_custom_call.1} parent=11 // pred_fallthru
          _
        // Predicated region
        $region17: #{tpu_custom_call.1} parent=11 // pred_check
          %p824 = pneg %p224
        $region18: #{tpu_custom_call.1} parent=11 // pred_check_branch
          %826 = sbr.rel (%p824) target = $region20
        $region19: #{tpu_custom_call.1} parent=11 // pred_region
          _
        $region20: #{tpu_custom_call.1} parent=11 // pred_fallthru
          _
        // Predicated region
        $region21: #{tpu_custom_call.1} parent=11 // pred_check
          %p827 = pneg %p245
        $region22: #{tpu_custom_call.1} parent=11 // pred_check_branch
          %829 = sbr.rel (%p827) target = $region24
        $region23: #{tpu_custom_call.1} parent=11 // pred_region
          _
        $region24: #{tpu_custom_call.1} parent=11 // pred_fallthru
          _
        // Predicated region
        $region25: #{tpu_custom_call.1} parent=11 // pred_check
          %p830 = pneg %p266
        $region26: #{tpu_custom_call.1} parent=11 // pred_check_branch
          %832 = sbr.rel (%p830) target = $region28
        $region27: #{tpu_custom_call.1} parent=11 // pred_region
          _
        $region28: #{tpu_custom_call.1} parent=11 // pred_fallthru
          _
        // Predicated region
        $region29: #{tpu_custom_call.1} parent=11 // pred_check
          %p833 = pneg %p287
        $region30: #{tpu_custom_call.1} parent=11 // pred_check_branch
          %835 = sbr.rel (%p833) target = $region32
        $region31: #{tpu_custom_call.1} parent=11 // pred_region
          _
        $region32: #{tpu_custom_call.1} parent=11 // pred_fallthru
          _
        // Predicated region
        $region33: #{tpu_custom_call.1} parent=11 // pred_check
          %p836 = pneg %p308
        $region34: #{tpu_custom_call.1} parent=11 // pred_check_branch
          %838 = sbr.rel (%p836) target = $region36
        $region35: #{tpu_custom_call.1} parent=11 // pred_region
          _
        $region36: #{tpu_custom_call.1} parent=11 // pred_fallthru
          _
        // Predicated region
        $region37: #{tpu_custom_call.1} parent=11 // pred_check
          %p839 = pneg %p329
        $region38: #{tpu_custom_call.1} parent=11 // pred_check_branch
          %841 = sbr.rel (%p839) target = $region40
        $region39: #{tpu_custom_call.1} parent=11 // pred_region
          _
        $region40: #{tpu_custom_call.1} parent=11 // pred_fallthru
          _
        // Predicated region
        $region41: #{tpu_custom_call.1} parent=11 // pred_check
          %p842 = pneg %p350
        $region42: #{tpu_custom_call.1} parent=11 // pred_check_branch
          %844 = sbr.rel (%p842) target = $region44
        $region43: #{tpu_custom_call.1} parent=11 // pred_region
          _
        $region44: #{tpu_custom_call.1} parent=11 // pred_fallthru
          _
        // Predicated region
        $region45: #{tpu_custom_call.1} parent=11 // pred_check
          %p845 = pneg %p371
        $region46: #{tpu_custom_call.1} parent=11 // pred_check_branch
          %847 = sbr.rel (%p845) target = $region48
        $region47: #{tpu_custom_call.1} parent=11 // pred_region
          _
        $region48: #{tpu_custom_call.1} parent=11 // pred_fallthru
          _
        // Predicated region
        $region49: #{tpu_custom_call.1} parent=11 // pred_check
          %p848 = pneg %p392
        $region50: #{tpu_custom_call.1} parent=11 // pred_check_branch
          %850 = sbr.rel (%p848) target = $region52
        $region51: #{tpu_custom_call.1} parent=11 // pred_region
          _
        $region52: #{tpu_custom_call.1} parent=11 // pred_fallthru
          _
        // Predicated region
        $region53: #{tpu_custom_call.1} parent=11 // pred_check
          %p851 = pneg %p413
        $region54: #{tpu_custom_call.1} parent=11 // pred_check_branch
          %853 = sbr.rel (%p851) target = $region56
        $region55: #{tpu_custom_call.1} parent=11 // pred_region
          _
        $region56: #{tpu_custom_call.1} parent=11 // pred_fallthru
          _
        // Predicated region
        $region57: #{tpu_custom_call.1} parent=11 // pred_check
          %p854 = pneg %p434
        $region58: #{tpu_custom_call.1} parent=11 // pred_check_branch
          %856 = sbr.rel (%p854) target = $region60
        $region59: #{tpu_custom_call.1} parent=11 // pred_region
          _
        $region60: #{tpu_custom_call.1} parent=11 // pred_fallthru
          _
        // Predicated region
        $region61: #{tpu_custom_call.1} parent=11 // pred_check
          %p857 = pneg %p455
        $region62: #{tpu_custom_call.1} parent=11 // pred_check_branch
          %859 = sbr.rel (%p857) target = $region64
        $region63: #{tpu_custom_call.1} parent=11 // pred_region
          _
        $region64: #{tpu_custom_call.1} parent=11 // pred_fallthru
          _
        // Predicated region
        $region65: #{tpu_custom_call.1} parent=11 // pred_check
          %p860 = pneg %p476
        $region66: #{tpu_custom_call.1} parent=11 // pred_check_branch
          %862 = sbr.rel (%p860) target = $region68
        $region67: #{tpu_custom_call.1} parent=11 // pred_region
          _
        $region68: #{tpu_custom_call.1} parent=11 // pred_fallthru
          _
        // Predicated region
        $region69: #{tpu_custom_call.1} parent=11 // pred_check
          %p863 = pneg %p497
        $region70: #{tpu_custom_call.1} parent=11 // pred_check_branch
          %865 = sbr.rel (%p863) target = $region72
        $region71: #{tpu_custom_call.1} parent=11 // pred_region
          _
        $region72: #{tpu_custom_call.1} parent=11 // pred_fallthru
          _
        // Predicated region
        $region73: #{tpu_custom_call.1} parent=11 // pred_check
          %p866 = pneg %p518
        $region74: #{tpu_custom_call.1} parent=11 // pred_check_branch
          %868 = sbr.rel (%p866) target = $region76
        $region75: #{tpu_custom_call.1} parent=11 // pred_region
          _
        $region76: #{tpu_custom_call.1} parent=11 // pred_fallthru
          _
        // Predicated region
        $region77: #{tpu_custom_call.1} parent=11 // pred_check
          %p869 = pneg %p539
        $region78: #{tpu_custom_call.1} parent=11 // pred_check_branch
          %871 = sbr.rel (%p869) target = $region80
        $region79: #{tpu_custom_call.1} parent=11 // pred_region
          _
        $region80: #{tpu_custom_call.1} parent=11 // pred_fallthru
          _
        // Predicated region
        $region81: #{tpu_custom_call.1} parent=11 // pred_check
          %p872 = pneg %p560
        $region82: #{tpu_custom_call.1} parent=11 // pred_check_branch
          %874 = sbr.rel (%p872) target = $region84
        $region83: #{tpu_custom_call.1} parent=11 // pred_region
          _
        $region84: #{tpu_custom_call.1} parent=11 // pred_fallthru
          _
        // Predicated region
        $region85: #{tpu_custom_call.1} parent=11 // pred_check
          %p875 = pneg %p581
        $region86: #{tpu_custom_call.1} parent=11 // pred_check_branch
          %877 = sbr.rel (%p875) target = $region88
        $region87: #{tpu_custom_call.1} parent=11 // pred_region
          _
        $region88: #{tpu_custom_call.1} parent=11 // pred_fallthru
          _
        // Predicated region
        $region89: #{tpu_custom_call.1} parent=11 // pred_check
          %p878 = pneg %p602
        $region90: #{tpu_custom_call.1} parent=11 // pred_check_branch
          %880 = sbr.rel (%p878) target = $region92
        $region91: #{tpu_custom_call.1} parent=11 // pred_region
          _
        $region92: #{tpu_custom_call.1} parent=11 // pred_fallthru
          _
        // Predicated region
        $region93: #{tpu_custom_call.1} parent=11 // pred_check
          %p881 = pneg %p623
        $region94: #{tpu_custom_call.1} parent=11 // pred_check_branch
          %883 = sbr.rel (%p881) target = $region96
        $region95: #{tpu_custom_call.1} parent=11 // pred_region
          _
        $region96: #{tpu_custom_call.1} parent=11 // pred_fallthru
          _
        // Predicated region
        $region97: #{tpu_custom_call.1} parent=11 // pred_check
          %p884 = pneg %p644
        $region98: #{tpu_custom_call.1} parent=11 // pred_check_branch
          %886 = sbr.rel (%p884) target = $region100
        $region99: #{tpu_custom_call.1} parent=11 // pred_region
          _
        $region100: #{tpu_custom_call.1} parent=11 // pred_fallthru
          _
        // Predicated region
        $region101: #{tpu_custom_call.1} parent=11 // pred_check
          %p887 = pneg %p665
        $region102: #{tpu_custom_call.1} parent=11 // pred_check_branch
          %889 = sbr.rel (%p887) target = $region104
        $region103: #{tpu_custom_call.1} parent=11 // pred_region
          _
        $region104: #{tpu_custom_call.1} parent=11 // pred_fallthru
          _
        // Predicated region
        $region105: #{tpu_custom_call.1} parent=11 // pred_check
          %p890 = pneg %p686
        $region106: #{tpu_custom_call.1} parent=11 // pred_check_branch
          %892 = sbr.rel (%p890) target = $region108
        $region107: #{tpu_custom_call.1} parent=11 // pred_region
          _
        $region108: #{tpu_custom_call.1} parent=11 // pred_fallthru
          _
        // Predicated region
        $region109: #{tpu_custom_call.1} parent=11 // pred_check
          %p893 = pneg %p707
        $region110: #{tpu_custom_call.1} parent=11 // pred_check_branch
          %895 = sbr.rel (%p893) target = $region112
        $region111: #{tpu_custom_call.1} parent=11 // pred_region
          _
        $region112: #{tpu_custom_call.1} parent=11 // pred_fallthru
          _
        // Predicated region
        $region113: #{tpu_custom_call.1} parent=11 // pred_check
          %p896 = pneg %p728
        $region114: #{tpu_custom_call.1} parent=11 // pred_check_branch
          %898 = sbr.rel (%p896) target = $region116
        $region115: #{tpu_custom_call.1} parent=11 // pred_region
          _
        $region116: #{tpu_custom_call.1} parent=11 // pred_fallthru
          _
      $region12: #{tpu_custom_call.1} parent=5 // pred_fallthru
        _
      %p899 = scmp.lt.s32.totalorder %s78, 2
      // Predicated region
      $region117: #{tpu_custom_call.1} parent=5 // pred_check
        %p900 = pneg %p899
      $region118: #{tpu_custom_call.1} parent=5 // pred_check_branch
        %902 = sbr.rel (%p900) target = $region120
      $region119: #{tpu_custom_call.1} parent=5 // pred_region
        // Predicated region
        $region121: #{tpu_custom_call.1} parent=119 // pred_check
          %p903 = pneg %p98
        $region122: #{tpu_custom_call.1} parent=119 // pred_check_branch
          %905 = sbr.rel (%p903) target = $region124
        $region123: #{tpu_custom_call.1} parent=119 // pred_region
          %p906 = scmp.lt.s32.totalorder %s78, 1
          %s907 = scalar_select %p906, %s78, 1
          %s908 = smul.addr %s907, 8
          %s909 = scalar_lea.vmem %s1, %s908
        $region124: #{tpu_custom_call.1} parent=119 // pred_fallthru
          _
        // Predicated region
        $region125: #{tpu_custom_call.1} parent=119 // pred_check
          %p910 = pneg %p124
        $region126: #{tpu_custom_call.1} parent=119 // pred_check_branch
          %912 = sbr.rel (%p910) target = $region128
        $region127: #{tpu_custom_call.1} parent=119 // pred_region
          %p913 = scmp.lt.s32.totalorder %s78, 1
          %s914 = scalar_select %p913, %s78, 1
          %s915 = smul.addr %s914, 8
          %s916 = scalar_lea.vmem %s3, %s915
        $region128: #{tpu_custom_call.1} parent=119 // pred_fallthru
          _
        // Predicated region
        $region129: #{tpu_custom_call.1} parent=119 // pred_check
          %p917 = pneg %p150
        $region130: #{tpu_custom_call.1} parent=119 // pred_check_branch
          %919 = sbr.rel (%p917) target = $region132
        $region131: #{tpu_custom_call.1} parent=119 // pred_region
          %p920 = scmp.lt.s32.totalorder %s78, 1
          %s921 = scalar_select %p920, %s78, 1
          %s922 = scalar_lea.vmem %s5, %s921
        $region132: #{tpu_custom_call.1} parent=119 // pred_fallthru
          _
        // Predicated region
        $region133: #{tpu_custom_call.1} parent=119 // pred_check
          %p923 = pneg %p176
        $region134: #{tpu_custom_call.1} parent=119 // pred_check_branch
          %925 = sbr.rel (%p923) target = $region136
        $region135: #{tpu_custom_call.1} parent=119 // pred_region
          %p926 = scmp.lt.s32.totalorder %s78, 1
          %s927 = scalar_select %p926, %s78, 1
          %s928 = scalar_lea.vmem %s7, %s927
        $region136: #{tpu_custom_call.1} parent=119 // pred_fallthru
          _
      $region120: #{tpu_custom_call.1} parent=5 // pred_fallthru
        _
      %p929 = scmp.le.s32.totalorder 1, %s78
      %p930 = scmp.lt.s32.totalorder %s78, 3
      %p931 = pnand %p929, %p930
      %p932 = pneg %p931
      // Predicated region
      $region137: #{tpu_custom_call.1} parent=5 // pred_check
        _
      $region138: #{tpu_custom_call.1} parent=5 // pred_check_branch
        %934 = sbr.rel (%p931) target = $region140
      $region139: #{tpu_custom_call.1} parent=5 // pred_region
        %s935 = ssub.s32 %s78, 1
        %p936 = scmp.lt.s32.totalorder %s83, 1
        %s937 = scalar_select %p936, %s83, 1
        %s938 = smul.addr %s937, 8
        %s939 = scalar_lea.vmem %s1, %s938
        %p940 = pneg %p104
        %p941 = pneg %p101
        %p942 = scmp.lt.s32.totalorder %s83, 1
        %s943 = scalar_select %p942, %s83, 1
        %s944 = smul.addr %s943, 8
        %s945 = scalar_lea.vmem %s3, %s944
        %p946 = pneg %p130
        %p947 = pneg %p127
        %p948 = scmp.lt.s32.totalorder %s83, 1
        %s949 = scalar_select %p948, %s83, 1
        %s950 = scalar_lea.vmem %s5, %s949
        %p951 = pneg %p156
        %p952 = pneg %p153
        %p953 = scmp.lt.s32.totalorder %s83, 1
        %s954 = scalar_select %p953, %s83, 1
        %s955 = scalar_lea.vmem %s7, %s954
        %p956 = pneg %p182
        %p957 = pneg %p179
        %p958 = pneg %p203
        %p959 = pneg %p200
        %p960 = pneg %p224
        %p961 = pneg %p221
        %p962 = pneg %p245
        %p963 = pneg %p242
        %p964 = pneg %p266
        %p965 = pneg %p263
        %p966 = pneg %p287
        %p967 = pneg %p284
        %p968 = pneg %p308
        %p969 = pneg %p305
        %p970 = pneg %p329
        %p971 = pneg %p326
        %p972 = pneg %p350
        %p973 = pneg %p347
        %p974 = pneg %p371
        %p975 = pneg %p368
        %p976 = pneg %p392
        %p977 = pneg %p389
        %p978 = pneg %p413
        %p979 = pneg %p410
        %p980 = pneg %p434
        %p981 = pneg %p431
        %p982 = pneg %p455
        %p983 = pneg %p452
        %p984 = pneg %p476
        %p985 = pneg %p473
        %p986 = pneg %p497
        %p987 = pneg %p494
        %p988 = pneg %p518
        %p989 = pneg %p515
        %p990 = pneg %p539
        %p991 = pneg %p536
        %p992 = pneg %p560
        %p993 = pneg %p557
        %p994 = pneg %p581
        %p995 = pneg %p578
        %p996 = pneg %p602
        %p997 = pneg %p599
        %p998 = pneg %p623
        %p999 = pneg %p620
        %p1000 = pneg %p644
        %p1001 = pneg %p641
        %p1002 = pneg %p665
        %p1003 = pneg %p662
        %p1004 = pneg %p686
        %p1005 = pneg %p683
        %p1006 = pneg %p707
        %p1007 = pneg %p704
        %p1008 = pneg %p728
        %p1009 = pneg %p725
        %p1010 = pneg %p754
        %p1011 = pneg %p751
        %s1012 = sand.u32 %s741, 1
        %s1013 = scalar_lea.sflag [#allocation3], %s1012
        %s1014 = sand.u32 %s741, 1
        %s1015 = smul.addr %s1014, 8
        %s1016 = scalar_lea.vmem [#allocation2], %s1015
        %p1017 = pneg %p780
        %p1018 = pneg %p777
        %s1019 = sand.u32 %s83, 1
        %s1020 = scalar_lea.sflag [#allocation5], %s1019
        %s1021 = sand.u32 %s767, 1
        %s1022 = smul.addr %s1021, 32
        %s1023 = scalar_lea.vmem [#allocation4], %s1022
        %p1024 = pneg %p806
        %p1025 = pneg %p803
        %s1026 = sand.u32 %s83, 1
        %s1027 = scalar_lea.sflag [#allocation5], %s1026
        %s1028 = sand.u32 %s793, 1
        %s1029 = smul.addr %s1028, 32
        %s1030 = scalar_lea.vmem [#allocation6], %s1029
        %p1031 = scmp.lt.s32.totalorder %s83, 1
        %s1032 = scalar_select %p1031, %s83, 1
        %s1033 = smul.addr %s1032, 8
        %s1034 = scalar_lea.vmem %s1, %s1033
        %p1035 = scmp.lt.s32.totalorder %s83, 1
        %s1036 = scalar_select %p1035, %s83, 1
        %s1037 = smul.addr %s1036, 8
        %s1038 = scalar_lea.vmem %s3, %s1037
        %p1039 = scmp.lt.s32.totalorder %s83, 1
        %s1040 = scalar_select %p1039, %s83, 1
        %s1041 = scalar_lea.vmem %s5, %s1040
        %p1042 = scmp.lt.s32.totalorder %s83, 1
        %s1043 = scalar_select %p1042, %s83, 1
        %s1044 = scalar_lea.vmem %s7, %s1043
        %v1046 = vld [vmem:[%s1034] sm:$0xff]
        %v1047 = vld [vmem:[%s1038] sm:$0xff]
        %v1048 = vld [vmem:[%s1041] sm:$0x1]
        %v1049 = vld [vmem:[%s1044] sm:$0x1]
        %v1050 = vpack.c.bf16 %v1046, %v1046
        %v1051 = vld [vmem:[%s9] sm:$0xf]
        %v1052 = vld [vmem:[%s9 + $0x4] sm:$0xf]
        %v1053 = vld [vmem:[%s9 + $0x8] sm:$0xf]
        %v1054 = vld [vmem:[%s9 + $0xc] sm:$0xf]
        %v1055 = vld [vmem:[%s9 + $0x10] sm:$0xf]
        %v1056 = vld [vmem:[%s9 + $0x14] sm:$0xf]
        %v1057 = vld [vmem:[%s9 + $0x18] sm:$0xf]
        %v1058 = vld [vmem:[%s9 + $0x1c] sm:$0xf]
        %v1059 = vld [vmem:[%s9 + $0x20] sm:$0xf]
        %v1060 = vld [vmem:[%s9 + $0x24] sm:$0xf]
        %v1061 = vld [vmem:[%s9 + $0x28] sm:$0xf]
        %v1062 = vld [vmem:[%s9 + $0x2c] sm:$0xf]
        %v1063 = vld [vmem:[%s9 + $0x30] sm:$0xf]
        %v1064 = vld [vmem:[%s9 + $0x34] sm:$0xf]
        %v1065 = vld [vmem:[%s9 + $0x38] sm:$0xf]
        %v1066 = vld [vmem:[%s9 + $0x3c] sm:$0xf]
        %v1067 = vld [vmem:[%s11] sm:$0x1]
        %v1068 = vld [vmem:[%s11 + $0x1] sm:$0x1]
        %v1069 = vld [vmem:[%s11 + $0x2] sm:$0x1]
        %v1070 = vld [vmem:[%s11 + $0x3] sm:$0x1]
        %v1075 = vperm.slane %v1067, 0
        %v1076 = vperm.slane %v1068, 0
        %v1077 = vperm.slane %v1069, 0
        %v1078 = vperm.slane %v1070, 0
        %v1087 = vunpack.c.l.b16 %v1051
        %v1088 = vunpack.c.l.b16 %v1052
        %v1089 = vunpack.c.l.b16 %v1053
        %v1090 = vunpack.c.l.b16 %v1054
        %v1091 = vpack.c.b16 %v1088, %v1087
        %v1092 = vpack.c.b16 %v1090, %v1089
        %vm1095 = vcmask 261120
        %v1097 = vsel %vm1095, %v1050, 0
        %1099 = vmatpush.bf16.msra.mxu0 0
        %1100 = vmatpush.bf16.msra.mxu0 0
        %1101 = vmatpush.bf16.msra.mxu0 0
        %1102 = vmatpush.bf16.msra.mxu0 0
        %1103 = vmatpush.bf16.msra.mxu0 0
        %1104 = vmatpush.bf16.msra.mxu0 0
        %1105 = vmatpush.bf16.msra.mxu0 %v1092
        %1106 = vmatpush.bf16.msra.mxu0 %v1091
        %1107 = vmatmul.bf16.gmra.mxu0 %v1097
        %v1108 = vpop.f32.mrf.mxu0
        %v1109 = vadd.f32 %v1075, %v1108
        %v1110 = vpop.f32.mrf.mxu0
        %1111 = vdwg.mxu0
        %v1116 = vunpack.c.l.b16 %v1055
        %v1117 = vunpack.c.l.b16 %v1056
        %v1118 = vunpack.c.l.b16 %v1057
        %v1119 = vunpack.c.l.b16 %v1058
        %v1120 = vpack.c.b16 %v1117, %v1116
        %v1121 = vpack.c.b16 %v1119, %v1118
        %1124 = vmatpush.bf16.msra.mxu0 0
        %1125 = vmatpush.bf16.msra.mxu0 0
        %1126 = vmatpush.bf16.msra.mxu0 0
        %1127 = vmatpush.bf16.msra.mxu0 0
        %1128 = vmatpush.bf16.msra.mxu0 0
        %1129 = vmatpush.bf16.msra.mxu0 0
        %1130 = vmatpush.bf16.msra.mxu0 %v1121
        %1131 = vmatpush.bf16.msra.mxu0 %v1120
        %1132 = vmatmul.bf16.gmra.mxu0 %v1097
        %v1133 = vpop.f32.mrf.mxu0
        %v1134 = vadd.f32 %v1076, %v1133
        %v1135 = vpop.f32.mrf.mxu0
        %1136 = vdwg.mxu0
        %v1141 = vunpack.c.l.b16 %v1059
        %v1142 = vunpack.c.l.b16 %v1060
        %v1143 = vunpack.c.l.b16 %v1061
        %v1144 = vunpack.c.l.b16 %v1062
        %v1145 = vpack.c.b16 %v1142, %v1141
        %v1146 = vpack.c.b16 %v1144, %v1143
        %1149 = vmatpush.bf16.msra.mxu0 0
        %1150 = vmatpush.bf16.msra.mxu0 0
        %1151 = vmatpush.bf16.msra.mxu0 0
        %1152 = vmatpush.bf16.msra.mxu0 0
        %1153 = vmatpush.bf16.msra.mxu0 0
        %1154 = vmatpush.bf16.msra.mxu0 0
        %1155 = vmatpush.bf16.msra.mxu0 %v1146
        %1156 = vmatpush.bf16.msra.mxu0 %v1145
        %1157 = vmatmul.bf16.gmra.mxu0 %v1097
        %v1158 = vpop.f32.mrf.mxu0
        %v1159 = vadd.f32 %v1077, %v1158
        %v1160 = vpop.f32.mrf.mxu0
        %1161 = vdwg.mxu0
        %v1166 = vunpack.c.l.b16 %v1063
        %v1167 = vunpack.c.l.b16 %v1064
        %v1168 = vunpack.c.l.b16 %v1065
        %v1169 = vunpack.c.l.b16 %v1066
        %v1170 = vpack.c.b16 %v1167, %v1166
        %v1171 = vpack.c.b16 %v1169, %v1168
        %1174 = vmatpush.bf16.msra.mxu0 0
        %1175 = vmatpush.bf16.msra.mxu0 0
        %1176 = vmatpush.bf16.msra.mxu0 0
        %1177 = vmatpush.bf16.msra.mxu0 0
        %1178 = vmatpush.bf16.msra.mxu0 0
        %1179 = vmatpush.bf16.msra.mxu0 0
        %1180 = vmatpush.bf16.msra.mxu0 %v1171
        %1181 = vmatpush.bf16.msra.mxu0 %v1170
        %1182 = vmatmul.bf16.gmra.mxu0 %v1097
        %v1183 = vpop.f32.mrf.mxu0
        %v1184 = vadd.f32 %v1078, %v1183
        %v1185 = vpop.f32.mrf.mxu0
        %1186 = vdwg.mxu0
        %v1187 = vld [vmem:[%s13] sm:$0xf]
        %v1188 = vld [vmem:[%s13 + $0x4] sm:$0xf]
        %v1189 = vld [vmem:[%s13 + $0x8] sm:$0xf]
        %v1190 = vld [vmem:[%s13 + $0xc] sm:$0xf]
        %v1191 = vld [vmem:[%s13 + $0x10] sm:$0xf]
        %v1192 = vld [vmem:[%s13 + $0x14] sm:$0xf]
        %v1193 = vld [vmem:[%s13 + $0x18] sm:$0xf]
        %v1194 = vld [vmem:[%s13 + $0x1c] sm:$0xf]
        %v1195 = vld [vmem:[%s13 + $0x20] sm:$0xf]
        %v1196 = vld [vmem:[%s13 + $0x24] sm:$0xf]
        %v1197 = vld [vmem:[%s13 + $0x28] sm:$0xf]
        %v1198 = vld [vmem:[%s13 + $0x2c] sm:$0xf]
        %v1199 = vld [vmem:[%s13 + $0x30] sm:$0xf]
        %v1200 = vld [vmem:[%s13 + $0x34] sm:$0xf]
        %v1201 = vld [vmem:[%s13 + $0x38] sm:$0xf]
        %v1202 = vld [vmem:[%s13 + $0x3c] sm:$0xf]
        %v1203 = vld [vmem:[%s15] sm:$0x1]
        %v1204 = vld [vmem:[%s15 + $0x1] sm:$0x1]
        %v1205 = vld [vmem:[%s15 + $0x2] sm:$0x1]
        %v1206 = vld [vmem:[%s15 + $0x3] sm:$0x1]
        %v1211 = vperm.slane %v1203, 0
        %v1212 = vperm.slane %v1204, 0
        %v1213 = vperm.slane %v1205, 0
        %v1214 = vperm.slane %v1206, 0
        %v1223 = vunpack.c.l.b16 %v1187
        %v1224 = vunpack.c.l.b16 %v1188
        %v1225 = vunpack.c.l.b16 %v1189
        %v1226 = vunpack.c.l.b16 %v1190
        %v1227 = vpack.c.b16 %v1224, %v1223
        %v1228 = vpack.c.b16 %v1226, %v1225
        %1231 = vmatpush.bf16.msra.mxu0 0
        %1232 = vmatpush.bf16.msra.mxu0 0
        %1233 = vmatpush.bf16.msra.mxu0 0
        %1234 = vmatpush.bf16.msra.mxu0 0
        %1235 = vmatpush.bf16.msra.mxu0 0
        %1236 = vmatpush.bf16.msra.mxu0 0
        %1237 = vmatpush.bf16.msra.mxu0 %v1228
        %1238 = vmatpush.bf16.msra.mxu0 %v1227
        %1239 = vmatmul.bf16.gmra.mxu0 %v1097
        %v1240 = vpop.f32.mrf.mxu0
        %v1241 = vadd.f32 %v1211, %v1240
        %v1242 = vpop.f32.mrf.mxu0
        %1243 = vdwg.mxu0
        %v1248 = vunpack.c.l.b16 %v1191
        %v1249 = vunpack.c.l.b16 %v1192
        %v1250 = vunpack.c.l.b16 %v1193
        %v1251 = vunpack.c.l.b16 %v1194
        %v1252 = vpack.c.b16 %v1249, %v1248
        %v1253 = vpack.c.b16 %v1251, %v1250
        %1256 = vmatpush.bf16.msra.mxu0 0
        %1257 = vmatpush.bf16.msra.mxu0 0
        %1258 = vmatpush.bf16.msra.mxu0 0
        %1259 = vmatpush.bf16.msra.mxu0 0
        %1260 = vmatpush.bf16.msra.mxu0 0
        %1261 = vmatpush.bf16.msra.mxu0 0
        %1262 = vmatpush.bf16.msra.mxu0 %v1253
        %1263 = vmatpush.bf16.msra.mxu0 %v1252
        %1264 = vmatmul.bf16.gmra.mxu0 %v1097
        %v1265 = vpop.f32.mrf.mxu0
        %v1266 = vadd.f32 %v1212, %v1265
        %v1267 = vpop.f32.mrf.mxu0
        %1268 = vdwg.mxu0
        %v1273 = vunpack.c.l.b16 %v1195
        %v1274 = vunpack.c.l.b16 %v1196
        %v1275 = vunpack.c.l.b16 %v1197
        %v1276 = vunpack.c.l.b16 %v1198
        %v1277 = vpack.c.b16 %v1274, %v1273
        %v1278 = vpack.c.b16 %v1276, %v1275
        %1281 = vmatpush.bf16.msra.mxu0 0
        %1282 = vmatpush.bf16.msra.mxu0 0
        %1283 = vmatpush.bf16.msra.mxu0 0
        %1284 = vmatpush.bf16.msra.mxu0 0
        %1285 = vmatpush.bf16.msra.mxu0 0
        %1286 = vmatpush.bf16.msra.mxu0 0
        %1287 = vmatpush.bf16.msra.mxu0 %v1278
        %1288 = vmatpush.bf16.msra.mxu0 %v1277
        %1289 = vmatmul.bf16.gmra.mxu0 %v1097
        %v1290 = vpop.f32.mrf.mxu0
        %v1291 = vadd.f32 %v1213, %v1290
        %v1292 = vpop.f32.mrf.mxu0
        %1293 = vdwg.mxu0
        %v1298 = vunpack.c.l.b16 %v1199
        %v1299 = vunpack.c.l.b16 %v1200
        %v1300 = vunpack.c.l.b16 %v1201
        %v1301 = vunpack.c.l.b16 %v1202
        %v1302 = vpack.c.b16 %v1299, %v1298
        %v1303 = vpack.c.b16 %v1301, %v1300
        %1306 = vmatpush.bf16.msra.mxu0 0
        %1307 = vmatpush.bf16.msra.mxu0 0
        %1308 = vmatpush.bf16.msra.mxu0 0
        %1309 = vmatpush.bf16.msra.mxu0 0
        %1310 = vmatpush.bf16.msra.mxu0 0
        %1311 = vmatpush.bf16.msra.mxu0 0
        %1312 = vmatpush.bf16.msra.mxu0 %v1303
        %1313 = vmatpush.bf16.msra.mxu0 %v1302
        %1314 = vmatmul.bf16.gmra.mxu0 %v1097
        %v1315 = vpop.f32.mrf.mxu0
        %v1316 = vadd.f32 %v1214, %v1315
        %v1317 = vpop.f32.mrf.mxu0
        %1318 = vdwg.mxu0
        %v1319 = vld [vmem:[%s17] sm:$0xf]
        %v1320 = vld [vmem:[%s17 + $0x4] sm:$0xf]
        %v1321 = vld [vmem:[%s17 + $0x8] sm:$0xf]
        %v1322 = vld [vmem:[%s17 + $0xc] sm:$0xf]
        %v1323 = vld [vmem:[%s17 + $0x10] sm:$0xf]
        %v1324 = vld [vmem:[%s17 + $0x14] sm:$0xf]
        %v1325 = vld [vmem:[%s17 + $0x18] sm:$0xf]
        %v1326 = vld [vmem:[%s17 + $0x1c] sm:$0xf]
        %v1327 = vld [vmem:[%s17 + $0x20] sm:$0xf]
        %v1328 = vld [vmem:[%s17 + $0x24] sm:$0xf]
        %v1329 = vld [vmem:[%s17 + $0x28] sm:$0xf]
        %v1330 = vld [vmem:[%s17 + $0x2c] sm:$0xf]
        %v1331 = vld [vmem:[%s17 + $0x30] sm:$0xf]
        %v1332 = vld [vmem:[%s17 + $0x34] sm:$0xf]
        %v1333 = vld [vmem:[%s17 + $0x38] sm:$0xf]
        %v1334 = vld [vmem:[%s17 + $0x3c] sm:$0xf]
        %v1335 = vld [vmem:[%s19] sm:$0x1]
        %v1336 = vld [vmem:[%s19 + $0x1] sm:$0x1]
        %v1337 = vld [vmem:[%s19 + $0x2] sm:$0x1]
        %v1338 = vld [vmem:[%s19 + $0x3] sm:$0x1]
        %v1343 = vperm.slane %v1335, 0
        %v1344 = vperm.slane %v1336, 0
        %v1345 = vperm.slane %v1337, 0
        %v1346 = vperm.slane %v1338, 0
        %v1355 = vunpack.c.l.b16 %v1319
        %v1356 = vunpack.c.l.b16 %v1320
        %v1357 = vunpack.c.l.b16 %v1321
        %v1358 = vunpack.c.l.b16 %v1322
        %v1359 = vpack.c.b16 %v1356, %v1355
        %v1360 = vpack.c.b16 %v1358, %v1357
        %1363 = vmatpush.bf16.msra.mxu0 0
        %1364 = vmatpush.bf16.msra.mxu0 0
        %1365 = vmatpush.bf16.msra.mxu0 0
        %1366 = vmatpush.bf16.msra.mxu0 0
        %1367 = vmatpush.bf16.msra.mxu0 0
        %1368 = vmatpush.bf16.msra.mxu0 0
        %1369 = vmatpush.bf16.msra.mxu0 %v1360
        %1370 = vmatpush.bf16.msra.mxu0 %v1359
        %1371 = vmatmul.bf16.gmra.mxu0 %v1097
        %v1372 = vpop.f32.mrf.mxu0
        %v1373 = vadd.f32 %v1343, %v1372
        %v1374 = vpop.f32.mrf.mxu0
        %1375 = vdwg.mxu0
        %v1380 = vunpack.c.l.b16 %v1323
        %v1381 = vunpack.c.l.b16 %v1324
        %v1382 = vunpack.c.l.b16 %v1325
        %v1383 = vunpack.c.l.b16 %v1326
        %v1384 = vpack.c.b16 %v1381, %v1380
        %v1385 = vpack.c.b16 %v1383, %v1382
        %1388 = vmatpush.bf16.msra.mxu0 0
        %1389 = vmatpush.bf16.msra.mxu0 0
        %1390 = vmatpush.bf16.msra.mxu0 0
        %1391 = vmatpush.bf16.msra.mxu0 0
        %1392 = vmatpush.bf16.msra.mxu0 0
        %1393 = vmatpush.bf16.msra.mxu0 0
        %1394 = vmatpush.bf16.msra.mxu0 %v1385
        %1395 = vmatpush.bf16.msra.mxu0 %v1384
        %1396 = vmatmul.bf16.gmra.mxu0 %v1097
        %v1397 = vpop.f32.mrf.mxu0
        %v1398 = vadd.f32 %v1344, %v1397
        %v1399 = vpop.f32.mrf.mxu0
        %1400 = vdwg.mxu0
        %v1405 = vunpack.c.l.b16 %v1327
        %v1406 = vunpack.c.l.b16 %v1328
        %v1407 = vunpack.c.l.b16 %v1329
        %v1408 = vunpack.c.l.b16 %v1330
        %v1409 = vpack.c.b16 %v1406, %v1405
        %v1410 = vpack.c.b16 %v1408, %v1407
        %1413 = vmatpush.bf16.msra.mxu0 0
        %1414 = vmatpush.bf16.msra.mxu0 0
        %1415 = vmatpush.bf16.msra.mxu0 0
        %1416 = vmatpush.bf16.msra.mxu0 0
        %1417 = vmatpush.bf16.msra.mxu0 0
        %1418 = vmatpush.bf16.msra.mxu0 0
        %1419 = vmatpush.bf16.msra.mxu0 %v1410
        %1420 = vmatpush.bf16.msra.mxu0 %v1409
        %1421 = vmatmul.bf16.gmra.mxu0 %v1097
        %v1422 = vpop.f32.mrf.mxu0
        %v1423 = vadd.f32 %v1345, %v1422
        %v1424 = vpop.f32.mrf.mxu0
        %1425 = vdwg.mxu0
        %v1430 = vunpack.c.l.b16 %v1331
        %v1431 = vunpack.c.l.b16 %v1332
        %v1432 = vunpack.c.l.b16 %v1333
        %v1433 = vunpack.c.l.b16 %v1334
        %v1434 = vpack.c.b16 %v1431, %v1430
        %v1435 = vpack.c.b16 %v1433, %v1432
        %1438 = vmatpush.bf16.msra.mxu0 0
        %1439 = vmatpush.bf16.msra.mxu0 0
        %1440 = vmatpush.bf16.msra.mxu0 0
        %1441 = vmatpush.bf16.msra.mxu0 0
        %1442 = vmatpush.bf16.msra.mxu0 0
        %1443 = vmatpush.bf16.msra.mxu0 0
        %1444 = vmatpush.bf16.msra.mxu0 %v1435
        %1445 = vmatpush.bf16.msra.mxu0 %v1434
        %1446 = vmatmul.bf16.gmra.mxu0 %v1097
        %v1447 = vpop.f32.mrf.mxu0
        %v1448 = vadd.f32 %v1346, %v1447
        %v1449 = vpop.f32.mrf.mxu0
        %1450 = vdwg.mxu0
        %v1451 = vpack.c.bf16 %v1109, %v1109
        %v1452 = vpack.c.bf16 %v1134, %v1134
        %v1453 = vpack.c.bf16 %v1159, %v1159
        %v1454 = vpack.c.bf16 %v1184, %v1184
        %v1455 = vpack.c.bf16 %v1241, %v1241
        %v1456 = vpack.c.bf16 %v1266, %v1266
        %v1457 = vpack.c.bf16 %v1291, %v1291
        %v1458 = vpack.c.bf16 %v1316, %v1316
        %v1460 = vperm.slane %v1048, 0
        %vm1462 = vcmask 64512
        %v1464 = vsel %vm1462, %v1451, 0
        %v1467 = vsel %vm1462, %v1455, 0
        %1469 = vmatpush.bf16.xpose.msra.mxu0 0
        %1470 = vmatpush.bf16.xpose.msra.mxu0 0
        %1471 = vmatpush.bf16.xpose.msra.mxu0 0
        %1472 = vmatpush.bf16.xpose.msra.mxu0 0
        %1473 = vmatpush.bf16.xpose.msra.mxu0 0
        %1474 = vmatpush.bf16.xpose.msra.mxu0 0
        %1475 = vmatpush.bf16.xpose.msra.mxu0 0
        %1476 = vmatpush.bf16.xpose.msra.mxu0 %v1467
        %1477 = vmatmul.bf16.gmra.mxu0 %v1464
        %v1478 = vpop.f32.mrf.mxu0
        %v1479 = vadd.f32 %v1460, %v1478
        %v1480 = vpop.f32.mrf.mxu0
        %1481 = vdwg.mxu0
        %v1483 = vsel %vm1462, %v1452, 0
        %v1486 = vsel %vm1462, %v1456, 0
        %1488 = vmatpush.bf16.xpose.msra.mxu0 0
        %1489 = vmatpush.bf16.xpose.msra.mxu0 0
        %1490 = vmatpush.bf16.xpose.msra.mxu0 0
        %1491 = vmatpush.bf16.xpose.msra.mxu0 0
        %1492 = vmatpush.bf16.xpose.msra.mxu0 0
        %1493 = vmatpush.bf16.xpose.msra.mxu0 0
        %1494 = vmatpush.bf16.xpose.msra.mxu0 0
        %1495 = vmatpush.bf16.xpose.msra.mxu0 %v1486
        %1496 = vmatmul.bf16.gmra.mxu0 %v1483
        %v1497 = vpop.f32.mrf.mxu0
        %v1498 = vadd.f32 %v1460, %v1497
        %v1499 = vpop.f32.mrf.mxu0
        %1500 = vdwg.mxu0
        %v1502 = vsel %vm1462, %v1453, 0
        %v1505 = vsel %vm1462, %v1457, 0
        %1507 = vmatpush.bf16.xpose.msra.mxu0 0
        %1508 = vmatpush.bf16.xpose.msra.mxu0 0
        %1509 = vmatpush.bf16.xpose.msra.mxu0 0
        %1510 = vmatpush.bf16.xpose.msra.mxu0 0
        %1511 = vmatpush.bf16.xpose.msra.mxu0 0
        %1512 = vmatpush.bf16.xpose.msra.mxu0 0
        %1513 = vmatpush.bf16.xpose.msra.mxu0 0
        %1514 = vmatpush.bf16.xpose.msra.mxu0 %v1505
        %1515 = vmatmul.bf16.gmra.mxu0 %v1502
        %v1516 = vpop.f32.mrf.mxu0
        %v1517 = vadd.f32 %v1460, %v1516
        %v1518 = vpop.f32.mrf.mxu0
        %1519 = vdwg.mxu0
        %v1521 = vsel %vm1462, %v1454, 0
        %v1524 = vsel %vm1462, %v1458, 0
        %1526 = vmatpush.bf16.xpose.msra.mxu0 0
        %1527 = vmatpush.bf16.xpose.msra.mxu0 0
        %1528 = vmatpush.bf16.xpose.msra.mxu0 0
        %1529 = vmatpush.bf16.xpose.msra.mxu0 0
        %1530 = vmatpush.bf16.xpose.msra.mxu0 0
        %1531 = vmatpush.bf16.xpose.msra.mxu0 0
        %1532 = vmatpush.bf16.xpose.msra.mxu0 0
        %1533 = vmatpush.bf16.xpose.msra.mxu0 %v1524
        %1534 = vmatmul.bf16.gmra.mxu0 %v1521
        %v1535 = vpop.f32.mrf.mxu0
        %v1536 = vadd.f32 %v1460, %v1535
        %v1537 = vpop.f32.mrf.mxu0
        %1538 = vdwg.mxu0
        %v1539 = vsel %vm1462, %v1479, -inf
        %1540 = vmax.xlane.f32.xlu0 %v1539
        %v1541 = vpop.xlane.xlu0 %1540
        %v1542 = vsel %vm1462, %v1498, -inf
        %1543 = vmax.xlane.f32.xlu0 %v1542
        %v1544 = vpop.xlane.xlu0 %1543
        %v1545 = vsel %vm1462, %v1517, -inf
        %1546 = vmax.xlane.f32.xlu0 %v1545
        %v1547 = vpop.xlane.xlu0 %1546
        %v1548 = vsel %vm1462, %v1536, -inf
        %1549 = vmax.xlane.f32.xlu0 %v1548
        %v1550 = vpop.xlane.xlu0 %1549
        %v1551 = vsub.f32 %v1479, %v1541
        %v1552 = vsub.f32 %v1498, %v1544
        %v1553 = vsub.f32 %v1517, %v1547
        %v1554 = vsub.f32 %v1536, %v1550
        %v1555 = vmul.f32 %v1551, 1.442695
        %v1556 = vpow.pop %v1555
        %v1557 = vmul.f32 %v1552, 1.442695
        %v1558 = vpow.pop %v1557
        %v1559 = vmul.f32 %v1553, 1.442695
        %v1560 = vpow.pop %v1559
        %v1561 = vmul.f32 %v1554, 1.442695
        %v1562 = vpow.pop %v1561
        %v1563 = vsel %vm1462, %v1556, 0.0
        %1564 = vadd.xlane.f32.xlu0 %v1563
        %v1565 = vpop.xlane.xlu0 %1564
        %v1566 = vsel %vm1462, %v1558, 0.0
        %1567 = vadd.xlane.f32.xlu0 %v1566
        %v1568 = vpop.xlane.xlu0 %1567
        %v1569 = vsel %vm1462, %v1560, 0.0
        %1570 = vadd.xlane.f32.xlu0 %v1569
        %v1571 = vpop.xlane.xlu0 %1570
        %v1572 = vsel %vm1462, %v1562, 0.0
        %1573 = vadd.xlane.f32.xlu0 %v1572
        %v1574 = vpop.xlane.xlu0 %1573
        %v1575 = vrcp.pop %v1565
        %v1576 = vrcp.pop %v1568
        %v1577 = vrcp.pop %v1571
        %v1578 = vrcp.pop %v1574
        %v1579 = vmul.f32 %v1556, %v1575
        %v1580 = vmul.f32 %v1558, %v1576
        %v1581 = vmul.f32 %v1560, %v1577
        %v1582 = vmul.f32 %v1562, %v1578
        %1583 = vst.msk [vmem:[%s1023] sm:$0xff] %vm1462, %v1579
        %1584 = vst.msk [vmem:[%s1023 + $0x8] sm:$0xff] %vm1462, %v1580
        %1585 = vst.msk [vmem:[%s1023 + $0x10] sm:$0xff] %vm1462, %v1581
        %1586 = vst.msk [vmem:[%s1023 + $0x18] sm:$0xff] %vm1462, %v1582
        %v1587 = vpack.c.bf16 %v1579, %v1579
        %v1588 = vpack.c.bf16 %v1580, %v1580
        %v1589 = vpack.c.bf16 %v1581, %v1581
        %v1590 = vpack.c.bf16 %v1582, %v1582
        %v1591 = vpack.c.bf16 %v1373, %v1373
        %v1592 = vpack.c.bf16 %v1398, %v1398
        %v1593 = vpack.c.bf16 %v1423, %v1423
        %v1594 = vpack.c.bf16 %v1448, %v1448
        %v1596 = vsel %vm1462, %v1587, 0
        %vm1598 = vcmask 1043456
        %v1600 = vsel %vm1598, %v1591, 0
        %1602 = vmatpush.bf16.msra.mxu0 0
        %1603 = vmatpush.bf16.msra.mxu0 0
        %1604 = vmatpush.bf16.msra.mxu0 0
        %1605 = vmatpush.bf16.msra.mxu0 0
        %1606 = vmatpush.bf16.msra.mxu0 0
        %1607 = vmatpush.bf16.msra.mxu0 0
        %1608 = vmatpush.bf16.msra.mxu0 0
        %1609 = vmatpush.bf16.msra.mxu0 %v1600
        %1610 = vmatmul.bf16.gmra.mxu0 %v1596
        %v1611 = vpop.f32.mrf.mxu0
        %v1612 = vadd.f32 0.0, %v1611
        %v1613 = vpop.f32.mrf.mxu0
        %1614 = vdwg.mxu0
        %v1616 = vsel %vm1462, %v1588, 0
        %v1619 = vsel %vm1598, %v1592, 0
        %1621 = vmatpush.bf16.msra.mxu0 0
        %1622 = vmatpush.bf16.msra.mxu0 0
        %1623 = vmatpush.bf16.msra.mxu0 0
        %1624 = vmatpush.bf16.msra.mxu0 0
        %1625 = vmatpush.bf16.msra.mxu0 0
        %1626 = vmatpush.bf16.msra.mxu0 0
        %1627 = vmatpush.bf16.msra.mxu0 0
        %1628 = vmatpush.bf16.msra.mxu0 %v1619
        %1629 = vmatmul.bf16.gmra.mxu0 %v1616
        %v1630 = vpop.f32.mrf.mxu0
        %v1631 = vadd.f32 0.0, %v1630
        %v1632 = vpop.f32.mrf.mxu0
        %1633 = vdwg.mxu0
        %v1635 = vsel %vm1462, %v1589, 0
        %v1638 = vsel %vm1598, %v1593, 0
        %1640 = vmatpush.bf16.msra.mxu0 0
        %1641 = vmatpush.bf16.msra.mxu0 0
        %1642 = vmatpush.bf16.msra.mxu0 0
        %1643 = vmatpush.bf16.msra.mxu0 0
        %1644 = vmatpush.bf16.msra.mxu0 0
        %1645 = vmatpush.bf16.msra.mxu0 0
        %1646 = vmatpush.bf16.msra.mxu0 0
        %1647 = vmatpush.bf16.msra.mxu0 %v1638
        %1648 = vmatmul.bf16.gmra.mxu0 %v1635
        %v1649 = vpop.f32.mrf.mxu0
        %v1650 = vadd.f32 0.0, %v1649
        %v1651 = vpop.f32.mrf.mxu0
        %1652 = vdwg.mxu0
        %v1654 = vsel %vm1462, %v1590, 0
        %v1657 = vsel %vm1598, %v1594, 0
        %1659 = vmatpush.bf16.msra.mxu0 0
        %1660 = vmatpush.bf16.msra.mxu0 0
        %1661 = vmatpush.bf16.msra.mxu0 0
        %1662 = vmatpush.bf16.msra.mxu0 0
        %1663 = vmatpush.bf16.msra.mxu0 0
        %1664 = vmatpush.bf16.msra.mxu0 0
        %1665 = vmatpush.bf16.msra.mxu0 0
        %1666 = vmatpush.bf16.msra.mxu0 %v1657
        %1667 = vmatmul.bf16.gmra.mxu0 %v1654
        %v1668 = vpop.f32.mrf.mxu0
        %v1669 = vadd.f32 0.0, %v1668
        %v1670 = vpop.f32.mrf.mxu0
        %1671 = vdwg.mxu0
        %v1672 = vpack.c.bf16 %v1612, %v1612
        %v1673 = vpack.c.bf16 %v1631, %v1631
        %v1674 = vpack.c.bf16 %v1650, %v1650
        %v1675 = vpack.c.bf16 %v1669, %v1669
        %v1676 = vld [vmem:[%s21] sm:$0xf]
        %v1677 = vld [vmem:[%s21 + $0x4] sm:$0xf]
        %v1678 = vld [vmem:[%s21 + $0x8] sm:$0xf]
        %v1679 = vld [vmem:[%s21 + $0xc] sm:$0xf]
        %v1681 = vsel %vm1462, %v1672, 0
        %v1684 = vsel %vm1598, %v1676, 0
        %1686 = vmatpush.bf16.msra.mxu0 0
        %1687 = vmatpush.bf16.msra.mxu0 0
        %1688 = vmatpush.bf16.msra.mxu0 0
        %1689 = vmatpush.bf16.msra.mxu0 0
        %1690 = vmatpush.bf16.msra.mxu0 0
        %1691 = vmatpush.bf16.msra.mxu0 0
        %1692 = vmatpush.bf16.msra.mxu0 0
        %1693 = vmatpush.bf16.msra.mxu0 %v1684
        %1694 = vmatmul.bf16.gmra.mxu0 %v1681
        %v1695 = vpop.f32.mrf.mxu0
        %v1696 = vadd.f32 0.0, %v1695
        %v1697 = vpop.f32.mrf.mxu0
        %1698 = vdwg.mxu0
        %v1700 = vsel %vm1462, %v1673, 0
        %v1703 = vsel %vm1598, %v1677, 0
        %1705 = vmatpush.bf16.msra.mxu0 0
        %1706 = vmatpush.bf16.msra.mxu0 0
        %1707 = vmatpush.bf16.msra.mxu0 0
        %1708 = vmatpush.bf16.msra.mxu0 0
        %1709 = vmatpush.bf16.msra.mxu0 0
        %1710 = vmatpush.bf16.msra.mxu0 0
        %1711 = vmatpush.bf16.msra.mxu0 0
        %1712 = vmatpush.bf16.msra.mxu0 %v1703
        %1713 = vmatmul.bf16.gmra.mxu0 %v1700
        %v1714 = vpop.f32.mrf.mxu0
        %v1715 = vadd.f32 0.0, %v1714
        %v1716 = vpop.f32.mrf.mxu0
        %1717 = vdwg.mxu0
        %v1719 = vsel %vm1462, %v1674, 0
        %v1722 = vsel %vm1598, %v1678, 0
        %1724 = vmatpush.bf16.msra.mxu0 0
        %1725 = vmatpush.bf16.msra.mxu0 0
        %1726 = vmatpush.bf16.msra.mxu0 0
        %1727 = vmatpush.bf16.msra.mxu0 0
        %1728 = vmatpush.bf16.msra.mxu0 0
        %1729 = vmatpush.bf16.msra.mxu0 0
        %1730 = vmatpush.bf16.msra.mxu0 0
        %1731 = vmatpush.bf16.msra.mxu0 %v1722
        %1732 = vmatmul.bf16.gmra.mxu0 %v1719
        %v1733 = vpop.f32.mrf.mxu0
        %v1734 = vadd.f32 0.0, %v1733
        %v1735 = vpop.f32.mrf.mxu0
        %1736 = vdwg.mxu0
        %v1738 = vsel %vm1462, %v1675, 0
        %v1741 = vsel %vm1598, %v1679, 0
        %1743 = vmatpush.bf16.msra.mxu0 0
        %1744 = vmatpush.bf16.msra.mxu0 0
        %1745 = vmatpush.bf16.msra.mxu0 0
        %1746 = vmatpush.bf16.msra.mxu0 0
        %1747 = vmatpush.bf16.msra.mxu0 0
        %1748 = vmatpush.bf16.msra.mxu0 0
        %1749 = vmatpush.bf16.msra.mxu0 0
        %1750 = vmatpush.bf16.msra.mxu0 %v1741
        %1751 = vmatmul.bf16.gmra.mxu0 %v1738
        %v1752 = vpop.f32.mrf.mxu0
        %v1753 = vadd.f32 0.0, %v1752
        %v1754 = vpop.f32.mrf.mxu0
        %1755 = vdwg.mxu0
        %v1756 = vsel %vm1095, %v1696, 0.0
        %v1757 = vsel %vm1095, %v1715, 0.0
        %v1758 = vadd.f32 %v1756, %v1757
        %v1759 = vsel %vm1095, %v1734, 0.0
        %v1760 = vadd.f32 %v1758, %v1759
        %v1761 = vsel %vm1095, %v1753, 0.0
        %v1762 = vadd.f32 %v1760, %v1761
        %v1763 = vld [vmem:[%s23] sm:$0x1]
        %v1765 = vperm.slane %v1763, 0
        %v1767 = vadd.f32 %v1762, %v1765
        %v1768 = vadd.f32 %v1767, %v1046
        %v1769 = vld [vmem:[%s25] sm:$0x1]
        %v1770 = vld [vmem:[%s27] sm:$0x1]
        %v1771 = vsel %vm1095, %v1768, 0.0
        %1772 = vadd.xlane.f32.xlu0 %v1771
        %v1773 = vpop.xlane.xlu0 %1772
        %v1774 = vrcp.pop 32.0
        %v1775 = vmul.f32 32.0, %v1774
        %v1776 = vsub.f32 1.0, %v1775
        %v1777 = vmul.f32 %v1774, %v1776
        %v1778 = vadd.f32 %v1774, %v1777
        %vm1779 = vweird.f32 %v1774
        %v1780 = vsel %vm1779, %v1774, %v1778
        %v1781 = vmul.f32 %v1773, %v1780
        %v1782 = vsub.f32 %v1768, %v1781
        %v1783 = vmul.f32 %v1782, %v1782
        %v1784 = vsel %vm1095, %v1783, 0.0
        %1785 = vadd.xlane.f32.xlu0 %v1784
        %v1786 = vpop.xlane.xlu0 %1785
        %v1787 = vmul.f32 %v1786, %v1780
        %v1788 = vadd.f32 %v1787, 1e-06
        %v1789 = vrsqrt.pop %v1788
        %v1790 = vmul.f32 %v1789, %v1788
        %v1791 = vmul.f32 %v1790, %v1789
        %v1792 = vmul.f32 0.5, %v1791
        %v1793 = vsub.f32 1.5, %v1792
        %v1794 = vmul.f32 %v1789, %v1793
        %vm1795 = vweird.f32 %v1788
        %vm1796 = vweird.f32 %v1789
        %vm1797 = vmor %vm1795, %vm1796
        %v1798 = vsel %vm1797, %v1789, %v1794
        %v1799 = vmul.f32 %v1782, %v1798
        %v1801 = vperm.slane %v1769, 0
        %v1803 = vmul.f32 %v1799, %v1801
        %v1805 = vperm.slane %v1770, 0
        %v1807 = vadd.f32 %v1803, %v1805
        %v1808 = vpack.c.bf16 %v1807, %v1807
        %v1809 = vpack.c.bf16 %v1047, %v1047
        %v1810 = vld [vmem:[%s29] sm:$0xf]
        %v1811 = vld [vmem:[%s29 + $0x4] sm:$0xf]
        %v1812 = vld [vmem:[%s29 + $0x8] sm:$0xf]
        %v1813 = vld [vmem:[%s29 + $0xc] sm:$0xf]
        %v1814 = vld [vmem:[%s29 + $0x10] sm:$0xf]
        %v1815 = vld [vmem:[%s29 + $0x14] sm:$0xf]
        %v1816 = vld [vmem:[%s29 + $0x18] sm:$0xf]
        %v1817 = vld [vmem:[%s29 + $0x1c] sm:$0xf]
        %v1818 = vld [vmem:[%s29 + $0x20] sm:$0xf]
        %v1819 = vld [vmem:[%s29 + $0x24] sm:$0xf]
        %v1820 = vld [vmem:[%s29 + $0x28] sm:$0xf]
        %v1821 = vld [vmem:[%s29 + $0x2c] sm:$0xf]
        %v1822 = vld [vmem:[%s29 + $0x30] sm:$0xf]
        %v1823 = vld [vmem:[%s29 + $0x34] sm:$0xf]
        %v1824 = vld [vmem:[%s29 + $0x38] sm:$0xf]
        %v1825 = vld [vmem:[%s29 + $0x3c] sm:$0xf]
        %v1826 = vld [vmem:[%s31] sm:$0x1]
        %v1827 = vld [vmem:[%s31 + $0x1] sm:$0x1]
        %v1828 = vld [vmem:[%s31 + $0x2] sm:$0x1]
        %v1829 = vld [vmem:[%s31 + $0x3] sm:$0x1]
        %v1834 = vperm.slane %v1826, 0
        %v1835 = vperm.slane %v1827, 0
        %v1836 = vperm.slane %v1828, 0
        %v1837 = vperm.slane %v1829, 0
        %v1846 = vunpack.c.l.b16 %v1810
        %v1847 = vunpack.c.l.b16 %v1811
        %v1848 = vunpack.c.l.b16 %v1812
        %v1849 = vunpack.c.l.b16 %v1813
        %v1850 = vpack.c.b16 %v1847, %v1846
        %v1851 = vpack.c.b16 %v1849, %v1848
        %v1855 = vsel %vm1095, %v1808, 0
        %1857 = vmatpush.bf16.msra.mxu0 0
        %1858 = vmatpush.bf16.msra.mxu0 0
        %1859 = vmatpush.bf16.msra.mxu0 0
        %1860 = vmatpush.bf16.msra.mxu0 0
        %1861 = vmatpush.bf16.msra.mxu0 0
        %1862 = vmatpush.bf16.msra.mxu0 0
        %1863 = vmatpush.bf16.msra.mxu0 %v1851
        %1864 = vmatpush.bf16.msra.mxu0 %v1850
        %1865 = vmatmul.bf16.gmra.mxu0 %v1855
        %v1866 = vpop.f32.mrf.mxu0
        %v1867 = vadd.f32 %v1834, %v1866
        %v1868 = vpop.f32.mrf.mxu0
        %1869 = vdwg.mxu0
        %v1874 = vunpack.c.l.b16 %v1814
        %v1875 = vunpack.c.l.b16 %v1815
        %v1876 = vunpack.c.l.b16 %v1816
        %v1877 = vunpack.c.l.b16 %v1817
        %v1878 = vpack.c.b16 %v1875, %v1874
        %v1879 = vpack.c.b16 %v1877, %v1876
        %1882 = vmatpush.bf16.msra.mxu0 0
        %1883 = vmatpush.bf16.msra.mxu0 0
        %1884 = vmatpush.bf16.msra.mxu0 0
        %1885 = vmatpush.bf16.msra.mxu0 0
        %1886 = vmatpush.bf16.msra.mxu0 0
        %1887 = vmatpush.bf16.msra.mxu0 0
        %1888 = vmatpush.bf16.msra.mxu0 %v1879
        %1889 = vmatpush.bf16.msra.mxu0 %v1878
        %1890 = vmatmul.bf16.gmra.mxu0 %v1855
        %v1891 = vpop.f32.mrf.mxu0
        %v1892 = vadd.f32 %v1835, %v1891
        %v1893 = vpop.f32.mrf.mxu0
        %1894 = vdwg.mxu0
        %v1899 = vunpack.c.l.b16 %v1818
        %v1900 = vunpack.c.l.b16 %v1819
        %v1901 = vunpack.c.l.b16 %v1820
        %v1902 = vunpack.c.l.b16 %v1821
        %v1903 = vpack.c.b16 %v1900, %v1899
        %v1904 = vpack.c.b16 %v1902, %v1901
        %1907 = vmatpush.bf16.msra.mxu0 0
        %1908 = vmatpush.bf16.msra.mxu0 0
        %1909 = vmatpush.bf16.msra.mxu0 0
        %1910 = vmatpush.bf16.msra.mxu0 0
        %1911 = vmatpush.bf16.msra.mxu0 0
        %1912 = vmatpush.bf16.msra.mxu0 0
        %1913 = vmatpush.bf16.msra.mxu0 %v1904
        %1914 = vmatpush.bf16.msra.mxu0 %v1903
        %1915 = vmatmul.bf16.gmra.mxu0 %v1855
        %v1916 = vpop.f32.mrf.mxu0
        %v1917 = vadd.f32 %v1836, %v1916
        %v1918 = vpop.f32.mrf.mxu0
        %1919 = vdwg.mxu0
        %v1924 = vunpack.c.l.b16 %v1822
        %v1925 = vunpack.c.l.b16 %v1823
        %v1926 = vunpack.c.l.b16 %v1824
        %v1927 = vunpack.c.l.b16 %v1825
        %v1928 = vpack.c.b16 %v1925, %v1924
        %v1929 = vpack.c.b16 %v1927, %v1926
        %1932 = vmatpush.bf16.msra.mxu0 0
        %1933 = vmatpush.bf16.msra.mxu0 0
        %1934 = vmatpush.bf16.msra.mxu0 0
        %1935 = vmatpush.bf16.msra.mxu0 0
        %1936 = vmatpush.bf16.msra.mxu0 0
        %1937 = vmatpush.bf16.msra.mxu0 0
        %1938 = vmatpush.bf16.msra.mxu0 %v1929
        %1939 = vmatpush.bf16.msra.mxu0 %v1928
        %1940 = vmatmul.bf16.gmra.mxu0 %v1855
        %v1941 = vpop.f32.mrf.mxu0
        %v1942 = vadd.f32 %v1837, %v1941
        %v1943 = vpop.f32.mrf.mxu0
        %1944 = vdwg.mxu0
        %v1945 = vld [vmem:[%s33] sm:$0xf]
        %v1946 = vld [vmem:[%s33 + $0x4] sm:$0xf]
        %v1947 = vld [vmem:[%s33 + $0x8] sm:$0xf]
        %v1948 = vld [vmem:[%s33 + $0xc] sm:$0xf]
        %v1949 = vld [vmem:[%s33 + $0x10] sm:$0xf]
        %v1950 = vld [vmem:[%s33 + $0x14] sm:$0xf]
        %v1951 = vld [vmem:[%s33 + $0x18] sm:$0xf]
        %v1952 = vld [vmem:[%s33 + $0x1c] sm:$0xf]
        %v1953 = vld [vmem:[%s33 + $0x20] sm:$0xf]
        %v1954 = vld [vmem:[%s33 + $0x24] sm:$0xf]
        %v1955 = vld [vmem:[%s33 + $0x28] sm:$0xf]
        %v1956 = vld [vmem:[%s33 + $0x2c] sm:$0xf]
        %v1957 = vld [vmem:[%s33 + $0x30] sm:$0xf]
        %v1958 = vld [vmem:[%s33 + $0x34] sm:$0xf]
        %v1959 = vld [vmem:[%s33 + $0x38] sm:$0xf]
        %v1960 = vld [vmem:[%s33 + $0x3c] sm:$0xf]
        %v1961 = vld [vmem:[%s35] sm:$0x1]
        %v1962 = vld [vmem:[%s35 + $0x1] sm:$0x1]
        %v1963 = vld [vmem:[%s35 + $0x2] sm:$0x1]
        %v1964 = vld [vmem:[%s35 + $0x3] sm:$0x1]
        %v1969 = vperm.slane %v1961, 0
        %v1970 = vperm.slane %v1962, 0
        %v1971 = vperm.slane %v1963, 0
        %v1972 = vperm.slane %v1964, 0
        %v1981 = vunpack.c.l.b16 %v1945
        %v1982 = vunpack.c.l.b16 %v1946
        %v1983 = vunpack.c.l.b16 %v1947
        %v1984 = vunpack.c.l.b16 %v1948
        %v1985 = vpack.c.b16 %v1982, %v1981
        %v1986 = vpack.c.b16 %v1984, %v1983
        %v1990 = vsel %vm1095, %v1809, 0
        %1992 = vmatpush.bf16.msra.mxu0 0
        %1993 = vmatpush.bf16.msra.mxu0 0
        %1994 = vmatpush.bf16.msra.mxu0 0
        %1995 = vmatpush.bf16.msra.mxu0 0
        %1996 = vmatpush.bf16.msra.mxu0 0
        %1997 = vmatpush.bf16.msra.mxu0 0
        %1998 = vmatpush.bf16.msra.mxu0 %v1986
        %1999 = vmatpush.bf16.msra.mxu0 %v1985
        %2000 = vmatmul.bf16.gmra.mxu0 %v1990
        %v2001 = vpop.f32.mrf.mxu0
        %v2002 = vadd.f32 %v1969, %v2001
        %v2003 = vpop.f32.mrf.mxu0
        %2004 = vdwg.mxu0
        %v2009 = vunpack.c.l.b16 %v1949
        %v2010 = vunpack.c.l.b16 %v1950
        %v2011 = vunpack.c.l.b16 %v1951
        %v2012 = vunpack.c.l.b16 %v1952
        %v2013 = vpack.c.b16 %v2010, %v2009
        %v2014 = vpack.c.b16 %v2012, %v2011
        %2017 = vmatpush.bf16.msra.mxu0 0
        %2018 = vmatpush.bf16.msra.mxu0 0
        %2019 = vmatpush.bf16.msra.mxu0 0
        %2020 = vmatpush.bf16.msra.mxu0 0
        %2021 = vmatpush.bf16.msra.mxu0 0
        %2022 = vmatpush.bf16.msra.mxu0 0
        %2023 = vmatpush.bf16.msra.mxu0 %v2014
        %2024 = vmatpush.bf16.msra.mxu0 %v2013
        %2025 = vmatmul.bf16.gmra.mxu0 %v1990
        %v2026 = vpop.f32.mrf.mxu0
        %v2027 = vadd.f32 %v1970, %v2026
        %v2028 = vpop.f32.mrf.mxu0
        %2029 = vdwg.mxu0
        %v2034 = vunpack.c.l.b16 %v1953
        %v2035 = vunpack.c.l.b16 %v1954
        %v2036 = vunpack.c.l.b16 %v1955
        %v2037 = vunpack.c.l.b16 %v1956
        %v2038 = vpack.c.b16 %v2035, %v2034
        %v2039 = vpack.c.b16 %v2037, %v2036
        %2042 = vmatpush.bf16.msra.mxu0 0
        %2043 = vmatpush.bf16.msra.mxu0 0
        %2044 = vmatpush.bf16.msra.mxu0 0
        %2045 = vmatpush.bf16.msra.mxu0 0
        %2046 = vmatpush.bf16.msra.mxu0 0
        %2047 = vmatpush.bf16.msra.mxu0 0
        %2048 = vmatpush.bf16.msra.mxu0 %v2039
        %2049 = vmatpush.bf16.msra.mxu0 %v2038
        %2050 = vmatmul.bf16.gmra.mxu0 %v1990
        %v2051 = vpop.f32.mrf.mxu0
        %v2052 = vadd.f32 %v1971, %v2051
        %v2053 = vpop.f32.mrf.mxu0
        %2054 = vdwg.mxu0
        %v2059 = vunpack.c.l.b16 %v1957
        %v2060 = vunpack.c.l.b16 %v1958
        %v2061 = vunpack.c.l.b16 %v1959
        %v2062 = vunpack.c.l.b16 %v1960
        %v2063 = vpack.c.b16 %v2060, %v2059
        %v2064 = vpack.c.b16 %v2062, %v2061
        %2067 = vmatpush.bf16.msra.mxu0 0
        %2068 = vmatpush.bf16.msra.mxu0 0
        %2069 = vmatpush.bf16.msra.mxu0 0
        %2070 = vmatpush.bf16.msra.mxu0 0
        %2071 = vmatpush.bf16.msra.mxu0 0
        %2072 = vmatpush.bf16.msra.mxu0 0
        %2073 = vmatpush.bf16.msra.mxu0 %v2064
        %2074 = vmatpush.bf16.msra.mxu0 %v2063
        %2075 = vmatmul.bf16.gmra.mxu0 %v1990
        %v2076 = vpop.f32.mrf.mxu0
        %v2077 = vadd.f32 %v1972, %v2076
        %v2078 = vpop.f32.mrf.mxu0
        %2079 = vdwg.mxu0
        %v2080 = vld [vmem:[%s37] sm:$0xf]
        %v2081 = vld [vmem:[%s37 + $0x4] sm:$0xf]
        %v2082 = vld [vmem:[%s37 + $0x8] sm:$0xf]
        %v2083 = vld [vmem:[%s37 + $0xc] sm:$0xf]
        %v2084 = vld [vmem:[%s37 + $0x10] sm:$0xf]
        %v2085 = vld [vmem:[%s37 + $0x14] sm:$0xf]
        %v2086 = vld [vmem:[%s37 + $0x18] sm:$0xf]
        %v2087 = vld [vmem:[%s37 + $0x1c] sm:$0xf]
        %v2088 = vld [vmem:[%s37 + $0x20] sm:$0xf]
        %v2089 = vld [vmem:[%s37 + $0x24] sm:$0xf]
        %v2090 = vld [vmem:[%s37 + $0x28] sm:$0xf]
        %v2091 = vld [vmem:[%s37 + $0x2c] sm:$0xf]
        %v2092 = vld [vmem:[%s37 + $0x30] sm:$0xf]
        %v2093 = vld [vmem:[%s37 + $0x34] sm:$0xf]
        %v2094 = vld [vmem:[%s37 + $0x38] sm:$0xf]
        %v2095 = vld [vmem:[%s37 + $0x3c] sm:$0xf]
        %v2096 = vld [vmem:[%s39] sm:$0x1]
        %v2097 = vld [vmem:[%s39 + $0x1] sm:$0x1]
        %v2098 = vld [vmem:[%s39 + $0x2] sm:$0x1]
        %v2099 = vld [vmem:[%s39 + $0x3] sm:$0x1]
        %v2104 = vperm.slane %v2096, 0
        %v2105 = vperm.slane %v2097, 0
        %v2106 = vperm.slane %v2098, 0
        %v2107 = vperm.slane %v2099, 0
        %v2116 = vunpack.c.l.b16 %v2080
        %v2117 = vunpack.c.l.b16 %v2081
        %v2118 = vunpack.c.l.b16 %v2082
        %v2119 = vunpack.c.l.b16 %v2083
        %v2120 = vpack.c.b16 %v2117, %v2116
        %v2121 = vpack.c.b16 %v2119, %v2118
        %2124 = vmatpush.bf16.msra.mxu0 0
        %2125 = vmatpush.bf16.msra.mxu0 0
        %2126 = vmatpush.bf16.msra.mxu0 0
        %2127 = vmatpush.bf16.msra.mxu0 0
        %2128 = vmatpush.bf16.msra.mxu0 0
        %2129 = vmatpush.bf16.msra.mxu0 0
        %2130 = vmatpush.bf16.msra.mxu0 %v2121
        %2131 = vmatpush.bf16.msra.mxu0 %v2120
        %2132 = vmatmul.bf16.gmra.mxu0 %v1990
        %v2133 = vpop.f32.mrf.mxu0
        %v2134 = vadd.f32 %v2104, %v2133
        %v2135 = vpop.f32.mrf.mxu0
        %2136 = vdwg.mxu0
        %v2141 = vunpack.c.l.b16 %v2084
        %v2142 = vunpack.c.l.b16 %v2085
        %v2143 = vunpack.c.l.b16 %v2086
        %v2144 = vunpack.c.l.b16 %v2087
        %v2145 = vpack.c.b16 %v2142, %v2141
        %v2146 = vpack.c.b16 %v2144, %v2143
        %2149 = vmatpush.bf16.msra.mxu0 0
        %2150 = vmatpush.bf16.msra.mxu0 0
        %2151 = vmatpush.bf16.msra.mxu0 0
        %2152 = vmatpush.bf16.msra.mxu0 0
        %2153 = vmatpush.bf16.msra.mxu0 0
        %2154 = vmatpush.bf16.msra.mxu0 0
        %2155 = vmatpush.bf16.msra.mxu0 %v2146
        %2156 = vmatpush.bf16.msra.mxu0 %v2145
        %2157 = vmatmul.bf16.gmra.mxu0 %v1990
        %v2158 = vpop.f32.mrf.mxu0
        %v2159 = vadd.f32 %v2105, %v2158
        %v2160 = vpop.f32.mrf.mxu0
        %2161 = vdwg.mxu0
        %v2166 = vunpack.c.l.b16 %v2088
        %v2167 = vunpack.c.l.b16 %v2089
        %v2168 = vunpack.c.l.b16 %v2090
        %v2169 = vunpack.c.l.b16 %v2091
        %v2170 = vpack.c.b16 %v2167, %v2166
        %v2171 = vpack.c.b16 %v2169, %v2168
        %2174 = vmatpush.bf16.msra.mxu0 0
        %2175 = vmatpush.bf16.msra.mxu0 0
        %2176 = vmatpush.bf16.msra.mxu0 0
        %2177 = vmatpush.bf16.msra.mxu0 0
        %2178 = vmatpush.bf16.msra.mxu0 0
        %2179 = vmatpush.bf16.msra.mxu0 0
        %2180 = vmatpush.bf16.msra.mxu0 %v2171
        %2181 = vmatpush.bf16.msra.mxu0 %v2170
        %2182 = vmatmul.bf16.gmra.mxu0 %v1990
        %v2183 = vpop.f32.mrf.mxu0
        %v2184 = vadd.f32 %v2106, %v2183
        %v2185 = vpop.f32.mrf.mxu0
        %2186 = vdwg.mxu0
        %v2191 = vunpack.c.l.b16 %v2092
        %v2192 = vunpack.c.l.b16 %v2093
        %v2193 = vunpack.c.l.b16 %v2094
        %v2194 = vunpack.c.l.b16 %v2095
        %v2195 = vpack.c.b16 %v2192, %v2191
        %v2196 = vpack.c.b16 %v2194, %v2193
        %2199 = vmatpush.bf16.msra.mxu0 0
        %2200 = vmatpush.bf16.msra.mxu0 0
        %2201 = vmatpush.bf16.msra.mxu0 0
        %2202 = vmatpush.bf16.msra.mxu0 0
        %2203 = vmatpush.bf16.msra.mxu0 0
        %2204 = vmatpush.bf16.msra.mxu0 0
        %2205 = vmatpush.bf16.msra.mxu0 %v2196
        %2206 = vmatpush.bf16.msra.mxu0 %v2195
        %2207 = vmatmul.bf16.gmra.mxu0 %v1990
        %v2208 = vpop.f32.mrf.mxu0
        %v2209 = vadd.f32 %v2107, %v2208
        %v2210 = vpop.f32.mrf.mxu0
        %2211 = vdwg.mxu0
        %v2212 = vpack.c.bf16 %v1867, %v1867
        %v2213 = vpack.c.bf16 %v1892, %v1892
        %v2214 = vpack.c.bf16 %v1917, %v1917
        %v2215 = vpack.c.bf16 %v1942, %v1942
        %v2216 = vpack.c.bf16 %v2002, %v2002
        %v2217 = vpack.c.bf16 %v2027, %v2027
        %v2218 = vpack.c.bf16 %v2052, %v2052
        %v2219 = vpack.c.bf16 %v2077, %v2077
        %v2221 = vperm.slane %v1049, 0
        %v2224 = vsel %vm1462, %v2212, 0
        %v2227 = vsel %vm1462, %v2216, 0
        %2229 = vmatpush.bf16.xpose.msra.mxu0 0
        %2230 = vmatpush.bf16.xpose.msra.mxu0 0
        %2231 = vmatpush.bf16.xpose.msra.mxu0 0
        %2232 = vmatpush.bf16.xpose.msra.mxu0 0
        %2233 = vmatpush.bf16.xpose.msra.mxu0 0
        %2234 = vmatpush.bf16.xpose.msra.mxu0 0
        %2235 = vmatpush.bf16.xpose.msra.mxu0 0
        %2236 = vmatpush.bf16.xpose.msra.mxu0 %v2227
        %2237 = vmatmul.bf16.gmra.mxu0 %v2224
        %v2238 = vpop.f32.mrf.mxu0
        %v2239 = vadd.f32 %v2221, %v2238
        %v2240 = vpop.f32.mrf.mxu0
        %2241 = vdwg.mxu0
        %v2243 = vsel %vm1462, %v2213, 0
        %v2246 = vsel %vm1462, %v2217, 0
        %2248 = vmatpush.bf16.xpose.msra.mxu0 0
        %2249 = vmatpush.bf16.xpose.msra.mxu0 0
        %2250 = vmatpush.bf16.xpose.msra.mxu0 0
        %2251 = vmatpush.bf16.xpose.msra.mxu0 0
        %2252 = vmatpush.bf16.xpose.msra.mxu0 0
        %2253 = vmatpush.bf16.xpose.msra.mxu0 0
        %2254 = vmatpush.bf16.xpose.msra.mxu0 0
        %2255 = vmatpush.bf16.xpose.msra.mxu0 %v2246
        %2256 = vmatmul.bf16.gmra.mxu0 %v2243
        %v2257 = vpop.f32.mrf.mxu0
        %v2258 = vadd.f32 %v2221, %v2257
        %v2259 = vpop.f32.mrf.mxu0
        %2260 = vdwg.mxu0
        %v2262 = vsel %vm1462, %v2214, 0
        %v2265 = vsel %vm1462, %v2218, 0
        %2267 = vmatpush.bf16.xpose.msra.mxu0 0
        %2268 = vmatpush.bf16.xpose.msra.mxu0 0
        %2269 = vmatpush.bf16.xpose.msra.mxu0 0
        %2270 = vmatpush.bf16.xpose.msra.mxu0 0
        %2271 = vmatpush.bf16.xpose.msra.mxu0 0
        %2272 = vmatpush.bf16.xpose.msra.mxu0 0
        %2273 = vmatpush.bf16.xpose.msra.mxu0 0
        %2274 = vmatpush.bf16.xpose.msra.mxu0 %v2265
        %2275 = vmatmul.bf16.gmra.mxu0 %v2262
        %v2276 = vpop.f32.mrf.mxu0
        %v2277 = vadd.f32 %v2221, %v2276
        %v2278 = vpop.f32.mrf.mxu0
        %2279 = vdwg.mxu0
        %v2281 = vsel %vm1462, %v2215, 0
        %v2284 = vsel %vm1462, %v2219, 0
        %2286 = vmatpush.bf16.xpose.msra.mxu0 0
        %2287 = vmatpush.bf16.xpose.msra.mxu0 0
        %2288 = vmatpush.bf16.xpose.msra.mxu0 0
        %2289 = vmatpush.bf16.xpose.msra.mxu0 0
        %2290 = vmatpush.bf16.xpose.msra.mxu0 0
        %2291 = vmatpush.bf16.xpose.msra.mxu0 0
        %2292 = vmatpush.bf16.xpose.msra.mxu0 0
        %2293 = vmatpush.bf16.xpose.msra.mxu0 %v2284
        %2294 = vmatmul.bf16.gmra.mxu0 %v2281
        %v2295 = vpop.f32.mrf.mxu0
        %v2296 = vadd.f32 %v2221, %v2295
        %v2297 = vpop.f32.mrf.mxu0
        %2298 = vdwg.mxu0
        %v2299 = vsel %vm1462, %v2239, -inf
        %2300 = vmax.xlane.f32.xlu0 %v2299
        %v2301 = vpop.xlane.xlu0 %2300
        %v2302 = vsel %vm1462, %v2258, -inf
        %2303 = vmax.xlane.f32.xlu0 %v2302
        %v2304 = vpop.xlane.xlu0 %2303
        %v2305 = vsel %vm1462, %v2277, -inf
        %2306 = vmax.xlane.f32.xlu0 %v2305
        %v2307 = vpop.xlane.xlu0 %2306
        %v2308 = vsel %vm1462, %v2296, -inf
        %2309 = vmax.xlane.f32.xlu0 %v2308
        %v2310 = vpop.xlane.xlu0 %2309
        %v2311 = vsub.f32 %v2239, %v2301
        %v2312 = vsub.f32 %v2258, %v2304
        %v2313 = vsub.f32 %v2277, %v2307
        %v2314 = vsub.f32 %v2296, %v2310
        %v2315 = vmul.f32 %v2311, 1.442695
        %v2316 = vpow.pop %v2315
        %v2317 = vmul.f32 %v2312, 1.442695
        %v2318 = vpow.pop %v2317
        %v2319 = vmul.f32 %v2313, 1.442695
        %v2320 = vpow.pop %v2319
        %v2321 = vmul.f32 %v2314, 1.442695
        %v2322 = vpow.pop %v2321
        %v2323 = vsel %vm1462, %v2316, 0.0
        %2324 = vadd.xlane.f32.xlu0 %v2323
        %v2325 = vpop.xlane.xlu0 %2324
        %v2326 = vsel %vm1462, %v2318, 0.0
        %2327 = vadd.xlane.f32.xlu0 %v2326
        %v2328 = vpop.xlane.xlu0 %2327
        %v2329 = vsel %vm1462, %v2320, 0.0
        %2330 = vadd.xlane.f32.xlu0 %v2329
        %v2331 = vpop.xlane.xlu0 %2330
        %v2332 = vsel %vm1462, %v2322, 0.0
        %2333 = vadd.xlane.f32.xlu0 %v2332
        %v2334 = vpop.xlane.xlu0 %2333
        %v2335 = vrcp.pop %v2325
        %v2336 = vrcp.pop %v2328
        %v2337 = vrcp.pop %v2331
        %v2338 = vrcp.pop %v2334
        %v2339 = vmul.f32 %v2316, %v2335
        %v2340 = vmul.f32 %v2318, %v2336
        %v2341 = vmul.f32 %v2320, %v2337
        %v2342 = vmul.f32 %v2322, %v2338
        %2343 = vst.msk [vmem:[%s1030] sm:$0xff] %vm1462, %v2339
        %2344 = vst.msk [vmem:[%s1030 + $0x8] sm:$0xff] %vm1462, %v2340
        %2345 = vst.msk [vmem:[%s1030 + $0x10] sm:$0xff] %vm1462, %v2341
        %2346 = vst.msk [vmem:[%s1030 + $0x18] sm:$0xff] %vm1462, %v2342
        %v2347 = vpack.c.bf16 %v2339, %v2339
        %v2348 = vpack.c.bf16 %v2340, %v2340
        %v2349 = vpack.c.bf16 %v2341, %v2341
        %v2350 = vpack.c.bf16 %v2342, %v2342
        %v2351 = vpack.c.bf16 %v2134, %v2134
        %v2352 = vpack.c.bf16 %v2159, %v2159
        %v2353 = vpack.c.bf16 %v2184, %v2184
        %v2354 = vpack.c.bf16 %v2209, %v2209
        %v2356 = vsel %vm1462, %v2347, 0
        %v2359 = vsel %vm1598, %v2351, 0
        %2361 = vmatpush.bf16.msra.mxu0 0
        %2362 = vmatpush.bf16.msra.mxu0 0
        %2363 = vmatpush.bf16.msra.mxu0 0
        %2364 = vmatpush.bf16.msra.mxu0 0
        %2365 = vmatpush.bf16.msra.mxu0 0
        %2366 = vmatpush.bf16.msra.mxu0 0
        %2367 = vmatpush.bf16.msra.mxu0 0
        %2368 = vmatpush.bf16.msra.mxu0 %v2359
        %2369 = vmatmul.bf16.gmra.mxu0 %v2356
        %v2370 = vpop.f32.mrf.mxu0
        %v2371 = vadd.f32 0.0, %v2370
        %v2372 = vpop.f32.mrf.mxu0
        %2373 = vdwg.mxu0
        %v2375 = vsel %vm1462, %v2348, 0
        %v2378 = vsel %vm1598, %v2352, 0
        %2380 = vmatpush.bf16.msra.mxu0 0
        %2381 = vmatpush.bf16.msra.mxu0 0
        %2382 = vmatpush.bf16.msra.mxu0 0
        %2383 = vmatpush.bf16.msra.mxu0 0
        %2384 = vmatpush.bf16.msra.mxu0 0
        %2385 = vmatpush.bf16.msra.mxu0 0
        %2386 = vmatpush.bf16.msra.mxu0 0
        %2387 = vmatpush.bf16.msra.mxu0 %v2378
        %2388 = vmatmul.bf16.gmra.mxu0 %v2375
        %v2389 = vpop.f32.mrf.mxu0
        %v2390 = vadd.f32 0.0, %v2389
        %v2391 = vpop.f32.mrf.mxu0
        %2392 = vdwg.mxu0
        %v2394 = vsel %vm1462, %v2349, 0
        %v2397 = vsel %vm1598, %v2353, 0
        %2399 = vmatpush.bf16.msra.mxu0 0
        %2400 = vmatpush.bf16.msra.mxu0 0
        %2401 = vmatpush.bf16.msra.mxu0 0
        %2402 = vmatpush.bf16.msra.mxu0 0
        %2403 = vmatpush.bf16.msra.mxu0 0
        %2404 = vmatpush.bf16.msra.mxu0 0
        %2405 = vmatpush.bf16.msra.mxu0 0
        %2406 = vmatpush.bf16.msra.mxu0 %v2397
        %2407 = vmatmul.bf16.gmra.mxu0 %v2394
        %v2408 = vpop.f32.mrf.mxu0
        %v2409 = vadd.f32 0.0, %v2408
        %v2410 = vpop.f32.mrf.mxu0
        %2411 = vdwg.mxu0
        %v2413 = vsel %vm1462, %v2350, 0
        %v2416 = vsel %vm1598, %v2354, 0
        %2418 = vmatpush.bf16.msra.mxu0 0
        %2419 = vmatpush.bf16.msra.mxu0 0
        %2420 = vmatpush.bf16.msra.mxu0 0
        %2421 = vmatpush.bf16.msra.mxu0 0
        %2422 = vmatpush.bf16.msra.mxu0 0
        %2423 = vmatpush.bf16.msra.mxu0 0
        %2424 = vmatpush.bf16.msra.mxu0 0
        %2425 = vmatpush.bf16.msra.mxu0 %v2416
        %2426 = vmatmul.bf16.gmra.mxu0 %v2413
        %v2427 = vpop.f32.mrf.mxu0
        %v2428 = vadd.f32 0.0, %v2427
        %v2429 = vpop.f32.mrf.mxu0
        %2430 = vdwg.mxu0
        %v2431 = vpack.c.bf16 %v2371, %v2371
        %v2432 = vpack.c.bf16 %v2390, %v2390
        %v2433 = vpack.c.bf16 %v2409, %v2409
        %v2434 = vpack.c.bf16 %v2428, %v2428
        %v2435 = vld [vmem:[%s41] sm:$0xf]
        %v2436 = vld [vmem:[%s41 + $0x4] sm:$0xf]
        %v2437 = vld [vmem:[%s41 + $0x8] sm:$0xf]
        %v2438 = vld [vmem:[%s41 + $0xc] sm:$0xf]
        %v2440 = vsel %vm1462, %v2431, 0
        %v2443 = vsel %vm1598, %v2435, 0
        %2445 = vmatpush.bf16.msra.mxu0 0
        %2446 = vmatpush.bf16.msra.mxu0 0
        %2447 = vmatpush.bf16.msra.mxu0 0
        %2448 = vmatpush.bf16.msra.mxu0 0
        %2449 = vmatpush.bf16.msra.mxu0 0
        %2450 = vmatpush.bf16.msra.mxu0 0
        %2451 = vmatpush.bf16.msra.mxu0 0
        %2452 = vmatpush.bf16.msra.mxu0 %v2443
        %2453 = vmatmul.bf16.gmra.mxu0 %v2440
        %v2454 = vpop.f32.mrf.mxu0
        %v2455 = vadd.f32 0.0, %v2454
        %v2456 = vpop.f32.mrf.mxu0
        %2457 = vdwg.mxu0
        %v2459 = vsel %vm1462, %v2432, 0
        %v2462 = vsel %vm1598, %v2436, 0
        %2464 = vmatpush.bf16.msra.mxu0 0
        %2465 = vmatpush.bf16.msra.mxu0 0
        %2466 = vmatpush.bf16.msra.mxu0 0
        %2467 = vmatpush.bf16.msra.mxu0 0
        %2468 = vmatpush.bf16.msra.mxu0 0
        %2469 = vmatpush.bf16.msra.mxu0 0
        %2470 = vmatpush.bf16.msra.mxu0 0
        %2471 = vmatpush.bf16.msra.mxu0 %v2462
        %2472 = vmatmul.bf16.gmra.mxu0 %v2459
        %v2473 = vpop.f32.mrf.mxu0
        %v2474 = vadd.f32 0.0, %v2473
        %v2475 = vpop.f32.mrf.mxu0
        %2476 = vdwg.mxu0
        %v2478 = vsel %vm1462, %v2433, 0
        %v2481 = vsel %vm1598, %v2437, 0
        %2483 = vmatpush.bf16.msra.mxu0 0
        %2484 = vmatpush.bf16.msra.mxu0 0
        %2485 = vmatpush.bf16.msra.mxu0 0
        %2486 = vmatpush.bf16.msra.mxu0 0
        %2487 = vmatpush.bf16.msra.mxu0 0
        %2488 = vmatpush.bf16.msra.mxu0 0
        %2489 = vmatpush.bf16.msra.mxu0 0
        %2490 = vmatpush.bf16.msra.mxu0 %v2481
        %2491 = vmatmul.bf16.gmra.mxu0 %v2478
        %v2492 = vpop.f32.mrf.mxu0
        %v2493 = vadd.f32 0.0, %v2492
        %v2494 = vpop.f32.mrf.mxu0
        %2495 = vdwg.mxu0
        %v2497 = vsel %vm1462, %v2434, 0
        %v2500 = vsel %vm1598, %v2438, 0
        %2502 = vmatpush.bf16.msra.mxu0 0
        %2503 = vmatpush.bf16.msra.mxu0 0
        %2504 = vmatpush.bf16.msra.mxu0 0
        %2505 = vmatpush.bf16.msra.mxu0 0
        %2506 = vmatpush.bf16.msra.mxu0 0
        %2507 = vmatpush.bf16.msra.mxu0 0
        %2508 = vmatpush.bf16.msra.mxu0 0
        %2509 = vmatpush.bf16.msra.mxu0 %v2500
        %2510 = vmatmul.bf16.gmra.mxu0 %v2497
        %v2511 = vpop.f32.mrf.mxu0
        %v2512 = vadd.f32 0.0, %v2511
        %v2513 = vpop.f32.mrf.mxu0
        %2514 = vdwg.mxu0
        %v2515 = vsel %vm1095, %v2455, 0.0
        %v2516 = vsel %vm1095, %v2474, 0.0
        %v2517 = vadd.f32 %v2515, %v2516
        %v2518 = vsel %vm1095, %v2493, 0.0
        %v2519 = vadd.f32 %v2517, %v2518
        %v2520 = vsel %vm1095, %v2512, 0.0
        %v2521 = vadd.f32 %v2519, %v2520
        %v2522 = vld [vmem:[%s43] sm:$0x1]
        %v2524 = vperm.slane %v2522, 0
        %v2526 = vadd.f32 %v2521, %v2524
        %v2527 = vadd.f32 %v2526, %v1807
        %v2528 = vld [vmem:[%s45] sm:$0x1]
        %v2529 = vld [vmem:[%s47] sm:$0x1]
        %v2530 = vsel %vm1095, %v2527, 0.0
        %2531 = vadd.xlane.f32.xlu0 %v2530
        %v2532 = vpop.xlane.xlu0 %2531
        %v2533 = vmul.f32 %v2532, %v1780
        %v2534 = vsub.f32 %v2527, %v2533
        %v2535 = vmul.f32 %v2534, %v2534
        %v2536 = vsel %vm1095, %v2535, 0.0
        %2537 = vadd.xlane.f32.xlu0 %v2536
        %v2538 = vpop.xlane.xlu0 %2537
        %v2539 = vmul.f32 %v2538, %v1780
        %v2540 = vadd.f32 %v2539, 1e-06
        %v2541 = vrsqrt.pop %v2540
        %v2542 = vmul.f32 %v2541, %v2540
        %v2543 = vmul.f32 %v2542, %v2541
        %v2544 = vmul.f32 0.5, %v2543
        %v2545 = vsub.f32 1.5, %v2544
        %v2546 = vmul.f32 %v2541, %v2545
        %vm2547 = vweird.f32 %v2540
        %vm2548 = vweird.f32 %v2541
        %vm2549 = vmor %vm2547, %vm2548
        %v2550 = vsel %vm2549, %v2541, %v2546
        %v2551 = vmul.f32 %v2534, %v2550
        %v2553 = vperm.slane %v2528, 0
        %v2555 = vmul.f32 %v2551, %v2553
        %v2557 = vperm.slane %v2529, 0
        %v2559 = vadd.f32 %v2555, %v2557
        %v2560 = vpack.c.bf16 %v2559, %v2559
        %v2561 = vld [vmem:[%s49] sm:$0xf]
        %v2562 = vld [vmem:[%s49 + $0x4] sm:$0xf]
        %v2563 = vld [vmem:[%s49 + $0x8] sm:$0xf]
        %v2564 = vld [vmem:[%s49 + $0xc] sm:$0xf]
        %v2565 = vld [vmem:[%s51] sm:$0x1]
        %v2567 = vperm.slane %v2565, 0
        %v2573 = vunpack.c.l.b16 %v2561
        %v2574 = vunpack.c.l.b16 %v2562
        %v2575 = vunpack.c.l.b16 %v2563
        %v2576 = vunpack.c.l.b16 %v2564
        %v2577 = vpack.c.b16 %v2574, %v2573
        %v2578 = vpack.c.b16 %v2576, %v2575
        %v2582 = vsel %vm1095, %v2560, 0
        %2584 = vmatpush.bf16.msra.mxu0 0
        %2585 = vmatpush.bf16.msra.mxu0 0
        %2586 = vmatpush.bf16.msra.mxu0 0
        %2587 = vmatpush.bf16.msra.mxu0 0
        %2588 = vmatpush.bf16.msra.mxu0 0
        %2589 = vmatpush.bf16.msra.mxu0 0
        %2590 = vmatpush.bf16.msra.mxu0 %v2578
        %2591 = vmatpush.bf16.msra.mxu0 %v2577
        %2592 = vmatmul.bf16.gmra.mxu0 %v2582
        %v2593 = vpop.f32.mrf.mxu0
        %v2594 = vadd.f32 %v2567, %v2593
        %v2595 = vpop.f32.mrf.mxu0
        %2596 = vdwg.mxu0
        %v2597 = vmax.f32 %v2594, 0.0
        %v2598 = vpack.c.bf16 %v2597, %v2597
        %v2599 = vld [vmem:[%s53] sm:$0xf]
        %v2600 = vld [vmem:[%s53 + $0x4] sm:$0xf]
        %v2601 = vld [vmem:[%s53 + $0x8] sm:$0xf]
        %v2602 = vld [vmem:[%s53 + $0xc] sm:$0xf]
        %v2603 = vld [vmem:[%s53 + $0x10] sm:$0xf]
        %v2604 = vld [vmem:[%s53 + $0x14] sm:$0xf]
        %v2605 = vld [vmem:[%s53 + $0x18] sm:$0xf]
        %v2606 = vld [vmem:[%s53 + $0x1c] sm:$0xf]
        %v2607 = vld [vmem:[%s55] sm:$0x1]
        %v2609 = vperm.slane %v2607, 0
        %v2619 = vunpack.c.l.b16 %v2599
        %v2620 = vunpack.c.l.b16 %v2600
        %v2621 = vunpack.c.l.b16 %v2601
        %v2622 = vunpack.c.l.b16 %v2602
        %v2623 = vunpack.c.l.b16 %v2603
        %v2624 = vunpack.c.l.b16 %v2604
        %v2625 = vunpack.c.l.b16 %v2605
        %v2626 = vunpack.c.l.b16 %v2606
        %v2627 = vpack.c.b16 %v2620, %v2619
        %v2628 = vpack.c.b16 %v2622, %v2621
        %v2629 = vpack.c.b16 %v2624, %v2623
        %v2630 = vpack.c.b16 %v2626, %v2625
        %vm2635 = vcmask 523264
        %v2637 = vsel %vm2635, %v2598, 0
        %2639 = vmatpush.bf16.msra.mxu0 0
        %2640 = vmatpush.bf16.msra.mxu0 0
        %2641 = vmatpush.bf16.msra.mxu0 0
        %2642 = vmatpush.bf16.msra.mxu0 0
        %2643 = vmatpush.bf16.msra.mxu0 %v2630
        %2644 = vmatpush.bf16.msra.mxu0 %v2629
        %2645 = vmatpush.bf16.msra.mxu0 %v2628
        %2646 = vmatpush.bf16.msra.mxu0 %v2627
        %2647 = vmatmul.bf16.gmra.mxu0 %v2637
        %v2648 = vpop.f32.mrf.mxu0
        %v2649 = vadd.f32 %v2609, %v2648
        %v2650 = vpop.f32.mrf.mxu0
        %2651 = vdwg.mxu0
        %v2652 = vadd.f32 %v2649, %v2559
        %v2653 = vld [vmem:[%s57] sm:$0x1]
        %v2654 = vld [vmem:[%s59] sm:$0x1]
        %v2655 = vsel %vm1095, %v2652, 0.0
        %2656 = vadd.xlane.f32.xlu0 %v2655
        %v2657 = vpop.xlane.xlu0 %2656
        %v2658 = vmul.f32 %v2657, %v1780
        %v2659 = vsub.f32 %v2652, %v2658
        %v2660 = vmul.f32 %v2659, %v2659
        %v2661 = vsel %vm1095, %v2660, 0.0
        %2662 = vadd.xlane.f32.xlu0 %v2661
        %v2663 = vpop.xlane.xlu0 %2662
        %v2664 = vmul.f32 %v2663, %v1780
        %v2665 = vadd.f32 %v2664, 1e-06
        %v2666 = vrsqrt.pop %v2665
        %v2667 = vmul.f32 %v2666, %v2665
        %v2668 = vmul.f32 %v2667, %v2666
        %v2669 = vmul.f32 0.5, %v2668
        %v2670 = vsub.f32 1.5, %v2669
        %v2671 = vmul.f32 %v2666, %v2670
        %vm2672 = vweird.f32 %v2665
        %vm2673 = vweird.f32 %v2666
        %vm2674 = vmor %vm2672, %vm2673
        %v2675 = vsel %vm2674, %v2666, %v2671
        %v2676 = vmul.f32 %v2659, %v2675
        %v2678 = vperm.slane %v2653, 0
        %v2680 = vmul.f32 %v2676, %v2678
        %v2682 = vperm.slane %v2654, 0
        %v2684 = vadd.f32 %v2680, %v2682
        %2685 = vst.msk [vmem:[%s1016] sm:$0xff] %vm1095, %v2684
        %s2686 = sand.u32 %s741, 1
        %s2687 = scalar_lea.sflag [#allocation3], %s2686
        %s2688 = sand.u32 %s741, 1
        %s2689 = smul.addr %s2688, 8
        %s2690 = scalar_lea.vmem [#allocation2], %s2689
        %s2691 = sand.u32 %s83, 1
        %s2692 = scalar_lea.sflag [#allocation5], %s2691
        %s2693 = sand.u32 %s767, 1
        %s2694 = smul.addr %s2693, 32
        %s2695 = scalar_lea.vmem [#allocation4], %s2694
        %s2696 = sand.u32 %s83, 1
        %s2697 = scalar_lea.sflag [#allocation5], %s2696
        %s2698 = sand.u32 %s793, 1
        %s2699 = smul.addr %s2698, 32
        %s2700 = scalar_lea.vmem [#allocation6], %s2699
        // Predicated region
        $region141: #{tpu_custom_call.1} parent=139 // pred_check
          %p2701 = pneg %p751
        $region142: #{tpu_custom_call.1} parent=139 // pred_check_branch
          %2703 = sbr.rel (%p2701) target = $region144
        $region143: #{tpu_custom_call.1} parent=139 // pred_region
          %2705 = vsyncadd %s2687, 0
          %s2706 = smul.addr %s83, 8
          %s2707 = scalar_lea.hbm %s61, %s2706
          %s2709 = sshll.u32 %s2690, 4
          %s2710 = int_to_ptr.vmem [resolvable:$true] %s2709
          %s2711 = sshll.u32 %s2707, 4
          %s2712 = int_to_ptr.hbm [resolvable:$true] %s2711
          %2714 = dma.vmem_to_hbm [thread:$0]  %s2710, 128, %s2712, %s2687
        $region144: #{tpu_custom_call.1} parent=139 // pred_fallthru
          _
        // Predicated region
        $region145: #{tpu_custom_call.1} parent=139 // pred_check
          %p2715 = pneg %p777
        $region146: #{tpu_custom_call.1} parent=139 // pred_check_branch
          %2717 = sbr.rel (%p2715) target = $region148
        $region147: #{tpu_custom_call.1} parent=139 // pred_region
          %2719 = vsyncadd %s2692, 0
          %s2720 = smul.addr %s83, 4
          %s2721 = smul.addr %s2720, 8
          %s2722 = scalar_lea.hbm %s63, %s2721
          %s2723 = sshll.u32 %s2695, 4
          %s2724 = int_to_ptr.vmem [resolvable:$true] %s2723
          %s2725 = sshll.u32 %s2722, 4
          %s2726 = int_to_ptr.hbm [resolvable:$true] %s2725
          %2731 = dma.vmem_to_hbm [thread:$0]  %s2724, 512, %s2726, %s2692, 128, 128, 8
        $region148: #{tpu_custom_call.1} parent=139 // pred_fallthru
          _
        // Predicated region
        $region149: #{tpu_custom_call.1} parent=139 // pred_check
          %p2732 = pneg %p803
        $region150: #{tpu_custom_call.1} parent=139 // pred_check_branch
          %2734 = sbr.rel (%p2732) target = $region152
        $region151: #{tpu_custom_call.1} parent=139 // pred_region
          %2736 = vsyncadd %s2697, 0
          %s2737 = smul.addr %s83, 4
          %s2738 = smul.addr %s2737, 8
          %s2739 = scalar_lea.hbm %s65, %s2738
          %s2740 = sshll.u32 %s2700, 4
          %s2741 = int_to_ptr.vmem [resolvable:$true] %s2740
          %s2742 = sshll.u32 %s2739, 4
          %s2743 = int_to_ptr.hbm [resolvable:$true] %s2742
          %2748 = dma.vmem_to_hbm [thread:$0]  %s2741, 512, %s2743, %s2697, 128, 128, 8
        $region152: #{tpu_custom_call.1} parent=139 // pred_fallthru
          _
      $region140: #{tpu_custom_call.1} parent=5 // pred_fallthru
        _
      %p2749 = scmp.le.s32.totalorder 2, %s78
      // Predicated region
      $region153: #{tpu_custom_call.1} parent=5 // pred_check
        %p2750 = pneg %p2749
      $region154: #{tpu_custom_call.1} parent=5 // pred_check_branch
        %2752 = sbr.rel (%p2750) target = $region156
      $region155: #{tpu_custom_call.1} parent=5 // pred_region
        %s2753 = ssub.s32 %s78, 2
        // Predicated region
        $region157: #{tpu_custom_call.1} parent=155 // pred_check
          %p2754 = pneg %p757
        $region158: #{tpu_custom_call.1} parent=155 // pred_check_branch
          %2756 = sbr.rel (%p2754) target = $region160
        $region159: #{tpu_custom_call.1} parent=155 // pred_region
          %s2757 = sand.u32 %s742, 1
          %s2758 = scalar_lea.sflag [#allocation3], %s2757
          %s2759 = sand.u32 %s742, 1
          %s2760 = smul.addr %s2759, 8
          %s2761 = scalar_lea.vmem [#allocation2], %s2760
          %2763 = dma.done %s2758, 128
        $region160: #{tpu_custom_call.1} parent=155 // pred_fallthru
          _
        // Predicated region
        $region161: #{tpu_custom_call.1} parent=155 // pred_check
          %p2764 = pneg %p783
        $region162: #{tpu_custom_call.1} parent=155 // pred_check_branch
          %2766 = sbr.rel (%p2764) target = $region164
        $region163: #{tpu_custom_call.1} parent=155 // pred_region
          %s2767 = sand.u32 %s84, 1
          %s2768 = scalar_lea.sflag [#allocation5], %s2767
          %s2769 = sand.u32 %s768, 1
          %s2770 = smul.addr %s2769, 32
          %s2771 = scalar_lea.vmem [#allocation4], %s2770
          %2773 = dma.done %s2768, 512
        $region164: #{tpu_custom_call.1} parent=155 // pred_fallthru
          _
        // Predicated region
        $region165: #{tpu_custom_call.1} parent=155 // pred_check
          %p2774 = pneg %p809
        $region166: #{tpu_custom_call.1} parent=155 // pred_check_branch
          %2776 = sbr.rel (%p2774) target = $region168
        $region167: #{tpu_custom_call.1} parent=155 // pred_region
          %s2777 = sand.u32 %s84, 1
          %s2778 = scalar_lea.sflag [#allocation5], %s2777
          %s2779 = sand.u32 %s794, 1
          %s2780 = smul.addr %s2779, 32
          %s2781 = scalar_lea.vmem [#allocation6], %s2780
          %2783 = dma.done %s2778, 512
        $region168: #{tpu_custom_call.1} parent=155 // pred_fallthru
          _
      $region156: #{tpu_custom_call.1} parent=5 // pred_fallthru
        _
    $region6: #{tpu_custom_call.1} parent=1 // loop_footer
      %s82 = sadd.s32 1, %s78
    $region7: #{tpu_custom_call.1} parent=1 // loop_footer_branch
      %77 = sbr.rel target = $region3
    $region8: #{tpu_custom_call.1} parent=1 // loop_exit
      _
    %2784 = vsyncpa [#allocation3], 1
    %s2785 = scalar_lea.sflag [#allocation3], 1
    %2786 = vsyncpa %s2785, 1
    %2787 = vsyncpa [#allocation5], 1
    %s2788 = scalar_lea.sflag [#allocation5], 1
    %2789 = vsyncpa %s2788, 1

</llo_original>
